<compile_context>
chip_gen: v7x
topology: tpu7x:2x2x1
jax: 0.10.0
libtpu: 0.0.40
codegen_flags: <defaults>
</compile_context>

<pallas_src>
import functools

import jax
import jax.numpy as jnp
from jax.experimental import pallas as pl
from jax.experimental.pallas import tpu as pltpu


def _round_up(x, m):
    return (x + m - 1) // m * m


# --------------------------- tiled matmul kernel -----------------------------

def _make_matmul_kernel(has_bias, act):
    def kernel(*refs):
        if has_bias:
            a_ref, b_ref, bias_ref, o_ref, acc_ref = refs
        else:
            a_ref, b_ref, o_ref, acc_ref = refs
            bias_ref = None

        @pl.when(pl.program_id(2) == 0)
        def _():
            acc_ref[...] = jnp.zeros_like(acc_ref)

        acc_ref[...] += jnp.dot(a_ref[...], b_ref[...],
                                preferred_element_type=jnp.float32)

        @pl.when(pl.program_id(2) == pl.num_programs(2) - 1)
        def _():
            out = acc_ref[...]
            if has_bias:
                out = out + bias_ref[...]
            if act == "tanh":
                out = jnp.tanh(out)
            o_ref[...] = out.astype(o_ref.dtype)

    return kernel


def matmul(a, b, bias=None, act="none"):
    """(M,K) @ (K,N) [+ bias] [+ activation], tiled & pipelined on the MXU.

    Operands are cast to bf16 (f32 accumulation) and padded to tile multiples
    so in-kernel stores are lane-dense; the result is sliced back to (M, N).
    """
    M, K = a.shape
    K2, N = b.shape
    assert K == K2

    tm = min(512, _round_up(M, 8))
    tn = min(256, _round_up(N, 128))
    tk = min(256, _round_up(K, 128))
    Mp, Np, Kp = _round_up(M, tm), _round_up(N, tn), _round_up(K, tk)

    a_p = jnp.pad(a.astype(jnp.bfloat16), ((0, Mp - M), (0, Kp - K)))
    b_p = jnp.pad(b.astype(jnp.bfloat16), ((0, Kp - K), (0, Np - N)))

    has_bias = bias is not None
    inputs = [a_p, b_p]
    in_specs = [
        pl.BlockSpec((tm, tk), lambda i, j, k: (i, k)),
        pl.BlockSpec((tk, tn), lambda i, j, k: (k, j)),
    ]
    if has_bias:
        bias_p = jnp.pad(bias.reshape(1, N).astype(jnp.float32),
                         ((0, 0), (0, Np - N)))
        inputs.append(bias_p)
        in_specs.append(pl.BlockSpec((1, tn), lambda i, j, k: (0, j)))

    out = pl.pallas_call(
        _make_matmul_kernel(has_bias, act),
        out_shape=jax.ShapeDtypeStruct((Mp, Np), jnp.float32),
        grid_spec=pltpu.PrefetchScalarGridSpec(
            num_scalar_prefetch=0,
            grid=(Mp // tm, Np // tn, Kp // tk),
            in_specs=in_specs,
            out_specs=pl.BlockSpec((tm, tn), lambda i, j, k: (i, j)),
            scratch_shapes=[pltpu.VMEM((tm, tn), jnp.float32)],
        ),
        compiler_params=pltpu.CompilerParams(
            dimension_semantics=("parallel", "parallel", "arbitrary"),
            vmem_limit_bytes=32 * 1024 * 1024,
        ),
    )(*inputs)
    return out[:M, :N]


# ----------------- tiled BatchNorm (batch stats) + LeakyReLU ------------------

def _bn_stats_kernel(x_ref, sum_ref, sq_ref, sacc, qacc):
    i = pl.program_id(0)

    @pl.when(i == 0)
    def _():
        sacc[...] = jnp.zeros_like(sacc)
        qacc[...] = jnp.zeros_like(qacc)

    x = x_ref[...]
    sacc[...] += jnp.sum(x, axis=0, keepdims=True)
    qacc[...] += jnp.sum(x * x, axis=0, keepdims=True)

    @pl.when(i == pl.num_programs(0) - 1)
    def _():
        sum_ref[...] = sacc[...]
        sq_ref[...] = qacc[...]


def _bn_apply_kernel(x_ref, scale_ref, shift_ref, o_ref):
    y = x_ref[...] * scale_ref[...] + shift_ref[...]
    o_ref[...] = jnp.where(y >= 0, y, 0.2 * y)        # fused LeakyReLU(0.2)


def batchnorm_lrelu(x2d, gamma, beta, eps=1e-5):
    """Training-mode BatchNorm2d (biased batch variance, eps=1e-5) + LeakyReLU(0.2)
    over a (rows, channels) matrix, tiled over rows."""
    M, C = x2d.shape
    tr = min(512, _round_up(M, 8))
    Mp = _round_up(M, tr)
    xp = jnp.pad(x2d, ((0, Mp - M), (0, 0)))
    n_tiles = Mp // tr

    sums, sqs = pl.pallas_call(
        _bn_stats_kernel,
        out_shape=(jax.ShapeDtypeStruct((1, C), jnp.float32),
                   jax.ShapeDtypeStruct((1, C), jnp.float32)),
        grid_spec=pltpu.PrefetchScalarGridSpec(
            num_scalar_prefetch=0,
            grid=(n_tiles,),
            in_specs=[pl.BlockSpec((tr, C), lambda i: (i, 0))],
            out_specs=(pl.BlockSpec((1, C), lambda i: (0, 0)),
                       pl.BlockSpec((1, C), lambda i: (0, 0))),
            scratch_shapes=[pltpu.VMEM((1, C), jnp.float32),
                            pltpu.VMEM((1, C), jnp.float32)],
        ),
        compiler_params=pltpu.CompilerParams(
            dimension_semantics=("arbitrary",)),
    )(xp)

    mean = sums / M                                  # zero-padded rows add 0
    var = jnp.maximum(sqs / M - mean * mean, 0.0)    # biased batch variance
    scale = gamma.reshape(1, C) * jax.lax.rsqrt(var + eps)
    shift = beta.reshape(1, C) - mean * scale

    out = pl.pallas_call(
        _bn_apply_kernel,
        out_shape=jax.ShapeDtypeStruct((Mp, C), jnp.float32),
        grid_spec=pltpu.PrefetchScalarGridSpec(
            num_scalar_prefetch=0,
            grid=(n_tiles,),
            in_specs=[pl.BlockSpec((tr, C), lambda i: (i, 0)),
                      pl.BlockSpec((1, C), lambda i: (0, 0)),
                      pl.BlockSpec((1, C), lambda i: (0, 0))],
            out_specs=pl.BlockSpec((tr, C), lambda i: (i, 0)),
        ),
        compiler_params=pltpu.CompilerParams(
            dimension_semantics=("parallel",)),
    )(xp, scale, shift)
    return out[:M, :]


# ------------------------------ conv glue ------------------------------------

def conv2d_3x3_nhwc(x, w_oihw, act="none"):
    """Conv2d(k=3, s=1, p=1, bias=False). x: NHWC, w: (Co, Ci, 3, 3) PyTorch layout."""
    Co, Ci, K, _ = w_oihw.shape
    N, H, W, _ = x.shape
    xp = jnp.pad(x, ((0, 0), (1, 1), (1, 1), (0, 0)))
    cols = [xp[:, dy:dy + H, dx:dx + W, :] for dy in range(K) for dx in range(K)]
    patches = jnp.concatenate(cols, axis=-1).reshape(N * H * W, K * K * Ci)
    w_mat = jnp.transpose(w_oihw, (2, 3, 1, 0)).reshape(K * K * Ci, Co)
    out = matmul(patches, w_mat, act=act)
    return out.reshape(N, H, W, Co)


# Sub-pixel (4-phase) decomposition of ConvTranspose2d(k=4, s=2, p=1):
#   out[2m+0] = x[m-1]*W[3] + x[m]*W[1]
#   out[2m+1] = x[m]  *W[2] + x[m+1]*W[0]
# (same along width), so each output parity phase is a stride-1 2x2 conv.
# Entries are (offset into the 1-padded input, original kernel index):
_PHASE_TAPS = {0: ((0, 3), (1, 1)),
               1: ((1, 2), (2, 0))}


def conv_transpose2d_s2_nhwc(x, w_iohw):
    """ConvTranspose2d(k=4, s=2, p=1, bias=False). x: NHWC, w: (Ci, Co, 4, 4)."""
    Ci, Co, K, _ = w_iohw.shape
    N, H, W, _ = x.shape
    xp = jnp.pad(x, ((0, 0), (1, 1), (1, 1), (0, 0)))
    phases = []
    for ry in (0, 1):
        for rx in (0, 1):
            cols, wrows = [], []
            for dy, ky in _PHASE_TAPS[ry]:
                for dx, kx in _PHASE_TAPS[rx]:
                    cols.append(xp[:, dy:dy + H, dx:dx + W, :])
                    wrows.append(w_iohw[:, :, ky, kx])          # (Ci, Co)
            patches = jnp.concatenate(cols, axis=-1).reshape(N * H * W, 4 * Ci)
            w_mat = jnp.concatenate(wrows, axis=0)              # (4*Ci, Co)
            phases.append(matmul(patches, w_mat).reshape(N, H, W, Co))
    ph = jnp.stack(phases, axis=0).reshape(2, 2, N, H, W, Co)
    # interleave: out[n, 2m+ry, 2w+rx, :] = ph[ry, rx, n, m, w, :]
    return jnp.transpose(ph, (2, 3, 0, 4, 1, 5)).reshape(N, 2 * H, 2 * W, Co)


# ------------------------------ Generator ------------------------------------

def init_params(key, z_dim, num_filters, num_layers, target):
    s = 2 ** num_layers
    h = target[1] // s
    w = target[2] // s
    c = num_filters * s
    keys = jax.random.split(key, 3 + num_layers)
    params = {}
    # nn.Linear(z_dim, c*w*h): weight (out, in), bias (out,)
    params["lin_w"] = 0.05 * jax.random.normal(keys[0], (c * w * h, z_dim), jnp.float32)
    params["lin_b"] = 0.05 * jax.random.normal(keys[1], (c * w * h,), jnp.float32)
    convs = []
    cc = c
    for i in range(num_layers):
        wk = 0.05 * jax.random.normal(keys[2 + i], (cc, cc // 2, 4, 4), jnp.float32)
        convs.append({
            "w": wk,
            "gamma": jnp.ones((cc // 2,), jnp.float32),   # BatchNorm affine init
            "beta": jnp.zeros((cc // 2,), jnp.float32),
        })
        cc //= 2
    params["convs"] = convs
    # nn.Conv2d(cc, target[0], 3, padding=1, bias=False)
    params["final_w"] = 0.05 * jax.random.normal(keys[2 + num_layers],
                                                 (target[0], cc, 3, 3), jnp.float32)
    return params


def generator_forward(params, x, z_dim, num_filters, num_layers, target):
    s = 2 ** num_layers
    h = target[1] // s
    w = target[2] // s
    c = num_filters * s

    x2 = x.reshape(-1, z_dim)                                    # x.view(-1, z_dim)
    B = x2.shape[0]
    y = matmul(x2, params["lin_w"].T, bias=params["lin_b"])      # initial Linear
    # PyTorch view(B, c, h, w) is NCHW; carry NHWC internally for the kernels.
    y = y.reshape(B, c, h, w).transpose(0, 2, 3, 1)

    for layer in params["convs"]:
        y = conv_transpose2d_s2_nhwc(y, layer["w"])
        N, H, W, C = y.shape
        y = batchnorm_lrelu(y.reshape(N * H * W, C),
                            layer["gamma"], layer["beta"]).reshape(N, H, W, C)

    # Final 3x3 conv with tanh fused into the matmul epilogue (valid because
    # tanh(0) = 0, so it commutes with the zero-pad / crop below).
    y = conv2d_3x3_nhwc(y, params["final_w"], act="tanh")

    # F.pad (right/bottom) then crop to target spatial size
    N, H, W, C = y.shape
    pad_h = max(0, target[1] - H)
    pad_w = max(0, target[2] - W)
    y = jnp.pad(y, ((0, 0), (0, pad_h), (0, pad_w), (0, 0)))
    y = y[:, :target[1], :target[2], :]
    return y.transpose(0, 3, 1, 2)                               # back to NCHW


if __name__ == "__main__":
    # Small config consistent with the module: 2**num_layers divides target H/W.
    Z_DIM = 32
    NUM_FILTERS = 8
    NUM_LAYERS = 2
    TARGET = (3, 16, 16)   # (C, H, W); initial spatial = 4x4, initial channels = 32
    B = 2

    key = jax.random.PRNGKey(0)
    kp, kx = jax.random.split(key)
    params = init_params(kp, Z_DIM, NUM_FILTERS, NUM_LAYERS, TARGET)
    x = jax.random.normal(kx, (B, Z_DIM), jnp.float32)

    fwd = jax.jit(functools.partial(generator_forward, z_dim=Z_DIM,
                                    num_filters=NUM_FILTERS,
                                    num_layers=NUM_LAYERS, target=TARGET))
    out = jax.block_until_ready(fwd(params, x))
    assert out.shape == (B, TARGET[0], TARGET[1], TARGET[2]), out.shape
    assert bool(jnp.all(jnp.isfinite(out)))
    print("KERNEL_OK")
</pallas_src>

<mosaic_0001>
module attributes {stable_mosaic.version = 11 : i64} {
  func.func @kernel(%arg0: i32, %arg1: i32, %arg2: i32, %arg3: memref<8x128xbf16, #tpu.memory_space<vmem>>, %arg4: memref<128x256xbf16, #tpu.memory_space<vmem>>, %arg5: memref<1x256xf32, #tpu.memory_space<vmem>>, %arg6: memref<8x256xf32, #tpu.memory_space<vmem>>, %arg7: memref<8x256xf32, #tpu.memory_space<vmem>>) attributes {dimension_semantics = [#tpu.dimension_semantics<parallel>, #tpu.dimension_semantics<parallel>, #tpu.dimension_semantics<arbitrary>], iteration_bounds = array<i64: 1, 2, 1>, scalar_prefetch = 0 : i64, scratch_operands = 1 : i64, tpu.core_type = #tpu.core_type<tc>, window_params = [{transform_indices = @transform_0, window_bounds = array<i64: 8, 128>}, {transform_indices = @transform_1, window_bounds = array<i64: 128, 256>}, {transform_indices = @transform_2, window_bounds = array<i64: 1, 256>}, {transform_indices = @transform_3, window_bounds = array<i64: 8, 256>}]} {
    %c0_i32 = arith.constant 0 : i32
    %0 = arith.cmpi eq, %arg2, %c0_i32 : i32
    %1 = arith.extui %0 : i1 to i32
    %c0_i32_0 = arith.constant 0 : i32
    %2 = arith.cmpi ne, %1, %c0_i32_0 : i32
    scf.if %2 {
      %cst_10 = arith.constant 0.000000e+00 : f32
      %12 = vector.broadcast %cst_10 : f32 to vector<8x256xf32>
      %c0_11 = arith.constant 0 : index
      %c0_12 = arith.constant 0 : index
      %13 = vector.load %arg7[%c0_11, %c0_12] : memref<8x256xf32, #tpu.memory_space<vmem>>, vector<8x256xf32>
      tpu.vector_store %arg7[%c0_11, %c0_12], %12 {strides = array<i32>} : memref<8x256xf32, #tpu.memory_space<vmem>>, vector<8x256xf32>,
    } else {
    }
    %c0 = arith.constant 0 : index
    %c0_1 = arith.constant 0 : index
    %3 = vector.load %arg7[%c0, %c0_1] : memref<8x256xf32, #tpu.memory_space<vmem>>, vector<8x256xf32>
    %c0_2 = arith.constant 0 : index
    %c0_3 = arith.constant 0 : index
    %4 = vector.load %arg3[%c0_2, %c0_3] : memref<8x128xbf16, #tpu.memory_space<vmem>>, vector<8x128xbf16>
    %c0_4 = arith.constant 0 : index
    %c0_5 = arith.constant 0 : index
    %5 = vector.load %arg4[%c0_4, %c0_5] : memref<128x256xbf16, #tpu.memory_space<vmem>>, vector<128x256xbf16>
    %cst = arith.constant dense<0.000000e+00> : vector<8x256xf32>
    %6 = tpu.matmul %4, %5, %cst {dimension_numbers = #tpu.dot_dimension_numbers<[1], [0], [0], [1], [0, 0, 1, 1], [], []>} : vector<8x128xbf16>, vector<128x256xbf16>, vector<8x256xf32> -> vector<8x256xf32>
    %7 = arith.addf %3, %6 : vector<8x256xf32>
    %c0_6 = arith.constant 0 : index
    %c0_7 = arith.constant 0 : index
    %8 = vector.load %arg7[%c0_6, %c0_7] : memref<8x256xf32, #tpu.memory_space<vmem>>, vector<8x256xf32>
    tpu.vector_store %arg7[%c0_6, %c0_7], %7 {strides = array<i32>} : memref<8x256xf32, #tpu.memory_space<vmem>>, vector<8x256xf32>,
    %c0_i32_8 = arith.constant 0 : i32
    %9 = arith.cmpi eq, %arg2, %c0_i32_8 : i32
    %10 = arith.extui %9 : i1 to i32
    %c0_i32_9 = arith.constant 0 : i32
    %11 = arith.cmpi ne, %10, %c0_i32_9 : i32
    scf.if %11 {
      %c0_10 = arith.constant 0 : index
      %c0_11 = arith.constant 0 : index
      %12 = vector.load %arg7[%c0_10, %c0_11] : memref<8x256xf32, #tpu.memory_space<vmem>>, vector<8x256xf32>
      %c0_12 = arith.constant 0 : index
      %c0_13 = arith.constant 0 : index
      %13 = vector.load %arg5[%c0_12, %c0_13] : memref<1x256xf32, #tpu.memory_space<vmem>>, vector<1x256xf32>
      %14 = vector.broadcast %13 : vector<1x256xf32> to vector<8x256xf32>
      %15 = arith.addf %12, %14 : vector<8x256xf32>
      %c0_14 = arith.constant 0 : index
      %c0_15 = arith.constant 0 : index
      %16 = vector.load %arg6[%c0_14, %c0_15] : memref<8x256xf32, #tpu.memory_space<vmem>>, vector<8x256xf32>
      tpu.vector_store %arg6[%c0_14, %c0_15], %15 {strides = array<i32>} : memref<8x256xf32, #tpu.memory_space<vmem>>, vector<8x256xf32>,
    } else {
    }
    return
  }
  func.func @transform_0(%arg0: i32, %arg1: i32, %arg2: i32) -> (i32, i32) {
    %c0_i32 = arith.constant 0 : i32
    return %arg0, %arg2 : i32, i32
  }
  func.func @transform_1(%arg0: i32, %arg1: i32, %arg2: i32) -> (i32, i32) {
    %c0_i32 = arith.constant 0 : i32
    return %arg2, %arg1 : i32, i32
  }
  func.func @transform_2(%arg0: i32, %arg1: i32, %arg2: i32) -> (i32, i32) {
    %c0_i32 = arith.constant 0 : i32
    %c0_i32_0 = arith.constant 0 : i32
    return %c0_i32, %arg1 : i32, i32
  }
  func.func @transform_3(%arg0: i32, %arg1: i32, %arg2: i32) -> (i32, i32) {
    %c0_i32 = arith.constant 0 : i32
    return %arg0, %arg1 : i32, i32
  }
}

module attributes {stable_mosaic.version = 11 : i64} {
  func.func @kernel(%arg0: i32, %arg1: i32, %arg2: i32, %arg3: memref<32x128xbf16, #tpu.memory_space<vmem>>, %arg4: memref<128x128xbf16, #tpu.memory_space<vmem>>, %arg5: memref<32x128xf32, #tpu.memory_space<vmem>>, %arg6: memref<32x128xf32, #tpu.memory_space<vmem>>) attributes {dimension_semantics = [#tpu.dimension_semantics<parallel>, #tpu.dimension_semantics<parallel>, #tpu.dimension_semantics<arbitrary>], iteration_bounds = array<i64: 1, 1, 1>, scalar_prefetch = 0 : i64, scratch_operands = 1 : i64, tpu.core_type = #tpu.core_type<tc>, window_params = [{transform_indices = @transform_0, window_bounds = array<i64: 32, 128>}, {transform_indices = @transform_1, window_bounds = array<i64: 128, 128>}, {transform_indices = @transform_2, window_bounds = array<i64: 32, 128>}]} {
    %c0_i32 = arith.constant 0 : i32
    %0 = arith.cmpi eq, %arg2, %c0_i32 : i32
    %1 = arith.extui %0 : i1 to i32
    %c0_i32_0 = arith.constant 0 : i32
    %2 = arith.cmpi ne, %1, %c0_i32_0 : i32
    scf.if %2 {
      %cst_10 = arith.constant 0.000000e+00 : f32
      %12 = vector.broadcast %cst_10 : f32 to vector<32x128xf32>
      %c0_11 = arith.constant 0 : index
      %c0_12 = arith.constant 0 : index
      %13 = vector.load %arg6[%c0_11, %c0_12] : memref<32x128xf32, #tpu.memory_space<vmem>>, vector<32x128xf32>
      tpu.vector_store %arg6[%c0_11, %c0_12], %12 {strides = array<i32>} : memref<32x128xf32, #tpu.memory_space<vmem>>, vector<32x128xf32>,
    } else {
    }
    %c0 = arith.constant 0 : index
    %c0_1 = arith.constant 0 : index
    %3 = vector.load %arg6[%c0, %c0_1] : memref<32x128xf32, #tpu.memory_space<vmem>>, vector<32x128xf32>
    %c0_2 = arith.constant 0 : index
    %c0_3 = arith.constant 0 : index
    %4 = vector.load %arg3[%c0_2, %c0_3] : memref<32x128xbf16, #tpu.memory_space<vmem>>, vector<32x128xbf16>
    %c0_4 = arith.constant 0 : index
    %c0_5 = arith.constant 0 : index
    %5 = vector.load %arg4[%c0_4, %c0_5] : memref<128x128xbf16, #tpu.memory_space<vmem>>, vector<128x128xbf16>
    %cst = arith.constant dense<0.000000e+00> : vector<32x128xf32>
    %6 = tpu.matmul %4, %5, %cst {dimension_numbers = #tpu.dot_dimension_numbers<[1], [0], [0], [1], [0, 0, 1, 1], [], []>} : vector<32x128xbf16>, vector<128x128xbf16>, vector<32x128xf32> -> vector<32x128xf32>
    %7 = arith.addf %3, %6 : vector<32x128xf32>
    %c0_6 = arith.constant 0 : index
    %c0_7 = arith.constant 0 : index
    %8 = vector.load %arg6[%c0_6, %c0_7] : memref<32x128xf32, #tpu.memory_space<vmem>>, vector<32x128xf32>
    tpu.vector_store %arg6[%c0_6, %c0_7], %7 {strides = array<i32>} : memref<32x128xf32, #tpu.memory_space<vmem>>, vector<32x128xf32>,
    %c0_i32_8 = arith.constant 0 : i32
    %9 = arith.cmpi eq, %arg2, %c0_i32_8 : i32
    %10 = arith.extui %9 : i1 to i32
    %c0_i32_9 = arith.constant 0 : i32
    %11 = arith.cmpi ne, %10, %c0_i32_9 : i32
    scf.if %11 {
      %c0_10 = arith.constant 0 : index
      %c0_11 = arith.constant 0 : index
      %12 = vector.load %arg6[%c0_10, %c0_11] : memref<32x128xf32, #tpu.memory_space<vmem>>, vector<32x128xf32>
      %c0_12 = arith.constant 0 : index
      %c0_13 = arith.constant 0 : index
      %13 = vector.load %arg5[%c0_12, %c0_13] : memref<32x128xf32, #tpu.memory_space<vmem>>, vector<32x128xf32>
      tpu.vector_store %arg5[%c0_12, %c0_13], %12 {strides = array<i32>} : memref<32x128xf32, #tpu.memory_space<vmem>>, vector<32x128xf32>,
    } else {
    }
    return
  }
  func.func @transform_0(%arg0: i32, %arg1: i32, %arg2: i32) -> (i32, i32) {
    %c0_i32 = arith.constant 0 : i32
    return %arg0, %arg2 : i32, i32
  }
  func.func @transform_1(%arg0: i32, %arg1: i32, %arg2: i32) -> (i32, i32) {
    %c0_i32 = arith.constant 0 : i32
    return %arg2, %arg1 : i32, i32
  }
  func.func @transform_2(%arg0: i32, %arg1: i32, %arg2: i32) -> (i32, i32) {
    %c0_i32 = arith.constant 0 : i32
    return %arg0, %arg1 : i32, i32
  }
}

module attributes {stable_mosaic.version = 11 : i64} {
  func.func @_bn_stats_kernel(%arg0: i32, %arg1: memref<128x16xf32, #tpu.memory_space<vmem>>, %arg2: memref<1x16xf32, #tpu.memory_space<vmem>>, %arg3: memref<1x16xf32, #tpu.memory_space<vmem>>, %arg4: memref<1x16xf32, #tpu.memory_space<vmem>>, %arg5: memref<1x16xf32, #tpu.memory_space<vmem>>) attributes {dimension_semantics = [#tpu.dimension_semantics<arbitrary>], iteration_bounds = array<i64: 1>, scalar_prefetch = 0 : i64, scratch_operands = 2 : i64, tpu.core_type = #tpu.core_type<tc>, window_params = [{transform_indices = @transform_0, window_bounds = array<i64: 128, 16>}, {pipeline_mode = #tpu.pipeline_mode<synchronous>, transform_indices = @transform_1, window_bounds = array<i64: 1, 16>}, {pipeline_mode = #tpu.pipeline_mode<synchronous>, transform_indices = @transform_2, window_bounds = array<i64: 1, 16>}]} {
    %c0_i32 = arith.constant 0 : i32
    %0 = arith.cmpi eq, %arg0, %c0_i32 : i32
    %1 = arith.extui %0 : i1 to i32
    %c0_i32_0 = arith.constant 0 : i32
    %2 = arith.cmpi ne, %1, %c0_i32_0 : i32
    scf.if %2 {
      %cst_13 = arith.constant 0.000000e+00 : f32
      %18 = vector.broadcast %cst_13 : f32 to vector<1x16xf32>
      %c0_14 = arith.constant 0 : index
      %c0_15 = arith.constant 0 : index
      %19 = vector.load %arg4[%c0_14, %c0_15] : memref<1x16xf32, #tpu.memory_space<vmem>>, vector<1x16xf32>
      tpu.vector_store %arg4[%c0_14, %c0_15], %18 {strides = array<i32>} : memref<1x16xf32, #tpu.memory_space<vmem>>, vector<1x16xf32>,
      %cst_16 = arith.constant 0.000000e+00 : f32
      %20 = vector.broadcast %cst_16 : f32 to vector<1x16xf32>
      %c0_17 = arith.constant 0 : index
      %c0_18 = arith.constant 0 : index
      %21 = vector.load %arg5[%c0_17, %c0_18] : memref<1x16xf32, #tpu.memory_space<vmem>>, vector<1x16xf32>
      tpu.vector_store %arg5[%c0_17, %c0_18], %20 {strides = array<i32>} : memref<1x16xf32, #tpu.memory_space<vmem>>, vector<1x16xf32>,
    } else {
    }
    %c0 = arith.constant 0 : index
    %c0_1 = arith.constant 0 : index
    %3 = vector.load %arg1[%c0, %c0_1] : memref<128x16xf32, #tpu.memory_space<vmem>>, vector<128x16xf32>
    %c0_2 = arith.constant 0 : index
    %c0_3 = arith.constant 0 : index
    %4 = vector.load %arg4[%c0_2, %c0_3] : memref<1x16xf32, #tpu.memory_space<vmem>>, vector<1x16xf32>
    %cst = arith.constant dense<0.000000e+00> : vector<16xf32>
    %5 = vector.multi_reduction <add>, %3, %cst [0] : vector<128x16xf32> to vector<16xf32>
    %6 = vector.shape_cast %5 : vector<16xf32> to vector<1x16xf32>
    %7 = arith.addf %4, %6 : vector<1x16xf32>
    %c0_4 = arith.constant 0 : index
    %c0_5 = arith.constant 0 : index
    %8 = vector.load %arg4[%c0_4, %c0_5] : memref<1x16xf32, #tpu.memory_space<vmem>>, vector<1x16xf32>
    tpu.vector_store %arg4[%c0_4, %c0_5], %7 {strides = array<i32>} : memref<1x16xf32, #tpu.memory_space<vmem>>, vector<1x16xf32>,
    %c0_6 = arith.constant 0 : index
    %c0_7 = arith.constant 0 : index
    %9 = vector.load %arg5[%c0_6, %c0_7] : memref<1x16xf32, #tpu.memory_space<vmem>>, vector<1x16xf32>
    %10 = arith.mulf %3, %3 : vector<128x16xf32>
    %cst_8 = arith.constant dense<0.000000e+00> : vector<16xf32>
    %11 = vector.multi_reduction <add>, %10, %cst_8 [0] : vector<128x16xf32> to vector<16xf32>
    %12 = vector.shape_cast %11 : vector<16xf32> to vector<1x16xf32>
    %13 = arith.addf %9, %12 : vector<1x16xf32>
    %c0_9 = arith.constant 0 : index
    %c0_10 = arith.constant 0 : index
    %14 = vector.load %arg5[%c0_9, %c0_10] : memref<1x16xf32, #tpu.memory_space<vmem>>, vector<1x16xf32>
    tpu.vector_store %arg5[%c0_9, %c0_10], %13 {strides = array<i32>} : memref<1x16xf32, #tpu.memory_space<vmem>>, vector<1x16xf32>,
    %c0_i32_11 = arith.constant 0 : i32
    %15 = arith.cmpi eq, %arg0, %c0_i32_11 : i32
    %16 = arith.extui %15 : i1 to i32
    %c0_i32_12 = arith.constant 0 : i32
    %17 = arith.cmpi ne, %16, %c0_i32_12 : i32
    scf.if %17 {
      %c0_13 = arith.constant 0 : index
      %c0_14 = arith.constant 0 : index
      %18 = vector.load %arg4[%c0_13, %c0_14] : memref<1x16xf32, #tpu.memory_space<vmem>>, vector<1x16xf32>
      %c0_15 = arith.constant 0 : index
      %c0_16 = arith.constant 0 : index
      %19 = vector.load %arg2[%c0_15, %c0_16] : memref<1x16xf32, #tpu.memory_space<vmem>>, vector<1x16xf32>
      tpu.vector_store %arg2[%c0_15, %c0_16], %18 {strides = array<i32>} : memref<1x16xf32, #tpu.memory_space<vmem>>, vector<1x16xf32>,
      %c0_17 = arith.constant 0 : index
      %c0_18 = arith.constant 0 : index
      %20 = vector.load %arg5[%c0_17, %c0_18] : memref<1x16xf32, #tpu.memory_space<vmem>>, vector<1x16xf32>
      %c0_19 = arith.constant 0 : index
      %c0_20 = arith.constant 0 : index
      %21 = vector.load %arg3[%c0_19, %c0_20] : memref<1x16xf32, #tpu.memory_space<vmem>>, vector<1x16xf32>
      tpu.vector_store %arg3[%c0_19, %c0_20], %20 {strides = array<i32>} : memref<1x16xf32, #tpu.memory_space<vmem>>, vector<1x16xf32>,
    } else {
    }
    return
  }
  func.func @transform_0(%arg0: i32) -> (i32, i32) {
    %c0_i32 = arith.constant 0 : i32
    %c0_i32_0 = arith.constant 0 : i32
    return %arg0, %c0_i32 : i32, i32
  }
  func.func @transform_1(%arg0: i32) -> (i32, i32) {
    %c0_i32 = arith.constant 0 : i32
    %c0_i32_0 = arith.constant 0 : i32
    %c0_i32_1 = arith.constant 0 : i32
    return %c0_i32, %c0_i32_0 : i32, i32
  }
  func.func @transform_2(%arg0: i32) -> (i32, i32) {
    %c0_i32 = arith.constant 0 : i32
    %c0_i32_0 = arith.constant 0 : i32
    %c0_i32_1 = arith.constant 0 : i32
    return %c0_i32, %c0_i32_0 : i32, i32
  }
}

module attributes {stable_mosaic.version = 11 : i64} {
  func.func @_bn_apply_kernel(%arg0: i32, %arg1: memref<128x16xf32, #tpu.memory_space<vmem>>, %arg2: memref<1x16xf32, #tpu.memory_space<vmem>>, %arg3: memref<1x16xf32, #tpu.memory_space<vmem>>, %arg4: memref<128x16xf32, #tpu.memory_space<vmem>>) attributes {dimension_semantics = [#tpu.dimension_semantics<parallel>], iteration_bounds = array<i64: 1>, scalar_prefetch = 0 : i64, scratch_operands = 0 : i64, tpu.core_type = #tpu.core_type<tc>, window_params = [{transform_indices = @transform_0, window_bounds = array<i64: 128, 16>}, {pipeline_mode = #tpu.pipeline_mode<synchronous>, transform_indices = @transform_1, window_bounds = array<i64: 1, 16>}, {pipeline_mode = #tpu.pipeline_mode<synchronous>, transform_indices = @transform_2, window_bounds = array<i64: 1, 16>}, {transform_indices = @transform_3, window_bounds = array<i64: 128, 16>}]} {
    %c0 = arith.constant 0 : index
    %c0_0 = arith.constant 0 : index
    %0 = vector.load %arg1[%c0, %c0_0] : memref<128x16xf32, #tpu.memory_space<vmem>>, vector<128x16xf32>
    %c0_1 = arith.constant 0 : index
    %c0_2 = arith.constant 0 : index
    %1 = vector.load %arg2[%c0_1, %c0_2] : memref<1x16xf32, #tpu.memory_space<vmem>>, vector<1x16xf32>
    %2 = vector.broadcast %1 : vector<1x16xf32> to vector<128x16xf32>
    %3 = arith.mulf %0, %2 : vector<128x16xf32>
    %c0_3 = arith.constant 0 : index
    %c0_4 = arith.constant 0 : index
    %4 = vector.load %arg3[%c0_3, %c0_4] : memref<1x16xf32, #tpu.memory_space<vmem>>, vector<1x16xf32>
    %5 = vector.broadcast %4 : vector<1x16xf32> to vector<128x16xf32>
    %6 = arith.addf %3, %5 : vector<128x16xf32>
    %cst = arith.constant 0.000000e+00 : f32
    %7 = vector.broadcast %cst : f32 to vector<128x16xf32>
    %8 = arith.cmpf oge, %6, %7 : vector<128x16xf32>
    %cst_5 = arith.constant 2.000000e-01 : f32
    %9 = vector.broadcast %cst_5 : f32 to vector<128x16xf32>
    %10 = arith.mulf %9, %6 : vector<128x16xf32>
    %11 = arith.select %8, %6, %10 : vector<128x16xi1>, vector<128x16xf32>
    %c0_6 = arith.constant 0 : index
    %c0_7 = arith.constant 0 : index
    %12 = vector.load %arg4[%c0_6, %c0_7] : memref<128x16xf32, #tpu.memory_space<vmem>>, vector<128x16xf32>
    tpu.vector_store %arg4[%c0_6, %c0_7], %11 {strides = array<i32>} : memref<128x16xf32, #tpu.memory_space<vmem>>, vector<128x16xf32>,
    return
  }
  func.func @transform_0(%arg0: i32) -> (i32, i32) {
    %c0_i32 = arith.constant 0 : i32
    %c0_i32_0 = arith.constant 0 : i32
    return %arg0, %c0_i32 : i32, i32
  }
  func.func @transform_1(%arg0: i32) -> (i32, i32) {
    %c0_i32 = arith.constant 0 : i32
    %c0_i32_0 = arith.constant 0 : i32
    %c0_i32_1 = arith.constant 0 : i32
    return %c0_i32, %c0_i32_0 : i32, i32
  }
  func.func @transform_2(%arg0: i32) -> (i32, i32) {
    %c0_i32 = arith.constant 0 : i32
    %c0_i32_0 = arith.constant 0 : i32
    %c0_i32_1 = arith.constant 0 : i32
    return %c0_i32, %c0_i32_0 : i32, i32
  }
  func.func @transform_3(%arg0: i32) -> (i32, i32) {
    %c0_i32 = arith.constant 0 : i32
    %c0_i32_0 = arith.constant 0 : i32
    return %arg0, %c0_i32 : i32, i32
  }
}

module attributes {stable_mosaic.version = 11 : i64} {
  func.func @kernel(%arg0: i32, %arg1: i32, %arg2: i32, %arg3: memref<128x128xbf16, #tpu.memory_space<vmem>>, %arg4: memref<128x128xbf16, #tpu.memory_space<vmem>>, %arg5: memref<128x128xf32, #tpu.memory_space<vmem>>, %arg6: memref<128x128xf32, #tpu.memory_space<vmem>>) attributes {dimension_semantics = [#tpu.dimension_semantics<parallel>, #tpu.dimension_semantics<parallel>, #tpu.dimension_semantics<arbitrary>], iteration_bounds = array<i64: 1, 1, 1>, scalar_prefetch = 0 : i64, scratch_operands = 1 : i64, tpu.core_type = #tpu.core_type<tc>, window_params = [{transform_indices = @transform_0, window_bounds = array<i64: 128, 128>}, {transform_indices = @transform_1, window_bounds = array<i64: 128, 128>}, {transform_indices = @transform_2, window_bounds = array<i64: 128, 128>}]} {
    %c0_i32 = arith.constant 0 : i32
    %0 = arith.cmpi eq, %arg2, %c0_i32 : i32
    %1 = arith.extui %0 : i1 to i32
    %c0_i32_0 = arith.constant 0 : i32
    %2 = arith.cmpi ne, %1, %c0_i32_0 : i32
    scf.if %2 {
      %cst_10 = arith.constant 0.000000e+00 : f32
      %12 = vector.broadcast %cst_10 : f32 to vector<128x128xf32>
      %c0_11 = arith.constant 0 : index
      %c0_12 = arith.constant 0 : index
      %13 = vector.load %arg6[%c0_11, %c0_12] : memref<128x128xf32, #tpu.memory_space<vmem>>, vector<128x128xf32>
      tpu.vector_store %arg6[%c0_11, %c0_12], %12 {strides = array<i32>} : memref<128x128xf32, #tpu.memory_space<vmem>>, vector<128x128xf32>,
    } else {
    }
    %c0 = arith.constant 0 : index
    %c0_1 = arith.constant 0 : index
    %3 = vector.load %arg6[%c0, %c0_1] : memref<128x128xf32, #tpu.memory_space<vmem>>, vector<128x128xf32>
    %c0_2 = arith.constant 0 : index
    %c0_3 = arith.constant 0 : index
    %4 = vector.load %arg3[%c0_2, %c0_3] : memref<128x128xbf16, #tpu.memory_space<vmem>>, vector<128x128xbf16>
    %c0_4 = arith.constant 0 : index
    %c0_5 = arith.constant 0 : index
    %5 = vector.load %arg4[%c0_4, %c0_5] : memref<128x128xbf16, #tpu.memory_space<vmem>>, vector<128x128xbf16>
    %cst = arith.constant dense<0.000000e+00> : vector<128x128xf32>
    %6 = tpu.matmul %4, %5, %cst {dimension_numbers = #tpu.dot_dimension_numbers<[1], [0], [0], [1], [0, 0, 1, 1], [], []>} : vector<128x128xbf16>, vector<128x128xbf16>, vector<128x128xf32> -> vector<128x128xf32>
    %7 = arith.addf %3, %6 : vector<128x128xf32>
    %c0_6 = arith.constant 0 : index
    %c0_7 = arith.constant 0 : index
    %8 = vector.load %arg6[%c0_6, %c0_7] : memref<128x128xf32, #tpu.memory_space<vmem>>, vector<128x128xf32>
    tpu.vector_store %arg6[%c0_6, %c0_7], %7 {strides = array<i32>} : memref<128x128xf32, #tpu.memory_space<vmem>>, vector<128x128xf32>,
    %c0_i32_8 = arith.constant 0 : i32
    %9 = arith.cmpi eq, %arg2, %c0_i32_8 : i32
    %10 = arith.extui %9 : i1 to i32
    %c0_i32_9 = arith.constant 0 : i32
    %11 = arith.cmpi ne, %10, %c0_i32_9 : i32
    scf.if %11 {
      %c0_10 = arith.constant 0 : index
      %c0_11 = arith.constant 0 : index
      %12 = vector.load %arg6[%c0_10, %c0_11] : memref<128x128xf32, #tpu.memory_space<vmem>>, vector<128x128xf32>
      %c0_12 = arith.constant 0 : index
      %c0_13 = arith.constant 0 : index
      %13 = vector.load %arg5[%c0_12, %c0_13] : memref<128x128xf32, #tpu.memory_space<vmem>>, vector<128x128xf32>
      tpu.vector_store %arg5[%c0_12, %c0_13], %12 {strides = array<i32>} : memref<128x128xf32, #tpu.memory_space<vmem>>, vector<128x128xf32>,
    } else {
    }
    return
  }
  func.func @transform_0(%arg0: i32, %arg1: i32, %arg2: i32) -> (i32, i32) {
    %c0_i32 = arith.constant 0 : i32
    return %arg0, %arg2 : i32, i32
  }
  func.func @transform_1(%arg0: i32, %arg1: i32, %arg2: i32) -> (i32, i32) {
    %c0_i32 = arith.constant 0 : i32
    return %arg2, %arg1 : i32, i32
  }
  func.func @transform_2(%arg0: i32, %arg1: i32, %arg2: i32) -> (i32, i32) {
    %c0_i32 = arith.constant 0 : i32
    return %arg0, %arg1 : i32, i32
  }
}

module attributes {stable_mosaic.version = 11 : i64} {
  func.func @_bn_stats_kernel(%arg0: i32, %arg1: memref<512x8xf32, #tpu.memory_space<vmem>>, %arg2: memref<1x8xf32, #tpu.memory_space<vmem>>, %arg3: memref<1x8xf32, #tpu.memory_space<vmem>>, %arg4: memref<1x8xf32, #tpu.memory_space<vmem>>, %arg5: memref<1x8xf32, #tpu.memory_space<vmem>>) attributes {dimension_semantics = [#tpu.dimension_semantics<arbitrary>], iteration_bounds = array<i64: 1>, scalar_prefetch = 0 : i64, scratch_operands = 2 : i64, tpu.core_type = #tpu.core_type<tc>, window_params = [{transform_indices = @transform_0, window_bounds = array<i64: 512, 8>}, {pipeline_mode = #tpu.pipeline_mode<synchronous>, transform_indices = @transform_1, window_bounds = array<i64: 1, 8>}, {pipeline_mode = #tpu.pipeline_mode<synchronous>, transform_indices = @transform_2, window_bounds = array<i64: 1, 8>}]} {
    %c0_i32 = arith.constant 0 : i32
    %0 = arith.cmpi eq, %arg0, %c0_i32 : i32
    %1 = arith.extui %0 : i1 to i32
    %c0_i32_0 = arith.constant 0 : i32
    %2 = arith.cmpi ne, %1, %c0_i32_0 : i32
    scf.if %2 {
      %cst_13 = arith.constant 0.000000e+00 : f32
      %18 = vector.broadcast %cst_13 : f32 to vector<1x8xf32>
      %c0_14 = arith.constant 0 : index
      %c0_15 = arith.constant 0 : index
      %19 = vector.load %arg4[%c0_14, %c0_15] : memref<1x8xf32, #tpu.memory_space<vmem>>, vector<1x8xf32>
      tpu.vector_store %arg4[%c0_14, %c0_15], %18 {strides = array<i32>} : memref<1x8xf32, #tpu.memory_space<vmem>>, vector<1x8xf32>,
      %cst_16 = arith.constant 0.000000e+00 : f32
      %20 = vector.broadcast %cst_16 : f32 to vector<1x8xf32>
      %c0_17 = arith.constant 0 : index
      %c0_18 = arith.constant 0 : index
      %21 = vector.load %arg5[%c0_17, %c0_18] : memref<1x8xf32, #tpu.memory_space<vmem>>, vector<1x8xf32>
      tpu.vector_store %arg5[%c0_17, %c0_18], %20 {strides = array<i32>} : memref<1x8xf32, #tpu.memory_space<vmem>>, vector<1x8xf32>,
    } else {
    }
    %c0 = arith.constant 0 : index
    %c0_1 = arith.constant 0 : index
    %3 = vector.load %arg1[%c0, %c0_1] : memref<512x8xf32, #tpu.memory_space<vmem>>, vector<512x8xf32>
    %c0_2 = arith.constant 0 : index
    %c0_3 = arith.constant 0 : index
    %4 = vector.load %arg4[%c0_2, %c0_3] : memref<1x8xf32, #tpu.memory_space<vmem>>, vector<1x8xf32>
    %cst = arith.constant dense<0.000000e+00> : vector<8xf32>
    %5 = vector.multi_reduction <add>, %3, %cst [0] : vector<512x8xf32> to vector<8xf32>
    %6 = vector.shape_cast %5 : vector<8xf32> to vector<1x8xf32>
    %7 = arith.addf %4, %6 : vector<1x8xf32>
    %c0_4 = arith.constant 0 : index
    %c0_5 = arith.constant 0 : index
    %8 = vector.load %arg4[%c0_4, %c0_5] : memref<1x8xf32, #tpu.memory_space<vmem>>, vector<1x8xf32>
    tpu.vector_store %arg4[%c0_4, %c0_5], %7 {strides = array<i32>} : memref<1x8xf32, #tpu.memory_space<vmem>>, vector<1x8xf32>,
    %c0_6 = arith.constant 0 : index
    %c0_7 = arith.constant 0 : index
    %9 = vector.load %arg5[%c0_6, %c0_7] : memref<1x8xf32, #tpu.memory_space<vmem>>, vector<1x8xf32>
    %10 = arith.mulf %3, %3 : vector<512x8xf32>
    %cst_8 = arith.constant dense<0.000000e+00> : vector<8xf32>
    %11 = vector.multi_reduction <add>, %10, %cst_8 [0] : vector<512x8xf32> to vector<8xf32>
    %12 = vector.shape_cast %11 : vector<8xf32> to vector<1x8xf32>
    %13 = arith.addf %9, %12 : vector<1x8xf32>
    %c0_9 = arith.constant 0 : index
    %c0_10 = arith.constant 0 : index
    %14 = vector.load %arg5[%c0_9, %c0_10] : memref<1x8xf32, #tpu.memory_space<vmem>>, vector<1x8xf32>
    tpu.vector_store %arg5[%c0_9, %c0_10], %13 {strides = array<i32>} : memref<1x8xf32, #tpu.memory_space<vmem>>, vector<1x8xf32>,
    %c0_i32_11 = arith.constant 0 : i32
    %15 = arith.cmpi eq, %arg0, %c0_i32_11 : i32
    %16 = arith.extui %15 : i1 to i32
    %c0_i32_12 = arith.constant 0 : i32
    %17 = arith.cmpi ne, %16, %c0_i32_12 : i32
    scf.if %17 {
      %c0_13 = arith.constant 0 : index
      %c0_14 = arith.constant 0 : index
      %18 = vector.load %arg4[%c0_13, %c0_14] : memref<1x8xf32, #tpu.memory_space<vmem>>, vector<1x8xf32>
      %c0_15 = arith.constant 0 : index
      %c0_16 = arith.constant 0 : index
      %19 = vector.load %arg2[%c0_15, %c0_16] : memref<1x8xf32, #tpu.memory_space<vmem>>, vector<1x8xf32>
      tpu.vector_store %arg2[%c0_15, %c0_16], %18 {strides = array<i32>} : memref<1x8xf32, #tpu.memory_space<vmem>>, vector<1x8xf32>,
      %c0_17 = arith.constant 0 : index
      %c0_18 = arith.constant 0 : index
      %20 = vector.load %arg5[%c0_17, %c0_18] : memref<1x8xf32, #tpu.memory_space<vmem>>, vector<1x8xf32>
      %c0_19 = arith.constant 0 : index
      %c0_20 = arith.constant 0 : index
      %21 = vector.load %arg3[%c0_19, %c0_20] : memref<1x8xf32, #tpu.memory_space<vmem>>, vector<1x8xf32>
      tpu.vector_store %arg3[%c0_19, %c0_20], %20 {strides = array<i32>} : memref<1x8xf32, #tpu.memory_space<vmem>>, vector<1x8xf32>,
    } else {
    }
    return
  }
  func.func @transform_0(%arg0: i32) -> (i32, i32) {
    %c0_i32 = arith.constant 0 : i32
    %c0_i32_0 = arith.constant 0 : i32
    return %arg0, %c0_i32 : i32, i32
  }
  func.func @transform_1(%arg0: i32) -> (i32, i32) {
    %c0_i32 = arith.constant 0 : i32
    %c0_i32_0 = arith.constant 0 : i32
    %c0_i32_1 = arith.constant 0 : i32
    return %c0_i32, %c0_i32_0 : i32, i32
  }
  func.func @transform_2(%arg0: i32) -> (i32, i32) {
    %c0_i32 = arith.constant 0 : i32
    %c0_i32_0 = arith.constant 0 : i32
    %c0_i32_1 = arith.constant 0 : i32
    return %c0_i32, %c0_i32_0 : i32, i32
  }
}

module attributes {stable_mosaic.version = 11 : i64} {
  func.func @_bn_apply_kernel(%arg0: i32, %arg1: memref<512x8xf32, #tpu.memory_space<vmem>>, %arg2: memref<1x8xf32, #tpu.memory_space<vmem>>, %arg3: memref<1x8xf32, #tpu.memory_space<vmem>>, %arg4: memref<512x8xf32, #tpu.memory_space<vmem>>) attributes {dimension_semantics = [#tpu.dimension_semantics<parallel>], iteration_bounds = array<i64: 1>, scalar_prefetch = 0 : i64, scratch_operands = 0 : i64, tpu.core_type = #tpu.core_type<tc>, window_params = [{transform_indices = @transform_0, window_bounds = array<i64: 512, 8>}, {pipeline_mode = #tpu.pipeline_mode<synchronous>, transform_indices = @transform_1, window_bounds = array<i64: 1, 8>}, {pipeline_mode = #tpu.pipeline_mode<synchronous>, transform_indices = @transform_2, window_bounds = array<i64: 1, 8>}, {transform_indices = @transform_3, window_bounds = array<i64: 512, 8>}]} {
    %c0 = arith.constant 0 : index
    %c0_0 = arith.constant 0 : index
    %0 = vector.load %arg1[%c0, %c0_0] : memref<512x8xf32, #tpu.memory_space<vmem>>, vector<512x8xf32>
    %c0_1 = arith.constant 0 : index
    %c0_2 = arith.constant 0 : index
    %1 = vector.load %arg2[%c0_1, %c0_2] : memref<1x8xf32, #tpu.memory_space<vmem>>, vector<1x8xf32>
    %2 = vector.broadcast %1 : vector<1x8xf32> to vector<512x8xf32>
    %3 = arith.mulf %0, %2 : vector<512x8xf32>
    %c0_3 = arith.constant 0 : index
    %c0_4 = arith.constant 0 : index
    %4 = vector.load %arg3[%c0_3, %c0_4] : memref<1x8xf32, #tpu.memory_space<vmem>>, vector<1x8xf32>
    %5 = vector.broadcast %4 : vector<1x8xf32> to vector<512x8xf32>
    %6 = arith.addf %3, %5 : vector<512x8xf32>
    %cst = arith.constant 0.000000e+00 : f32
    %7 = vector.broadcast %cst : f32 to vector<512x8xf32>
    %8 = arith.cmpf oge, %6, %7 : vector<512x8xf32>
    %cst_5 = arith.constant 2.000000e-01 : f32
    %9 = vector.broadcast %cst_5 : f32 to vector<512x8xf32>
    %10 = arith.mulf %9, %6 : vector<512x8xf32>
    %11 = arith.select %8, %6, %10 : vector<512x8xi1>, vector<512x8xf32>
    %c0_6 = arith.constant 0 : index
    %c0_7 = arith.constant 0 : index
    %12 = vector.load %arg4[%c0_6, %c0_7] : memref<512x8xf32, #tpu.memory_space<vmem>>, vector<512x8xf32>
    tpu.vector_store %arg4[%c0_6, %c0_7], %11 {strides = array<i32>} : memref<512x8xf32, #tpu.memory_space<vmem>>, vector<512x8xf32>,
    return
  }
  func.func @transform_0(%arg0: i32) -> (i32, i32) {
    %c0_i32 = arith.constant 0 : i32
    %c0_i32_0 = arith.constant 0 : i32
    return %arg0, %c0_i32 : i32, i32
  }
  func.func @transform_1(%arg0: i32) -> (i32, i32) {
    %c0_i32 = arith.constant 0 : i32
    %c0_i32_0 = arith.constant 0 : i32
    %c0_i32_1 = arith.constant 0 : i32
    return %c0_i32, %c0_i32_0 : i32, i32
  }
  func.func @transform_2(%arg0: i32) -> (i32, i32) {
    %c0_i32 = arith.constant 0 : i32
    %c0_i32_0 = arith.constant 0 : i32
    %c0_i32_1 = arith.constant 0 : i32
    return %c0_i32, %c0_i32_0 : i32, i32
  }
  func.func @transform_3(%arg0: i32) -> (i32, i32) {
    %c0_i32 = arith.constant 0 : i32
    %c0_i32_0 = arith.constant 0 : i32
    return %arg0, %c0_i32 : i32, i32
  }
}

module attributes {stable_mosaic.version = 11 : i64} {
  func.func @kernel(%arg0: i32, %arg1: i32, %arg2: i32, %arg3: memref<512x128xbf16, #tpu.memory_space<vmem>>, %arg4: memref<128x128xbf16, #tpu.memory_space<vmem>>, %arg5: memref<512x128xf32, #tpu.memory_space<vmem>>, %arg6: memref<512x128xf32, #tpu.memory_space<vmem>>) attributes {dimension_semantics = [#tpu.dimension_semantics<parallel>, #tpu.dimension_semantics<parallel>, #tpu.dimension_semantics<arbitrary>], iteration_bounds = array<i64: 1, 1, 1>, scalar_prefetch = 0 : i64, scratch_operands = 1 : i64, tpu.core_type = #tpu.core_type<tc>, window_params = [{transform_indices = @transform_0, window_bounds = array<i64: 512, 128>}, {transform_indices = @transform_1, window_bounds = array<i64: 128, 128>}, {transform_indices = @transform_2, window_bounds = array<i64: 512, 128>}]} {
    %c0_i32 = arith.constant 0 : i32
    %0 = arith.cmpi eq, %arg2, %c0_i32 : i32
    %1 = arith.extui %0 : i1 to i32
    %c0_i32_0 = arith.constant 0 : i32
    %2 = arith.cmpi ne, %1, %c0_i32_0 : i32
    scf.if %2 {
      %cst_10 = arith.constant 0.000000e+00 : f32
      %12 = vector.broadcast %cst_10 : f32 to vector<512x128xf32>
      %c0_11 = arith.constant 0 : index
      %c0_12 = arith.constant 0 : index
      %13 = vector.load %arg6[%c0_11, %c0_12] : memref<512x128xf32, #tpu.memory_space<vmem>>, vector<512x128xf32>
      tpu.vector_store %arg6[%c0_11, %c0_12], %12 {strides = array<i32>} : memref<512x128xf32, #tpu.memory_space<vmem>>, vector<512x128xf32>,
    } else {
    }
    %c0 = arith.constant 0 : index
    %c0_1 = arith.constant 0 : index
    %3 = vector.load %arg6[%c0, %c0_1] : memref<512x128xf32, #tpu.memory_space<vmem>>, vector<512x128xf32>
    %c0_2 = arith.constant 0 : index
    %c0_3 = arith.constant 0 : index
    %4 = vector.load %arg3[%c0_2, %c0_3] : memref<512x128xbf16, #tpu.memory_space<vmem>>, vector<512x128xbf16>
    %c0_4 = arith.constant 0 : index
    %c0_5 = arith.constant 0 : index
    %5 = vector.load %arg4[%c0_4, %c0_5] : memref<128x128xbf16, #tpu.memory_space<vmem>>, vector<128x128xbf16>
    %cst = arith.constant dense<0.000000e+00> : vector<512x128xf32>
    %6 = tpu.matmul %4, %5, %cst {dimension_numbers = #tpu.dot_dimension_numbers<[1], [0], [0], [1], [0, 0, 1, 1], [], []>} : vector<512x128xbf16>, vector<128x128xbf16>, vector<512x128xf32> -> vector<512x128xf32>
    %7 = arith.addf %3, %6 : vector<512x128xf32>
    %c0_6 = arith.constant 0 : index
    %c0_7 = arith.constant 0 : index
    %8 = vector.load %arg6[%c0_6, %c0_7] : memref<512x128xf32, #tpu.memory_space<vmem>>, vector<512x128xf32>
    tpu.vector_store %arg6[%c0_6, %c0_7], %7 {strides = array<i32>} : memref<512x128xf32, #tpu.memory_space<vmem>>, vector<512x128xf32>,
    %c0_i32_8 = arith.constant 0 : i32
    %9 = arith.cmpi eq, %arg2, %c0_i32_8 : i32
    %10 = arith.extui %9 : i1 to i32
    %c0_i32_9 = arith.constant 0 : i32
    %11 = arith.cmpi ne, %10, %c0_i32_9 : i32
    scf.if %11 {
      %c0_10 = arith.constant 0 : index
      %c0_11 = arith.constant 0 : index
      %12 = vector.load %arg6[%c0_10, %c0_11] : memref<512x128xf32, #tpu.memory_space<vmem>>, vector<512x128xf32>
      %13 = math.tanh %12 : vector<512x128xf32>
      %c0_12 = arith.constant 0 : index
      %c0_13 = arith.constant 0 : index
      %14 = vector.load %arg5[%c0_12, %c0_13] : memref<512x128xf32, #tpu.memory_space<vmem>>, vector<512x128xf32>
      tpu.vector_store %arg5[%c0_12, %c0_13], %13 {strides = array<i32>} : memref<512x128xf32, #tpu.memory_space<vmem>>, vector<512x128xf32>,
    } else {
    }
    return
  }
  func.func @transform_0(%arg0: i32, %arg1: i32, %arg2: i32) -> (i32, i32) {
    %c0_i32 = arith.constant 0 : i32
    return %arg0, %arg2 : i32, i32
  }
  func.func @transform_1(%arg0: i32, %arg1: i32, %arg2: i32) -> (i32, i32) {
    %c0_i32 = arith.constant 0 : i32
    return %arg2, %arg1 : i32, i32
  }
  func.func @transform_2(%arg0: i32, %arg1: i32, %arg2: i32) -> (i32, i32) {
    %c0_i32 = arith.constant 0 : i32
    return %arg0, %arg1 : i32, i32
  }
}

</mosaic_0001>

<llo_original>
// kernel: generator_forward.16
$region0: #{generator_forward.16}
  #allocation0 [shape = 'u32[]', space=smem, size = 0x4, offset = 0x4, fixed_abs, tag = 'smem constant byte address 0x4 - core index']
  #allocation1 [shape = 'u32[144,128]{1,0:T(1,128)}', space=vmem, size = 0x12000, scoped, tag = 'internal scratch']
  #allocation2 [shape = 'f32[32,128]{1,0:T(8,128)}', space=vmem, size = 0x4000, scoped, tag = 'scratch operand']
  %s0 = inlined_call_operand.vmem [shape: bf16[32,128], index: 0, kind: input, shape index: {}]
  %s1 = inlined_call_operand.vmem [shape: bf16[128,128], index: 1, kind: input, shape index: {}]
  %s2 = inlined_call_operand.vmem [shape: f32[32,128], index: 2, kind: output, shape index: {}]
  %s3 = sld [smem:[#allocation0]]
  $region26: #{generator_forward.16} parent=0
    _
  %s5 = ssub.s32 1, %s3
  %s6 = scalar_select 0, %s5, %s3
  // Predicated region
  $region2: #{generator_forward.16} parent=0 // pred_check
    _
  $region3: #{generator_forward.16} parent=0 // pred_check_branch
    %8 = sbr.rel (0) target = $region5
  $region4: #{generator_forward.16} parent=0 // pred_region
    _
  $region5: #{generator_forward.16} parent=0 // pred_fallthru
    _
  // Predicated region
  $region6: #{generator_forward.16} parent=0 // pred_check
    _
  $region7: #{generator_forward.16} parent=0 // pred_check_branch
    %10 = sbr.rel (0) target = $region9
  $region8: #{generator_forward.16} parent=0 // pred_region
    _
  $region9: #{generator_forward.16} parent=0 // pred_fallthru
    _
  %p12 = scmp.eq.s32.totalorder 0, 0
  // Predicated region
  $region10: #{generator_forward.16} parent=0 // pred_check
    %p13 = pneg %p12
  $region11: #{generator_forward.16} parent=0 // pred_check_branch
    %15 = sbr.rel (%p13) target = $region13
  $region12: #{generator_forward.16} parent=0 // pred_region
    %16 = vst [vmem:[#allocation2] sm:$0xff] 0.0
    %17 = vst [vmem:[#allocation2 + $0x8] sm:$0xff] 0.0
    %18 = vst [vmem:[#allocation2 + $0x10] sm:$0xff] 0.0
    %19 = vst [vmem:[#allocation2 + $0x18] sm:$0xff] 0.0
  $region13: #{generator_forward.16} parent=0 // pred_fallthru
    _
  %v20 = vld [vmem:[#allocation2] sm:$0xff]
  %v21 = vld [vmem:[#allocation2 + $0x8] sm:$0xff]
  %v22 = vld [vmem:[#allocation2 + $0x10] sm:$0xff]
  %v23 = vld [vmem:[#allocation2 + $0x18] sm:$0xff]
  %v24 = vld [vmem:[%s0] sm:$0xf]
  %v25 = vld [vmem:[%s0 + $0x4] sm:$0xf]
  %v26 = vld [vmem:[%s0 + $0x8] sm:$0xf]
  %v27 = vld [vmem:[%s0 + $0xc] sm:$0xf]
  %v28 = vld [vmem:[%s1] sm:$0xf]
  %v29 = vld [vmem:[%s1 + $0x4] sm:$0xf]
  %v30 = vld [vmem:[%s1 + $0x8] sm:$0xf]
  %v31 = vld [vmem:[%s1 + $0xc] sm:$0xf]
  %v32 = vld [vmem:[%s1 + $0x10] sm:$0xf]
  %v33 = vld [vmem:[%s1 + $0x14] sm:$0xf]
  %v34 = vld [vmem:[%s1 + $0x18] sm:$0xf]
  %v35 = vld [vmem:[%s1 + $0x1c] sm:$0xf]
  %v36 = vld [vmem:[%s1 + $0x20] sm:$0xf]
  %v37 = vld [vmem:[%s1 + $0x24] sm:$0xf]
  %v38 = vld [vmem:[%s1 + $0x28] sm:$0xf]
  %v39 = vld [vmem:[%s1 + $0x2c] sm:$0xf]
  %v40 = vld [vmem:[%s1 + $0x30] sm:$0xf]
  %v41 = vld [vmem:[%s1 + $0x34] sm:$0xf]
  %v42 = vld [vmem:[%s1 + $0x38] sm:$0xf]
  %v43 = vld [vmem:[%s1 + $0x3c] sm:$0xf]
  %v48 = vunpack.c.l.b16 %v24
  %v49 = vunpack.c.l.b16 %v25
  %v50 = vunpack.c.l.b16 %v26
  %v51 = vunpack.c.l.b16 %v27
  %v52 = vpack.c.b16 %v49, %v48
  %v53 = vpack.c.b16 %v51, %v50
  %v72 = vunpack.c.l.b16 %v28
  %v73 = vunpack.c.l.b16 %v29
  %v74 = vunpack.c.l.b16 %v30
  %v75 = vunpack.c.l.b16 %v31
  %v76 = vunpack.c.l.b16 %v32
  %v77 = vunpack.c.l.b16 %v33
  %v78 = vunpack.c.l.b16 %v34
  %v79 = vunpack.c.l.b16 %v35
  %v80 = vunpack.c.l.b16 %v36
  %v81 = vunpack.c.l.b16 %v37
  %v82 = vunpack.c.l.b16 %v38
  %v83 = vunpack.c.l.b16 %v39
  %v84 = vunpack.c.l.b16 %v40
  %v85 = vunpack.c.l.b16 %v41
  %v86 = vunpack.c.l.b16 %v42
  %v87 = vunpack.c.l.b16 %v43
  %v88 = vpack.c.b16 %v73, %v72
  %v89 = vpack.c.b16 %v75, %v74
  %v90 = vpack.c.b16 %v77, %v76
  %v91 = vpack.c.b16 %v79, %v78
  %v92 = vpack.c.b16 %v81, %v80
  %v93 = vpack.c.b16 %v83, %v82
  %v94 = vpack.c.b16 %v85, %v84
  %v95 = vpack.c.b16 %v87, %v86
  %104 = vmatprep.subr.bf16.mxu0 0
  %105 = vmatpush1.bf16.msra.mxu0 %v88
  %106 = vmatprep.subr.bf16.mxu0 0
  %107 = vmatpush1.bf16.msra.mxu0 %v89
  %108 = vmatprep.subr.bf16.mxu0 0
  %109 = vmatpush1.bf16.msra.mxu0 %v90
  %110 = vmatprep.subr.bf16.mxu0 0
  %111 = vmatpush1.bf16.msra.mxu0 %v91
  %112 = vmatprep.subr.bf16.mxu0 0
  %113 = vmatpush1.bf16.msra.mxu0 %v92
  %114 = vmatprep.subr.bf16.mxu0 0
  %115 = vmatpush1.bf16.msra.mxu0 %v93
  %116 = vmatprep.subr.bf16.mxu0 0
  %117 = vmatpush1.bf16.msra.mxu0 %v94
  %118 = vmatprep.subr.bf16.mxu0 0
  %119 = vmatpush1.bf16.msra.mxu0 %v95
  %120 = vmatprep.subr.bf16.mxu0 0
  %121 = vmatpush1.bf16.msra.mxu0 0
  %122 = vmatprep.subr.bf16.mxu0 0
  %123 = vmatpush1.bf16.msra.mxu0 0
  %124 = vmatprep.subr.bf16.mxu0 0
  %125 = vmatpush1.bf16.msra.mxu0 0
  %126 = vmatprep.subr.bf16.mxu0 0
  %127 = vmatpush1.bf16.msra.mxu0 0
  %128 = vmatprep.subr.bf16.mxu0 0
  %129 = vmatpush1.bf16.msra.mxu0 0
  %130 = vmatprep.subr.bf16.mxu0 0
  %131 = vmatpush1.bf16.msra.mxu0 0
  %132 = vmatprep.subr.bf16.mxu0 0
  %133 = vmatpush1.bf16.msra.mxu0 0
  %134 = vmatprep.subr.bf16.mxu0 0
  %135 = vmatpush1.bf16.msra.mxu0 0
  %136 = vmatprep.mubr.bf16.mxu0 0
  %137 = vmatmul.mubr.bf16.gmra.mrb[0].mxu0 %v52
  %v138 = vpop.f32.mrb[0].mxu0
  %v139 = vadd.f32 0.0, %v138
  %v140 = vpop.f32.mrb[0].mxu0
  %v141 = vpop.f32.mrb[0].mxu0
  %v142 = vadd.f32 0.0, %v141
  %v143 = vpop.f32.mrb[0].mxu0
  %144 = vmatprep.mubr.bf16.mxu0 0
  %145 = vmatmul.mubr.bf16.gmra.mrb[0].mxu0 %v53
  %v146 = vpop.f32.mrb[0].mxu0
  %v147 = vadd.f32 0.0, %v146
  %v148 = vpop.f32.mrb[0].mxu0
  %v149 = vpop.f32.mrb[0].mxu0
  %v150 = vadd.f32 0.0, %v149
  %v151 = vpop.f32.mrb[0].mxu0
  %152 = vdwg.mxu0
  %v153 = vadd.f32 %v20, %v139
  %v154 = vadd.f32 %v21, %v142
  %v155 = vadd.f32 %v22, %v147
  %v156 = vadd.f32 %v23, %v150
  %157 = vst [vmem:[#allocation2] sm:$0xff] %v153
  %158 = vst [vmem:[#allocation2 + $0x8] sm:$0xff] %v154
  %159 = vst [vmem:[#allocation2 + $0x10] sm:$0xff] %v155
  %160 = vst [vmem:[#allocation2 + $0x18] sm:$0xff] %v156
  // Predicated region
  $region14: #{generator_forward.16} parent=0 // pred_check
    %p161 = pneg %p12
  $region15: #{generator_forward.16} parent=0 // pred_check_branch
    %163 = sbr.rel (%p161) target = $region17
  $region16: #{generator_forward.16} parent=0 // pred_region
    %v164 = vld [vmem:[#allocation2] sm:$0xff]
    %v165 = vld [vmem:[#allocation2 + $0x8] sm:$0xff]
    %v166 = vld [vmem:[#allocation2 + $0x10] sm:$0xff]
    %v167 = vld [vmem:[#allocation2 + $0x18] sm:$0xff]
    %168 = vst [vmem:[%s2] sm:$0xff] %v164
    %169 = vst [vmem:[%s2 + $0x8] sm:$0xff] %v165
    %170 = vst [vmem:[%s2 + $0x10] sm:$0xff] %v166
    %171 = vst [vmem:[%s2 + $0x18] sm:$0xff] %v167
  $region17: #{generator_forward.16} parent=0 // pred_fallthru
    _
  // Predicated region
  $region18: #{generator_forward.16} parent=0 // pred_check
    _
  $region19: #{generator_forward.16} parent=0 // pred_check_branch
    %173 = sbr.rel (0) target = $region21
  $region20: #{generator_forward.16} parent=0 // pred_region
    _
  $region21: #{generator_forward.16} parent=0 // pred_fallthru
    _
  // Predicated region
  $region22: #{generator_forward.16} parent=0 // pred_check
    _
  $region23: #{generator_forward.16} parent=0 // pred_check_branch
    %175 = sbr.rel (0) target = $region25
  $region24: #{generator_forward.16} parent=0 // pred_region
    _
  $region25: #{generator_forward.16} parent=0 // pred_fallthru
    _

// kernel: generator_forward.14
$region0: #{generator_forward.14}
  #allocation0 [shape = 'u32[]', space=smem, size = 0x4, offset = 0x4, fixed_abs, tag = 'smem constant byte address 0x4 - core index']
  #allocation1 [shape = 'u32[144,128]{1,0:T(1,128)}', space=vmem, size = 0x12000, scoped, tag = 'internal scratch']
  #allocation2 [shape = 'f32[8,256]{1,0:T(8,128)}', space=vmem, size = 0x2000, scoped, tag = 'scratch operand']
  %s0 = inlined_call_operand.vmem [shape: bf16[8,128], index: 0, kind: input, shape index: {}]
  %s1 = inlined_call_operand.vmem [shape: bf16[128,512], index: 1, kind: input, shape index: {}]
  %s2 = inlined_call_operand.vmem [shape: f32[1,512], index: 2, kind: input, shape index: {}]
  %s3 = inlined_call_operand.vmem [shape: f32[8,512], index: 3, kind: output, shape index: {}]
  %s4 = sld [smem:[#allocation0]]
  $region91: #{generator_forward.14} parent=0
    _
  %s6 = ssub.s32 1, %s4
  %s7 = scalar_select 0, %s6, %s4
  $region1: #{generator_forward.14} parent=0
    #allocation3 [shape = 'u8[131072]{0}', space=vmem, size = 0x20000, scoped, tag = 'input window, operand 1']
    loop: start=0, step=1, limit=4
    $region2: #{generator_forward.14} parent=1 // loop_pre_header
      _
    $region3: #{generator_forward.14} parent=1 // loop_header
      %s9 = sphi 0, %s13
      %p10 = scmp.ge.s32.totalorder %s9, 4
      %s16 = sphi 0, %s35
      %s17 = sphi 0, %s31
      %s18 = sphi 0, %s27
      %s19 = sphi 0, %s16
      %s20 = sphi 0, %s17
      %s21 = sphi 0, %s18
      %s22 = sphi 0, %s19
      %s23 = sphi 0, %s20
      %s24 = sphi 0, %s21
      %s40 = sphi 0, %s42
      %s43 = sphi 0, %s40
      %s44 = sphi 0, %s43
      %s60 = sphi 0, %s44
      %s68 = sphi 0, %s70
      %s71 = sphi 0, %s68
      %s72 = sphi 0, %s71
      %s88 = sphi 0, %s72
      %s94 = sphi 0, %s96
      %s97 = sphi 0, %s94
      %s98 = sphi 0, %s97
      %s114 = sphi 0, %s98
      %s122 = sphi 0, %s124
      %s125 = sphi 0, %s122
      %s126 = sphi 0, %s125
      %s142 = sphi 0, %s126
    $region4: #{generator_forward.14} parent=1 // loop_header_branch
      %12 = sbr.rel (%p10) target = $region8
    $region5: #{generator_forward.14} parent=1 // loop_body
      %s14 = ssub.s32 %s9, 1
      %s15 = ssub.s32 %s9, 2
      %s25 = sadd.s32 1, %s18
      %p26 = scmp.ge.s32.totalorder %s25, 1
      %s27 = scalar_select %p26, 0, %s25
      %s28 = sadd.s32 1, %s17
      %s29 = scalar_select %p26, %s28, %s17
      %p30 = scmp.ge.s32.totalorder %s29, 2
      %s31 = scalar_select %p30, 0, %s29
      %s32 = sadd.s32 1, %s16
      %s33 = scalar_select %p30, %s32, %s16
      %p34 = scmp.ge.s32.totalorder %s33, 1
      %s35 = scalar_select %p34, 0, %s33
      %s36 = ssub.s32 %s16, %s35
      %s37 = ssub.s32 %s18, %s27
      %s38 = sor.u32 %s36, %s37
      %p39 = scmp.eq.s32.totalorder %s38, 0
      %s41 = sadd.s32 %s40, 1
      %s42 = scalar_select %p39, %s40, %s41
      %p45 = pneg %p39
      %p46 = scmp.eq.s32.totalorder %s9, 1
      %p47 = por %p45, %p46
      %p48 = scmp.ne.s32.totalorder %s40, %s43
      %p49 = scmp.eq.s32.totalorder %s9, 0
      %p50 = por %p48, %p49
      %p51 = scmp.ne.s32.totalorder %s40, %s43
      %p52 = scmp.eq.s32.totalorder %s14, 1
      %p53 = por %p51, %p52
      %p54 = scmp.ne.s32.totalorder %s43, %s44
      %p55 = scmp.eq.s32.totalorder %s14, 0
      %p56 = por %p54, %p55
      %p57 = scmp.ne.s32.totalorder %s43, %s44
      %p58 = scmp.eq.s32.totalorder %s15, 1
      %p59 = por %p57, %p58
      %p61 = scmp.ne.s32.totalorder %s44, %s60
      %p62 = scmp.eq.s32.totalorder %s15, 0
      %p63 = por %p61, %p62
      %s64 = ssub.s32 %s18, %s27
      %s65 = ssub.s32 %s17, %s31
      %s66 = sor.u32 %s64, %s65
      %p67 = scmp.eq.s32.totalorder %s66, 0
      %s69 = sadd.s32 %s68, 1
      %s70 = scalar_select %p67, %s68, %s69
      %p73 = pneg %p67
      %p74 = scmp.eq.s32.totalorder %s9, 1
      %p75 = por %p73, %p74
      %p76 = scmp.ne.s32.totalorder %s68, %s71
      %p77 = scmp.eq.s32.totalorder %s9, 0
      %p78 = por %p76, %p77
      %p79 = scmp.ne.s32.totalorder %s68, %s71
      %p80 = scmp.eq.s32.totalorder %s14, 1
      %p81 = por %p79, %p80
      %p82 = scmp.ne.s32.totalorder %s71, %s72
      %p83 = scmp.eq.s32.totalorder %s14, 0
      %p84 = por %p82, %p83
      %p85 = scmp.ne.s32.totalorder %s71, %s72
      %p86 = scmp.eq.s32.totalorder %s15, 1
      %p87 = por %p85, %p86
      %p89 = scmp.ne.s32.totalorder %s72, %s88
      %p90 = scmp.eq.s32.totalorder %s15, 0
      %p91 = por %p89, %p90
      %s92 = ssub.s32 %s17, %s31
      %p93 = scmp.eq.s32.totalorder %s92, 0
      %s95 = sadd.s32 %s94, 1
      %s96 = scalar_select %p93, %s94, %s95
      %p99 = pneg %p93
      %p100 = scmp.eq.s32.totalorder %s9, 1
      %p101 = por %p99, %p100
      %p102 = scmp.ne.s32.totalorder %s94, %s97
      %p103 = scmp.eq.s32.totalorder %s9, 0
      %p104 = por %p102, %p103
      %p105 = scmp.ne.s32.totalorder %s94, %s97
      %p106 = scmp.eq.s32.totalorder %s14, 1
      %p107 = por %p105, %p106
      %p108 = scmp.ne.s32.totalorder %s97, %s98
      %p109 = scmp.eq.s32.totalorder %s14, 0
      %p110 = por %p108, %p109
      %p111 = scmp.ne.s32.totalorder %s97, %s98
      %p112 = scmp.eq.s32.totalorder %s15, 1
      %p113 = por %p111, %p112
      %p115 = scmp.ne.s32.totalorder %s98, %s114
      %p116 = scmp.eq.s32.totalorder %s15, 0
      %p117 = por %p115, %p116
      %s118 = ssub.s32 %s16, %s35
      %s119 = ssub.s32 %s17, %s31
      %s120 = sor.u32 %s118, %s119
      %p121 = scmp.eq.s32.totalorder %s120, 0
      %s123 = sadd.s32 %s122, 1
      %s124 = scalar_select %p121, %s122, %s123
      %p127 = pneg %p121
      %p128 = scmp.eq.s32.totalorder %s9, 1
      %p129 = por %p127, %p128
      %p130 = scmp.ne.s32.totalorder %s122, %s125
      %p131 = scmp.eq.s32.totalorder %s9, 0
      %p132 = por %p130, %p131
      %p133 = scmp.ne.s32.totalorder %s122, %s125
      %p134 = scmp.eq.s32.totalorder %s14, 1
      %p135 = por %p133, %p134
      %p136 = scmp.ne.s32.totalorder %s125, %s126
      %p137 = scmp.eq.s32.totalorder %s14, 0
      %p138 = por %p136, %p137
      %p139 = scmp.ne.s32.totalorder %s125, %s126
      %p140 = scmp.eq.s32.totalorder %s15, 1
      %p141 = por %p139, %p140
      %p143 = scmp.ne.s32.totalorder %s126, %s142
      %p144 = scmp.eq.s32.totalorder %s15, 0
      %p145 = por %p143, %p144
      %p146 = scmp.le.s32.totalorder 1, %s9
      %p147 = scmp.lt.s32.totalorder %s9, 3
      %p148 = pnand %p146, %p147
      %p149 = pneg %p148
      // Predicated region
      $region9: #{generator_forward.14} parent=5 // pred_check
        _
      $region10: #{generator_forward.14} parent=5 // pred_check_branch
        %151 = sbr.rel (%p148) target = $region12
      $region11: #{generator_forward.14} parent=5 // pred_region
        %s152 = ssub.s32 %s9, 1
        // Predicated region
        $region13: #{generator_forward.14} parent=11 // pred_check
          %p153 = pneg %p56
        $region14: #{generator_forward.14} parent=11 // pred_check_branch
          %155 = sbr.rel (%p153) target = $region16
        $region15: #{generator_forward.14} parent=11 // pred_region
          %p156 = scmp.lt.s32.totalorder %s19, 0
          %s157 = scalar_select %p156, %s19, 0
          %p158 = scmp.lt.s32.totalorder %s21, 0
          %s159 = scalar_select %p158, %s21, 0
          %s160 = sadd.s32 %s159, %s157
          %s161 = smul.addr %s160, 4
          %s162 = scalar_lea.vmem %s0, %s161
        $region16: #{generator_forward.14} parent=11 // pred_fallthru
          _
      $region12: #{generator_forward.14} parent=5 // pred_fallthru
        _
      %p163 = scmp.lt.s32.totalorder %s9, 2
      // Predicated region
      $region17: #{generator_forward.14} parent=5 // pred_check
        %p164 = pneg %p163
      $region18: #{generator_forward.14} parent=5 // pred_check_branch
        %166 = sbr.rel (%p164) target = $region20
      $region19: #{generator_forward.14} parent=5 // pred_region
        // Predicated region
        $region21: #{generator_forward.14} parent=19 // pred_check
          %p167 = pneg %p78
        $region22: #{generator_forward.14} parent=19 // pred_check_branch
          %169 = sbr.rel (%p167) target = $region24
        $region23: #{generator_forward.14} parent=19 // pred_region
          %s170 = sand.u32 %s68, 1
          %s171 = sand.u32 %s68, 1
          %s172 = smul.addr %s171, 128
          %s173 = scalar_lea.vmem [#allocation3], %s172
          %s174 = smul.u32 16, %s18
          %s175 = smul.u32 2, %s17
          %s176 = smul.addr %s174, 4
          %s177 = sadd.s32 %s175, %s176
          %s178 = smul.addr %s177, 4
          %s179 = scalar_lea.vmem %s1, %s178
          // Predicated region
          $region25: #{generator_forward.14} parent=23 // pred_check
            _
          $region26: #{generator_forward.14} parent=23 // pred_check_branch
            %181 = sbr.rel (0) target = $region28
          $region27: #{generator_forward.14} parent=23 // pred_region
            // Predicated region
            $region29: #{generator_forward.14} parent=27 // pred_check
              _
            $region30: #{generator_forward.14} parent=27 // pred_check_branch
              %183 = sbr.rel (0) target = $region32
            $region31: #{generator_forward.14} parent=27 // pred_region
              // Predicated region
              $region44: #{generator_forward.14} parent=31 // pred_check
                _
              $region45: #{generator_forward.14} parent=31 // pred_check_branch
                %228 = sbr.rel (0) target = $region47
              $region46: #{generator_forward.14} parent=31 // pred_region
                loop: start=0, step=1, limit=1
                $region48: #{generator_forward.14} parent=46 // loop_pre_header
                  _
                $region49: #{generator_forward.14} parent=46 // loop_header
                  %s230 = sphi 0, %s234
                  %p231 = scmp.ge.s32.totalorder %s230, 1
                  %s235 = sphi %s179, %s179
                  %s236 = sphi %s173, %s173
                $region50: #{generator_forward.14} parent=46 // loop_header_branch
                  %233 = sbr.rel (%p231) target = $region54
                $region51: #{generator_forward.14} parent=46 // loop_body
                  %v237 = vld [vmem:[%s235] sm:$0xff]
                  %238 = vst [vmem:[%s236] sm:$0xff] %v237
                  %v239 = vld [vmem:[%s235 + $0x10] sm:$0xff]
                  %240 = vst [vmem:[%s236 + $0x8] sm:$0xff] %v239
                  %v241 = vld [vmem:[%s235 + $0x20] sm:$0xff]
                  %242 = vst [vmem:[%s236 + $0x10] sm:$0xff] %v241
                  %v243 = vld [vmem:[%s235 + $0x30] sm:$0xff]
                  %244 = vst [vmem:[%s236 + $0x18] sm:$0xff] %v243
                  %v245 = vld [vmem:[%s235 + $0x40] sm:$0xff]
                  %246 = vst [vmem:[%s236 + $0x20] sm:$0xff] %v245
                  %v247 = vld [vmem:[%s235 + $0x50] sm:$0xff]
                  %248 = vst [vmem:[%s236 + $0x28] sm:$0xff] %v247
                  %v249 = vld [vmem:[%s235 + $0x60] sm:$0xff]
                  %250 = vst [vmem:[%s236 + $0x30] sm:$0xff] %v249
                  %v251 = vld [vmem:[%s235 + $0x70] sm:$0xff]
                  %252 = vst [vmem:[%s236 + $0x38] sm:$0xff] %v251
                  %v253 = vld [vmem:[%s235 + $0x80] sm:$0xff]
                  %254 = vst [vmem:[%s236 + $0x40] sm:$0xff] %v253
                  %v255 = vld [vmem:[%s235 + $0x90] sm:$0xff]
                  %256 = vst [vmem:[%s236 + $0x48] sm:$0xff] %v255
                  %v257 = vld [vmem:[%s235 + $0xa0] sm:$0xff]
                  %258 = vst [vmem:[%s236 + $0x50] sm:$0xff] %v257
                  %v259 = vld [vmem:[%s235 + $0xb0] sm:$0xff]
                  %260 = vst [vmem:[%s236 + $0x58] sm:$0xff] %v259
                  %v261 = vld [vmem:[%s235 + $0xc0] sm:$0xff]
                  %262 = vst [vmem:[%s236 + $0x60] sm:$0xff] %v261
                  %v263 = vld [vmem:[%s235 + $0xd0] sm:$0xff]
                  %264 = vst [vmem:[%s236 + $0x68] sm:$0xff] %v263
                  %v265 = vld [vmem:[%s235 + $0xe0] sm:$0xff]
                  %266 = vst [vmem:[%s236 + $0x70] sm:$0xff] %v265
                  %v267 = vld [vmem:[%s235 + $0xf0] sm:$0xff]
                  %268 = vst [vmem:[%s236 + $0x78] sm:$0xff] %v267
                $region52: #{generator_forward.14} parent=46 // loop_footer
                  %s234 = sadd.s32 1, %s230
                $region53: #{generator_forward.14} parent=46 // loop_footer_branch
                  %229 = sbr.rel target = $region49
                $region54: #{generator_forward.14} parent=46 // loop_exit
                  _
              $region47: #{generator_forward.14} parent=31 // pred_fallthru
                _
              // Predicated region
              $region55: #{generator_forward.14} parent=31 // pred_check
                _
              $region56: #{generator_forward.14} parent=31 // pred_check_branch
                %270 = sbr.rel target = $region58
              $region57: #{generator_forward.14} parent=31 // pred_region
                _
              $region58: #{generator_forward.14} parent=31 // pred_fallthru
                _
            $region32: #{generator_forward.14} parent=27 // pred_fallthru
              _
            // Predicated region
            $region33: #{generator_forward.14} parent=27 // pred_check
              _
            $region34: #{generator_forward.14} parent=27 // pred_check_branch
              %185 = sbr.rel target = $region36
            $region35: #{generator_forward.14} parent=27 // pred_region
              loop: start=0, step=1, limit=1
              $region37: #{generator_forward.14} parent=35 // loop_pre_header
                _
              $region38: #{generator_forward.14} parent=35 // loop_header
                %s188 = sphi 0, %s192
                %p189 = scmp.ge.s32.totalorder %s188, 1
                %s193 = sphi %s179, %s179
                %s194 = sphi %s173, %s173
              $region39: #{generator_forward.14} parent=35 // loop_header_branch
                %191 = sbr.rel (%p189) target = $region43
              $region40: #{generator_forward.14} parent=35 // loop_body
                %v195 = vld [vmem:[%s193] sm:$0xff]
                %196 = vst [vmem:[%s194] sm:$0xff] %v195
                %v197 = vld [vmem:[%s193 + $0x10] sm:$0xff]
                %198 = vst [vmem:[%s194 + $0x8] sm:$0xff] %v197
                %v199 = vld [vmem:[%s193 + $0x20] sm:$0xff]
                %200 = vst [vmem:[%s194 + $0x10] sm:$0xff] %v199
                %v201 = vld [vmem:[%s193 + $0x30] sm:$0xff]
                %202 = vst [vmem:[%s194 + $0x18] sm:$0xff] %v201
                %v203 = vld [vmem:[%s193 + $0x40] sm:$0xff]
                %204 = vst [vmem:[%s194 + $0x20] sm:$0xff] %v203
                %v205 = vld [vmem:[%s193 + $0x50] sm:$0xff]
                %206 = vst [vmem:[%s194 + $0x28] sm:$0xff] %v205
                %v207 = vld [vmem:[%s193 + $0x60] sm:$0xff]
                %208 = vst [vmem:[%s194 + $0x30] sm:$0xff] %v207
                %v209 = vld [vmem:[%s193 + $0x70] sm:$0xff]
                %210 = vst [vmem:[%s194 + $0x38] sm:$0xff] %v209
                %v211 = vld [vmem:[%s193 + $0x80] sm:$0xff]
                %212 = vst [vmem:[%s194 + $0x40] sm:$0xff] %v211
                %v213 = vld [vmem:[%s193 + $0x90] sm:$0xff]
                %214 = vst [vmem:[%s194 + $0x48] sm:$0xff] %v213
                %v215 = vld [vmem:[%s193 + $0xa0] sm:$0xff]
                %216 = vst [vmem:[%s194 + $0x50] sm:$0xff] %v215
                %v217 = vld [vmem:[%s193 + $0xb0] sm:$0xff]
                %218 = vst [vmem:[%s194 + $0x58] sm:$0xff] %v217
                %v219 = vld [vmem:[%s193 + $0xc0] sm:$0xff]
                %220 = vst [vmem:[%s194 + $0x60] sm:$0xff] %v219
                %v221 = vld [vmem:[%s193 + $0xd0] sm:$0xff]
                %222 = vst [vmem:[%s194 + $0x68] sm:$0xff] %v221
                %v223 = vld [vmem:[%s193 + $0xe0] sm:$0xff]
                %224 = vst [vmem:[%s194 + $0x70] sm:$0xff] %v223
                %v225 = vld [vmem:[%s193 + $0xf0] sm:$0xff]
                %226 = vst [vmem:[%s194 + $0x78] sm:$0xff] %v225
              $region41: #{generator_forward.14} parent=35 // loop_footer
                %s192 = sadd.s32 1, %s188
              $region42: #{generator_forward.14} parent=35 // loop_footer_branch
                %187 = sbr.rel target = $region38
              $region43: #{generator_forward.14} parent=35 // loop_exit
                _
            $region36: #{generator_forward.14} parent=27 // pred_fallthru
              _
          $region28: #{generator_forward.14} parent=23 // pred_fallthru
            _
          %271 = vnop
        $region24: #{generator_forward.14} parent=19 // pred_fallthru
          _
        // Predicated region
        $region59: #{generator_forward.14} parent=19 // pred_check
          %p272 = pneg %p104
        $region60: #{generator_forward.14} parent=19 // pred_check_branch
          %274 = sbr.rel (%p272) target = $region62
        $region61: #{generator_forward.14} parent=19 // pred_region
          %s275 = smul.u32 2, %s17
          %p276 = scmp.lt.s32.totalorder %s275, 3
          %s277 = scalar_select %p276, %s275, 3
          %s278 = scalar_lea.vmem %s2, %s277
          %s279 = smul.u32 2, %s17
        $region62: #{generator_forward.14} parent=19 // pred_fallthru
          _
      $region20: #{generator_forward.14} parent=5 // pred_fallthru
        _
      %p280 = scmp.le.s32.totalorder 1, %s9
      %p281 = scmp.lt.s32.totalorder %s9, 3
      %p282 = pnand %p280, %p281
      %p283 = pneg %p282
      // Predicated region
      $region63: #{generator_forward.14} parent=5 // pred_check
        _
      $region64: #{generator_forward.14} parent=5 // pred_check_branch
        %285 = sbr.rel (%p282) target = $region66
      $region65: #{generator_forward.14} parent=5 // pred_region
        %s286 = ssub.s32 %s9, 1
        %s287 = sand.u32 %s71, 1
        %s288 = sand.u32 %s71, 1
        %s289 = smul.addr %s288, 128
        %s290 = scalar_lea.vmem [#allocation3], %s289
        // Predicated region
        $region67: #{generator_forward.14} parent=65 // pred_check
          %p291 = pneg %p84
        $region68: #{generator_forward.14} parent=65 // pred_check_branch
          %293 = sbr.rel (%p291) target = $region70
        $region69: #{generator_forward.14} parent=65 // pred_region
          _
        $region70: #{generator_forward.14} parent=65 // pred_fallthru
          _
        %p294 = scmp.lt.s32.totalorder %s19, 0
        %s295 = scalar_select %p294, %s19, 0
        %p296 = scmp.lt.s32.totalorder %s21, 0
        %s297 = scalar_select %p296, %s21, 0
        %s298 = sadd.s32 %s297, %s295
        %s299 = smul.addr %s298, 4
        %s300 = scalar_lea.vmem %s0, %s299
        %p301 = pneg %p56
        %p302 = pneg %p53
        %s303 = sand.u32 %s71, 1
        %s304 = sand.u32 %s71, 1
        %s305 = smul.addr %s304, 128
        %s306 = scalar_lea.vmem [#allocation3], %s305
        %p307 = pneg %p84
        %p308 = pneg %p81
        %s309 = smul.u32 2, %s20
        %p310 = scmp.lt.s32.totalorder %s309, 3
        %s311 = scalar_select %p310, %s309, 3
        %s312 = scalar_lea.vmem %s2, %s311
        %p313 = pneg %p110
        %p314 = pneg %p107
        %p315 = pneg %p138
        %p316 = pneg %p135
        %s317 = smul.u32 2, %s20
        %p318 = scmp.lt.s32.totalorder %s19, 0
        %s319 = scalar_select %p318, %s19, 0
        %p320 = scmp.lt.s32.totalorder %s317, 3
        %s321 = scalar_select %p320, %s317, 3
        %s322 = smul.addr %s319, 4
        %s323 = sadd.s32 %s321, %s322
        %s324 = smul.addr %s323, 8
        %s325 = scalar_lea.vmem %s3, %s324
        %p326 = scmp.lt.s32.totalorder %s19, 0
        %s327 = scalar_select %p326, %s19, 0
        %p328 = scmp.lt.s32.totalorder %s21, 0
        %s329 = scalar_select %p328, %s21, 0
        %s330 = sadd.s32 %s329, %s327
        %s331 = smul.addr %s330, 4
        %s332 = scalar_lea.vmem %s0, %s331
        %s333 = smul.u32 16, %s21
        %s334 = smul.u32 2, %s20
        %s335 = smul.u32 2, %s20
        %p336 = scmp.lt.s32.totalorder %s335, 3
        %s337 = scalar_select %p336, %s335, 3
        %s338 = scalar_lea.vmem %s2, %s337
        %s339 = smul.u32 2, %s20
        %s340 = smul.u32 2, %s20
        %p341 = scmp.lt.s32.totalorder %s19, 0
        %s342 = scalar_select %p341, %s19, 0
        %p343 = scmp.lt.s32.totalorder %s340, 3
        %s344 = scalar_select %p343, %s340, 3
        %s345 = smul.addr %s342, 4
        %s346 = sadd.s32 %s344, %s345
        %s347 = smul.addr %s346, 8
        %s348 = scalar_lea.vmem %s3, %s347
        %s349 = smul.u32 2, %s20
        %p351 = scmp.eq.s32.totalorder %s21, 0
        // Predicated region
        $region71: #{generator_forward.14} parent=65 // pred_check
          %p352 = pneg %p351
        $region72: #{generator_forward.14} parent=65 // pred_check_branch
          %354 = sbr.rel (%p352) target = $region74
        $region73: #{generator_forward.14} parent=65 // pred_region
          %355 = vst [vmem:[#allocation2] sm:$0xff] 0.0
          %356 = vst [vmem:[#allocation2 + $0x8] sm:$0xff] 0.0
        $region74: #{generator_forward.14} parent=65 // pred_fallthru
          _
        %v357 = vld [vmem:[#allocation2] sm:$0xff]
        %v358 = vld [vmem:[#allocation2 + $0x8] sm:$0xff]
        %v359 = vld [vmem:[%s332] sm:$0xf]
        %v360 = vld [vmem:[%s290] sm:$0xff]
        %v361 = vld [vmem:[%s290 + $0x8] sm:$0xff]
        %v362 = vld [vmem:[%s290 + $0x10] sm:$0xff]
        %v363 = vld [vmem:[%s290 + $0x18] sm:$0xff]
        %v364 = vld [vmem:[%s290 + $0x20] sm:$0xff]
        %v365 = vld [vmem:[%s290 + $0x28] sm:$0xff]
        %v366 = vld [vmem:[%s290 + $0x30] sm:$0xff]
        %v367 = vld [vmem:[%s290 + $0x38] sm:$0xff]
        %v368 = vld [vmem:[%s290 + $0x40] sm:$0xff]
        %v369 = vld [vmem:[%s290 + $0x48] sm:$0xff]
        %v370 = vld [vmem:[%s290 + $0x50] sm:$0xff]
        %v371 = vld [vmem:[%s290 + $0x58] sm:$0xff]
        %v372 = vld [vmem:[%s290 + $0x60] sm:$0xff]
        %v373 = vld [vmem:[%s290 + $0x68] sm:$0xff]
        %v374 = vld [vmem:[%s290 + $0x70] sm:$0xff]
        %v375 = vld [vmem:[%s290 + $0x78] sm:$0xff]
        %v392 = vunpack.c.l.b16 %v360
        %v393 = vunpack.c.h.b16 %v360
        %v394 = vunpack.c.l.b16 %v361
        %v395 = vunpack.c.h.b16 %v361
        %v396 = vunpack.c.l.b16 %v362
        %v397 = vunpack.c.h.b16 %v362
        %v398 = vunpack.c.l.b16 %v363
        %v399 = vunpack.c.h.b16 %v363
        %v400 = vunpack.c.l.b16 %v364
        %v401 = vunpack.c.h.b16 %v364
        %v402 = vunpack.c.l.b16 %v365
        %v403 = vunpack.c.h.b16 %v365
        %v404 = vunpack.c.l.b16 %v366
        %v405 = vunpack.c.h.b16 %v366
        %v406 = vunpack.c.l.b16 %v367
        %v407 = vunpack.c.h.b16 %v367
        %v408 = vunpack.c.l.b16 %v368
        %v409 = vunpack.c.h.b16 %v368
        %v410 = vunpack.c.l.b16 %v369
        %v411 = vunpack.c.h.b16 %v369
        %v412 = vunpack.c.l.b16 %v370
        %v413 = vunpack.c.h.b16 %v370
        %v414 = vunpack.c.l.b16 %v371
        %v415 = vunpack.c.h.b16 %v371
        %v416 = vunpack.c.l.b16 %v372
        %v417 = vunpack.c.h.b16 %v372
        %v418 = vunpack.c.l.b16 %v373
        %v419 = vunpack.c.h.b16 %v373
        %v420 = vunpack.c.l.b16 %v374
        %v421 = vunpack.c.h.b16 %v374
        %v422 = vunpack.c.l.b16 %v375
        %v423 = vunpack.c.h.b16 %v375
        %v424 = vpack.c.b16 %v394, %v392
        %v425 = vpack.c.b16 %v395, %v393
        %v426 = vpack.c.b16 %v398, %v396
        %v427 = vpack.c.b16 %v399, %v397
        %v428 = vpack.c.b16 %v402, %v400
        %v429 = vpack.c.b16 %v403, %v401
        %v430 = vpack.c.b16 %v406, %v404
        %v431 = vpack.c.b16 %v407, %v405
        %v432 = vpack.c.b16 %v410, %v408
        %v433 = vpack.c.b16 %v411, %v409
        %v434 = vpack.c.b16 %v414, %v412
        %v435 = vpack.c.b16 %v415, %v413
        %v436 = vpack.c.b16 %v418, %v416
        %v437 = vpack.c.b16 %v419, %v417
        %v438 = vpack.c.b16 %v422, %v420
        %v439 = vpack.c.b16 %v423, %v421
        %456 = vmatprep.subr.bf16.mxu0 %v425
        %457 = vmatpush1.bf16.msra.mxu0 %v424
        %458 = vmatprep.subr.bf16.mxu0 %v427
        %459 = vmatpush1.bf16.msra.mxu0 %v426
        %460 = vmatprep.subr.bf16.mxu0 %v429
        %461 = vmatpush1.bf16.msra.mxu0 %v428
        %462 = vmatprep.subr.bf16.mxu0 %v431
        %463 = vmatpush1.bf16.msra.mxu0 %v430
        %464 = vmatprep.subr.bf16.mxu0 %v433
        %465 = vmatpush1.bf16.msra.mxu0 %v432
        %466 = vmatprep.subr.bf16.mxu0 %v435
        %467 = vmatpush1.bf16.msra.mxu0 %v434
        %468 = vmatprep.subr.bf16.mxu0 %v437
        %469 = vmatpush1.bf16.msra.mxu0 %v436
        %470 = vmatprep.subr.bf16.mxu0 %v439
        %471 = vmatpush1.bf16.msra.mxu0 %v438
        %472 = vmatprep.subr.bf16.mxu0 0
        %473 = vmatpush1.bf16.msra.mxu0 0
        %474 = vmatprep.subr.bf16.mxu0 0
        %475 = vmatpush1.bf16.msra.mxu0 0
        %476 = vmatprep.subr.bf16.mxu0 0
        %477 = vmatpush1.bf16.msra.mxu0 0
        %478 = vmatprep.subr.bf16.mxu0 0
        %479 = vmatpush1.bf16.msra.mxu0 0
        %480 = vmatprep.subr.bf16.mxu0 0
        %481 = vmatpush1.bf16.msra.mxu0 0
        %482 = vmatprep.subr.bf16.mxu0 0
        %483 = vmatpush1.bf16.msra.mxu0 0
        %484 = vmatprep.subr.bf16.mxu0 0
        %485 = vmatpush1.bf16.msra.mxu0 0
        %486 = vmatprep.subr.bf16.mxu0 0
        %487 = vmatpush1.bf16.msra.mxu0 0
        %488 = vmatprep.mubr.bf16.mxu0 0
        %489 = vmatmul.mubr.bf16.gmra.mrb[0].mxu0 %v359
        %v490 = vpop.f32.mrb[0].mxu0
        %v491 = vadd.f32 0.0, %v490
        %v492 = vpop.f32.mrb[0].mxu0
        %v493 = vadd.f32 0.0, %v492
        %v494 = vpop.f32.mrb[0].mxu0
        %v495 = vpop.f32.mrb[0].mxu0
        %496 = vdwg.mxu0
        %v497 = vadd.f32 %v357, %v491
        %v498 = vadd.f32 %v358, %v493
        %499 = vst [vmem:[#allocation2] sm:$0xff] %v497
        %500 = vst [vmem:[#allocation2 + $0x8] sm:$0xff] %v498
        // Predicated region
        $region75: #{generator_forward.14} parent=65 // pred_check
          %p501 = pneg %p351
        $region76: #{generator_forward.14} parent=65 // pred_check_branch
          %503 = sbr.rel (%p501) target = $region78
        $region77: #{generator_forward.14} parent=65 // pred_region
          %v504 = vld [vmem:[#allocation2] sm:$0xff]
          %v505 = vld [vmem:[#allocation2 + $0x8] sm:$0xff]
          %v506 = vld [vmem:[%s338] sm:$0x3]
          %v508 = vlaneseq
          %v509 = vshrl.u32 %v508, 7
          %v510 = vsub.s32 0, %v509
          %v511 = vrot.slane %v506, %v510
          %v512 = vlaneseq
          %v513 = vshrl.u32 %v512, 7
          %v514 = vsub.s32 1, %v513
          %v515 = vrot.slane %v506, %v514
          %v518 = vadd.f32 %v504, %v511
          %v519 = vadd.f32 %v505, %v515
          %520 = vst [vmem:[%s348] sm:$0xff] %v518
          %521 = vst [vmem:[%s348 + $0x8] sm:$0xff] %v519
        $region78: #{generator_forward.14} parent=65 // pred_fallthru
          _
        %s522 = smul.u32 2, %s20
        %p523 = scmp.lt.s32.totalorder %s19, 0
        %s524 = scalar_select %p523, %s19, 0
        %p525 = scmp.lt.s32.totalorder %s522, 3
        %s526 = scalar_select %p525, %s522, 3
        %s527 = smul.addr %s524, 4
        %s528 = sadd.s32 %s526, %s527
        %s529 = smul.addr %s528, 8
        %s530 = scalar_lea.vmem %s3, %s529
        // Predicated region
        $region79: #{generator_forward.14} parent=65 // pred_check
          %p531 = pneg %p135
        $region80: #{generator_forward.14} parent=65 // pred_check_branch
          %533 = sbr.rel (%p531) target = $region82
        $region81: #{generator_forward.14} parent=65 // pred_region
          %s534 = smul.u32 2, %s20
        $region82: #{generator_forward.14} parent=65 // pred_fallthru
          _
      $region66: #{generator_forward.14} parent=5 // pred_fallthru
        _
      %p535 = scmp.le.s32.totalorder 2, %s9
      // Predicated region
      $region83: #{generator_forward.14} parent=5 // pred_check
        %p536 = pneg %p535
      $region84: #{generator_forward.14} parent=5 // pred_check_branch
        %538 = sbr.rel (%p536) target = $region86
      $region85: #{generator_forward.14} parent=5 // pred_region
        %s539 = ssub.s32 %s9, 2
        // Predicated region
        $region87: #{generator_forward.14} parent=85 // pred_check
          %p540 = pneg %p141
        $region88: #{generator_forward.14} parent=85 // pred_check_branch
          %542 = sbr.rel (%p540) target = $region90
        $region89: #{generator_forward.14} parent=85 // pred_region
          %s543 = smul.u32 2, %s23
          %p544 = scmp.lt.s32.totalorder %s22, 0
          %s545 = scalar_select %p544, %s22, 0
          %p546 = scmp.lt.s32.totalorder %s543, 3
          %s547 = scalar_select %p546, %s543, 3
          %s548 = smul.addr %s545, 4
          %s549 = sadd.s32 %s547, %s548
          %s550 = smul.addr %s549, 8
          %s551 = scalar_lea.vmem %s3, %s550
        $region90: #{generator_forward.14} parent=85 // pred_fallthru
          _
      $region86: #{generator_forward.14} parent=5 // pred_fallthru
        _
    $region6: #{generator_forward.14} parent=1 // loop_footer
      %s13 = sadd.s32 1, %s9
    $region7: #{generator_forward.14} parent=1 // loop_footer_branch
      %8 = sbr.rel target = $region3
    $region8: #{generator_forward.14} parent=1 // loop_exit
      _

// kernel: generator_forward.19
$region0: #{generator_forward.19}
  #allocation0 [shape = 'u32[]', space=smem, size = 0x4, offset = 0x4, fixed_abs, tag = 'smem constant byte address 0x4 - core index']
  #allocation1 [shape = 'u32[144,128]{1,0:T(1,128)}', space=vmem, size = 0x12000, scoped, tag = 'internal scratch']
  #allocation2 [shape = 'f32[1,16]{1,0:T(1,128)}', space=vmem, size = 0x200, scoped, tag = 'scratch operand']
  #allocation3 [shape = 'f32[1,16]{1,0:T(1,128)}', space=vmem, size = 0x200, scoped, tag = 'scratch operand']
  %s0 = inlined_call_operand.vmem [shape: f32[128,16], index: 0, kind: input, shape index: {}]
  %s1 = inlined_call_operand.vmem [shape: f32[1,16], index: 1, kind: output, shape index: {0}]
  %s2 = inlined_call_operand.vmem [shape: f32[1,16], index: 2, kind: output, shape index: {1}]
  %3 = xla_tuple %s1, %s2
  %s4 = sld [smem:[#allocation0]]
  $region30: #{generator_forward.19} parent=0
    _
  %s6 = ssub.s32 1, %s4
  %s7 = scalar_select 0, %s6, %s4
  // Predicated region
  $region2: #{generator_forward.19} parent=0 // pred_check
    _
  $region3: #{generator_forward.19} parent=0 // pred_check_branch
    %9 = sbr.rel (0) target = $region5
  $region4: #{generator_forward.19} parent=0 // pred_region
    _
  $region5: #{generator_forward.19} parent=0 // pred_fallthru
    _
  %p10 = scmp.eq.s32.totalorder 0, 0
  // Predicated region
  $region6: #{generator_forward.19} parent=0 // pred_check
    %p11 = pneg %p10
  $region7: #{generator_forward.19} parent=0 // pred_check_branch
    %13 = sbr.rel (%p11) target = $region9
  $region8: #{generator_forward.19} parent=0 // pred_region
    %vm14 = vcmask 122880
    %15 = vst.msk [vmem:[#allocation2] sm:$0x1] %vm14, 0.0
    %16 = vst.msk [vmem:[#allocation3] sm:$0x1] %vm14, 0.0
  $region9: #{generator_forward.19} parent=0 // pred_fallthru
    _
  %v17 = vld [vmem:[%s0] sm:$0xff]
  %v18 = vld [vmem:[%s0 + $0x8] sm:$0xff]
  %v19 = vld [vmem:[%s0 + $0x10] sm:$0xff]
  %v20 = vld [vmem:[%s0 + $0x18] sm:$0xff]
  %v21 = vld [vmem:[%s0 + $0x20] sm:$0xff]
  %v22 = vld [vmem:[%s0 + $0x28] sm:$0xff]
  %v23 = vld [vmem:[%s0 + $0x30] sm:$0xff]
  %v24 = vld [vmem:[%s0 + $0x38] sm:$0xff]
  %v25 = vld [vmem:[%s0 + $0x40] sm:$0xff]
  %v26 = vld [vmem:[%s0 + $0x48] sm:$0xff]
  %v27 = vld [vmem:[%s0 + $0x50] sm:$0xff]
  %v28 = vld [vmem:[%s0 + $0x58] sm:$0xff]
  %v29 = vld [vmem:[%s0 + $0x60] sm:$0xff]
  %v30 = vld [vmem:[%s0 + $0x68] sm:$0xff]
  %v31 = vld [vmem:[%s0 + $0x70] sm:$0xff]
  %v32 = vld [vmem:[%s0 + $0x78] sm:$0xff]
  %v33 = vld [vmem:[#allocation2] sm:$0x1]
  %vm34 = vcmask 130048
  %v35 = vsel %vm34, %v17, 0.0
  %v36 = vsel %vm34, %v18, 0.0
  %v37 = vadd.f32 %v35, %v36
  %v38 = vsel %vm34, %v19, 0.0
  %v39 = vadd.f32 %v37, %v38
  %v40 = vsel %vm34, %v20, 0.0
  %v41 = vadd.f32 %v39, %v40
  %v42 = vsel %vm34, %v21, 0.0
  %v43 = vadd.f32 %v41, %v42
  %v44 = vsel %vm34, %v22, 0.0
  %v45 = vadd.f32 %v43, %v44
  %v46 = vsel %vm34, %v23, 0.0
  %v47 = vadd.f32 %v45, %v46
  %v48 = vsel %vm34, %v24, 0.0
  %v49 = vadd.f32 %v47, %v48
  %v50 = vsel %vm34, %v25, 0.0
  %v51 = vadd.f32 %v49, %v50
  %v52 = vsel %vm34, %v26, 0.0
  %v53 = vadd.f32 %v51, %v52
  %v54 = vsel %vm34, %v27, 0.0
  %v55 = vadd.f32 %v53, %v54
  %v56 = vsel %vm34, %v28, 0.0
  %v57 = vadd.f32 %v55, %v56
  %v58 = vsel %vm34, %v29, 0.0
  %v59 = vadd.f32 %v57, %v58
  %v60 = vsel %vm34, %v30, 0.0
  %v61 = vadd.f32 %v59, %v60
  %v62 = vsel %vm34, %v31, 0.0
  %v63 = vadd.f32 %v61, %v62
  %v64 = vsel %vm34, %v32, 0.0
  %v65 = vadd.f32 %v63, %v64
  %v66 = vrot.slane %v65, 4
  %v67 = vadd.f32 %v65, %v66
  %v68 = vrot.slane %v67, 2
  %v69 = vadd.f32 %v67, %v68
  %v70 = vrot.slane %v69, 1
  %v71 = vadd.f32 %v69, %v70
  %v72 = vadd.f32 %v33, %v71
  %vm73 = vcmask 122880
  %74 = vst.msk [vmem:[#allocation2] sm:$0x1] %vm73, %v72
  %v75 = vld [vmem:[#allocation3] sm:$0x1]
  %v76 = vmul.f32 %v17, %v17
  %v77 = vmul.f32 %v18, %v18
  %v78 = vmul.f32 %v19, %v19
  %v79 = vmul.f32 %v20, %v20
  %v80 = vmul.f32 %v21, %v21
  %v81 = vmul.f32 %v22, %v22
  %v82 = vmul.f32 %v23, %v23
  %v83 = vmul.f32 %v24, %v24
  %v84 = vmul.f32 %v25, %v25
  %v85 = vmul.f32 %v26, %v26
  %v86 = vmul.f32 %v27, %v27
  %v87 = vmul.f32 %v28, %v28
  %v88 = vmul.f32 %v29, %v29
  %v89 = vmul.f32 %v30, %v30
  %v90 = vmul.f32 %v31, %v31
  %v91 = vmul.f32 %v32, %v32
  %v92 = vsel %vm34, %v76, 0.0
  %v93 = vsel %vm34, %v77, 0.0
  %v94 = vadd.f32 %v92, %v93
  %v95 = vsel %vm34, %v78, 0.0
  %v96 = vadd.f32 %v94, %v95
  %v97 = vsel %vm34, %v79, 0.0
  %v98 = vadd.f32 %v96, %v97
  %v99 = vsel %vm34, %v80, 0.0
  %v100 = vadd.f32 %v98, %v99
  %v101 = vsel %vm34, %v81, 0.0
  %v102 = vadd.f32 %v100, %v101
  %v103 = vsel %vm34, %v82, 0.0
  %v104 = vadd.f32 %v102, %v103
  %v105 = vsel %vm34, %v83, 0.0
  %v106 = vadd.f32 %v104, %v105
  %v107 = vsel %vm34, %v84, 0.0
  %v108 = vadd.f32 %v106, %v107
  %v109 = vsel %vm34, %v85, 0.0
  %v110 = vadd.f32 %v108, %v109
  %v111 = vsel %vm34, %v86, 0.0
  %v112 = vadd.f32 %v110, %v111
  %v113 = vsel %vm34, %v87, 0.0
  %v114 = vadd.f32 %v112, %v113
  %v115 = vsel %vm34, %v88, 0.0
  %v116 = vadd.f32 %v114, %v115
  %v117 = vsel %vm34, %v89, 0.0
  %v118 = vadd.f32 %v116, %v117
  %v119 = vsel %vm34, %v90, 0.0
  %v120 = vadd.f32 %v118, %v119
  %v121 = vsel %vm34, %v91, 0.0
  %v122 = vadd.f32 %v120, %v121
  %v123 = vrot.slane %v122, 4
  %v124 = vadd.f32 %v122, %v123
  %v125 = vrot.slane %v124, 2
  %v126 = vadd.f32 %v124, %v125
  %v127 = vrot.slane %v126, 1
  %v128 = vadd.f32 %v126, %v127
  %v129 = vadd.f32 %v75, %v128
  %130 = vst.msk [vmem:[#allocation3] sm:$0x1] %vm73, %v129
  // Predicated region
  $region10: #{generator_forward.19} parent=0 // pred_check
    %p131 = pneg %p10
  $region11: #{generator_forward.19} parent=0 // pred_check_branch
    %133 = sbr.rel (%p131) target = $region13
  $region12: #{generator_forward.19} parent=0 // pred_region
    %v134 = vld [vmem:[#allocation2] sm:$0x1]
    %135 = vst.msk [vmem:[%s1] sm:$0x1] %vm73, %v134
    %v136 = vld [vmem:[#allocation3] sm:$0x1]
    %137 = vst.msk [vmem:[%s2] sm:$0x1] %vm73, %v136
  $region13: #{generator_forward.19} parent=0 // pred_fallthru
    _
  // Predicated region
  $region14: #{generator_forward.19} parent=0 // pred_check
    _
  $region15: #{generator_forward.19} parent=0 // pred_check_branch
    %139 = sbr.rel (0) target = $region17
  $region16: #{generator_forward.19} parent=0 // pred_region
    _
  $region17: #{generator_forward.19} parent=0 // pred_fallthru
    _
  // Predicated region
  $region18: #{generator_forward.19} parent=0 // pred_check
    _
  $region19: #{generator_forward.19} parent=0 // pred_check_branch
    %141 = sbr.rel (0) target = $region21
  $region20: #{generator_forward.19} parent=0 // pred_region
    _
  $region21: #{generator_forward.19} parent=0 // pred_fallthru
    _
  // Predicated region
  $region22: #{generator_forward.19} parent=0 // pred_check
    _
  $region23: #{generator_forward.19} parent=0 // pred_check_branch
    %143 = sbr.rel (0) target = $region25
  $region24: #{generator_forward.19} parent=0 // pred_region
    _
  $region25: #{generator_forward.19} parent=0 // pred_fallthru
    _
  // Predicated region
  $region26: #{generator_forward.19} parent=0 // pred_check
    _
  $region27: #{generator_forward.19} parent=0 // pred_check_branch
    %145 = sbr.rel (0) target = $region29
  $region28: #{generator_forward.19} parent=0 // pred_region
    _
  $region29: #{generator_forward.19} parent=0 // pred_fallthru
    _

// kernel: generator_forward.20
$region0: #{generator_forward.20}
  #allocation0 [shape = 'u32[]', space=smem, size = 0x4, offset = 0x4, fixed_abs, tag = 'smem constant byte address 0x4 - core index']
  #allocation1 [shape = 'u32[144,128]{1,0:T(1,128)}', space=vmem, size = 0x12000, scoped, tag = 'internal scratch']
  %s0 = inlined_call_operand.vmem [shape: f32[128,16], index: 0, kind: input, shape index: {}]
  %s1 = inlined_call_operand.vmem [shape: f32[1,16], index: 1, kind: input, shape index: {}]
  %s2 = inlined_call_operand.vmem [shape: f32[1,16], index: 2, kind: input, shape index: {}]
  %s3 = inlined_call_operand.vmem [shape: f32[128,16], index: 3, kind: output, shape index: {}]
  %s4 = sld [smem:[#allocation0]]
  $region22: #{generator_forward.20} parent=0
    _
  %s6 = ssub.s32 1, %s4
  %s7 = scalar_select 0, %s6, %s4
  // Predicated region
  $region2: #{generator_forward.20} parent=0 // pred_check
    _
  $region3: #{generator_forward.20} parent=0 // pred_check_branch
    %9 = sbr.rel (0) target = $region5
  $region4: #{generator_forward.20} parent=0 // pred_region
    _
  $region5: #{generator_forward.20} parent=0 // pred_fallthru
    _
  // Predicated region
  $region6: #{generator_forward.20} parent=0 // pred_check
    _
  $region7: #{generator_forward.20} parent=0 // pred_check_branch
    %11 = sbr.rel (0) target = $region9
  $region8: #{generator_forward.20} parent=0 // pred_region
    _
  $region9: #{generator_forward.20} parent=0 // pred_fallthru
    _
  // Predicated region
  $region10: #{generator_forward.20} parent=0 // pred_check
    _
  $region11: #{generator_forward.20} parent=0 // pred_check_branch
    %13 = sbr.rel (0) target = $region13
  $region12: #{generator_forward.20} parent=0 // pred_region
    _
  $region13: #{generator_forward.20} parent=0 // pred_fallthru
    _
  %v14 = vld [vmem:[%s0] sm:$0xff]
  %v15 = vld [vmem:[%s0 + $0x8] sm:$0xff]
  %v16 = vld [vmem:[%s0 + $0x10] sm:$0xff]
  %v17 = vld [vmem:[%s0 + $0x18] sm:$0xff]
  %v18 = vld [vmem:[%s0 + $0x20] sm:$0xff]
  %v19 = vld [vmem:[%s0 + $0x28] sm:$0xff]
  %v20 = vld [vmem:[%s0 + $0x30] sm:$0xff]
  %v21 = vld [vmem:[%s0 + $0x38] sm:$0xff]
  %v22 = vld [vmem:[%s0 + $0x40] sm:$0xff]
  %v23 = vld [vmem:[%s0 + $0x48] sm:$0xff]
  %v24 = vld [vmem:[%s0 + $0x50] sm:$0xff]
  %v25 = vld [vmem:[%s0 + $0x58] sm:$0xff]
  %v26 = vld [vmem:[%s0 + $0x60] sm:$0xff]
  %v27 = vld [vmem:[%s0 + $0x68] sm:$0xff]
  %v28 = vld [vmem:[%s0 + $0x70] sm:$0xff]
  %v29 = vld [vmem:[%s0 + $0x78] sm:$0xff]
  %v30 = vld [vmem:[%s1] sm:$0x1]
  %v32 = vlaneseq
  %v33 = vshrl.u32 %v32, 7
  %v34 = vsub.s32 0, %v33
  %v35 = vrot.slane %v30, %v34
  %v37 = vmul.f32 %v14, %v35
  %v38 = vmul.f32 %v15, %v35
  %v39 = vmul.f32 %v16, %v35
  %v40 = vmul.f32 %v17, %v35
  %v41 = vmul.f32 %v18, %v35
  %v42 = vmul.f32 %v19, %v35
  %v43 = vmul.f32 %v20, %v35
  %v44 = vmul.f32 %v21, %v35
  %v45 = vmul.f32 %v22, %v35
  %v46 = vmul.f32 %v23, %v35
  %v47 = vmul.f32 %v24, %v35
  %v48 = vmul.f32 %v25, %v35
  %v49 = vmul.f32 %v26, %v35
  %v50 = vmul.f32 %v27, %v35
  %v51 = vmul.f32 %v28, %v35
  %v52 = vmul.f32 %v29, %v35
  %v53 = vld [vmem:[%s2] sm:$0x1]
  %v55 = vlaneseq
  %v56 = vshrl.u32 %v55, 7
  %v57 = vsub.s32 0, %v56
  %v58 = vrot.slane %v53, %v57
  %v60 = vadd.f32 %v37, %v58
  %v61 = vadd.f32 %v38, %v58
  %v62 = vadd.f32 %v39, %v58
  %v63 = vadd.f32 %v40, %v58
  %v64 = vadd.f32 %v41, %v58
  %v65 = vadd.f32 %v42, %v58
  %v66 = vadd.f32 %v43, %v58
  %v67 = vadd.f32 %v44, %v58
  %v68 = vadd.f32 %v45, %v58
  %v69 = vadd.f32 %v46, %v58
  %v70 = vadd.f32 %v47, %v58
  %v71 = vadd.f32 %v48, %v58
  %v72 = vadd.f32 %v49, %v58
  %v73 = vadd.f32 %v50, %v58
  %v74 = vadd.f32 %v51, %v58
  %v75 = vadd.f32 %v52, %v58
  %vm76 = vcmp.ge.f32.partialorder %v60, 0.0
  %vm77 = vcmp.ge.f32.partialorder %v61, 0.0
  %vm78 = vcmp.ge.f32.partialorder %v62, 0.0
  %vm79 = vcmp.ge.f32.partialorder %v63, 0.0
  %vm80 = vcmp.ge.f32.partialorder %v64, 0.0
  %vm81 = vcmp.ge.f32.partialorder %v65, 0.0
  %vm82 = vcmp.ge.f32.partialorder %v66, 0.0
  %vm83 = vcmp.ge.f32.partialorder %v67, 0.0
  %vm84 = vcmp.ge.f32.partialorder %v68, 0.0
  %vm85 = vcmp.ge.f32.partialorder %v69, 0.0
  %vm86 = vcmp.ge.f32.partialorder %v70, 0.0
  %vm87 = vcmp.ge.f32.partialorder %v71, 0.0
  %vm88 = vcmp.ge.f32.partialorder %v72, 0.0
  %vm89 = vcmp.ge.f32.partialorder %v73, 0.0
  %vm90 = vcmp.ge.f32.partialorder %v74, 0.0
  %vm91 = vcmp.ge.f32.partialorder %v75, 0.0
  %v92 = vmul.f32 %v60, 0.2
  %v93 = vmul.f32 %v61, 0.2
  %v94 = vmul.f32 %v62, 0.2
  %v95 = vmul.f32 %v63, 0.2
  %v96 = vmul.f32 %v64, 0.2
  %v97 = vmul.f32 %v65, 0.2
  %v98 = vmul.f32 %v66, 0.2
  %v99 = vmul.f32 %v67, 0.2
  %v100 = vmul.f32 %v68, 0.2
  %v101 = vmul.f32 %v69, 0.2
  %v102 = vmul.f32 %v70, 0.2
  %v103 = vmul.f32 %v71, 0.2
  %v104 = vmul.f32 %v72, 0.2
  %v105 = vmul.f32 %v73, 0.2
  %v106 = vmul.f32 %v74, 0.2
  %v107 = vmul.f32 %v75, 0.2
  %v108 = vsel %vm76, %v60, %v92
  %v109 = vsel %vm77, %v61, %v93
  %v110 = vsel %vm78, %v62, %v94
  %v111 = vsel %vm79, %v63, %v95
  %v112 = vsel %vm80, %v64, %v96
  %v113 = vsel %vm81, %v65, %v97
  %v114 = vsel %vm82, %v66, %v98
  %v115 = vsel %vm83, %v67, %v99
  %v116 = vsel %vm84, %v68, %v100
  %v117 = vsel %vm85, %v69, %v101
  %v118 = vsel %vm86, %v70, %v102
  %v119 = vsel %vm87, %v71, %v103
  %v120 = vsel %vm88, %v72, %v104
  %v121 = vsel %vm89, %v73, %v105
  %v122 = vsel %vm90, %v74, %v106
  %v123 = vsel %vm91, %v75, %v107
  %vm124 = vcmask 130048
  %125 = vst.msk [vmem:[%s3] sm:$0xff] %vm124, %v108
  %126 = vst.msk [vmem:[%s3 + $0x8] sm:$0xff] %vm124, %v109
  %127 = vst.msk [vmem:[%s3 + $0x10] sm:$0xff] %vm124, %v110
  %128 = vst.msk [vmem:[%s3 + $0x18] sm:$0xff] %vm124, %v111
  %129 = vst.msk [vmem:[%s3 + $0x20] sm:$0xff] %vm124, %v112
  %130 = vst.msk [vmem:[%s3 + $0x28] sm:$0xff] %vm124, %v113
  %131 = vst.msk [vmem:[%s3 + $0x30] sm:$0xff] %vm124, %v114
  %132 = vst.msk [vmem:[%s3 + $0x38] sm:$0xff] %vm124, %v115
  %133 = vst.msk [vmem:[%s3 + $0x40] sm:$0xff] %vm124, %v116
  %134 = vst.msk [vmem:[%s3 + $0x48] sm:$0xff] %vm124, %v117
  %135 = vst.msk [vmem:[%s3 + $0x50] sm:$0xff] %vm124, %v118
  %136 = vst.msk [vmem:[%s3 + $0x58] sm:$0xff] %vm124, %v119
  %137 = vst.msk [vmem:[%s3 + $0x60] sm:$0xff] %vm124, %v120
  %138 = vst.msk [vmem:[%s3 + $0x68] sm:$0xff] %vm124, %v121
  %139 = vst.msk [vmem:[%s3 + $0x70] sm:$0xff] %vm124, %v122
  %140 = vst.msk [vmem:[%s3 + $0x78] sm:$0xff] %vm124, %v123
  // Predicated region
  $region14: #{generator_forward.20} parent=0 // pred_check
    _
  $region15: #{generator_forward.20} parent=0 // pred_check_branch
    %142 = sbr.rel (0) target = $region17
  $region16: #{generator_forward.20} parent=0 // pred_region
    _
  $region17: #{generator_forward.20} parent=0 // pred_fallthru
    _
  // Predicated region
  $region18: #{generator_forward.20} parent=0 // pred_check
    _
  $region19: #{generator_forward.20} parent=0 // pred_check_branch
    %144 = sbr.rel (0) target = $region21
  $region20: #{generator_forward.20} parent=0 // pred_region
    _
  $region21: #{generator_forward.20} parent=0 // pred_fallthru
    _

// kernel: generator_forward.21
$region0: #{generator_forward.21}
  #allocation0 [shape = 'u32[]', space=smem, size = 0x4, offset = 0x4, fixed_abs, tag = 'smem constant byte address 0x4 - core index']
  #allocation1 [shape = 'u32[144,128]{1,0:T(1,128)}', space=vmem, size = 0x12000, scoped, tag = 'internal scratch']
  #allocation2 [shape = 'f32[128,128]{1,0:T(8,128)}', space=vmem, size = 0x10000, scoped, tag = 'scratch operand']
  %s0 = inlined_call_operand.vmem [shape: bf16[128,128], index: 0, kind: input, shape index: {}]
  %s1 = inlined_call_operand.vmem [shape: bf16[128,128], index: 1, kind: input, shape index: {}]
  %s2 = inlined_call_operand.vmem [shape: f32[128,128], index: 2, kind: output, shape index: {}]
  %s3 = sld [smem:[#allocation0]]
  $region26: #{generator_forward.21} parent=0
    _
  %s5 = ssub.s32 1, %s3
  %s6 = scalar_select 0, %s5, %s3
  // Predicated region
  $region2: #{generator_forward.21} parent=0 // pred_check
    _
  $region3: #{generator_forward.21} parent=0 // pred_check_branch
    %8 = sbr.rel (0) target = $region5
  $region4: #{generator_forward.21} parent=0 // pred_region
    _
  $region5: #{generator_forward.21} parent=0 // pred_fallthru
    _
  // Predicated region
  $region6: #{generator_forward.21} parent=0 // pred_check
    _
  $region7: #{generator_forward.21} parent=0 // pred_check_branch
    %10 = sbr.rel (0) target = $region9
  $region8: #{generator_forward.21} parent=0 // pred_region
    _
  $region9: #{generator_forward.21} parent=0 // pred_fallthru
    _
  %p12 = scmp.eq.s32.totalorder 0, 0
  // Predicated region
  $region10: #{generator_forward.21} parent=0 // pred_check
    %p13 = pneg %p12
  $region11: #{generator_forward.21} parent=0 // pred_check_branch
    %15 = sbr.rel (%p13) target = $region13
  $region12: #{generator_forward.21} parent=0 // pred_region
    %16 = vst [vmem:[#allocation2] sm:$0xff] 0.0
    %17 = vst [vmem:[#allocation2 + $0x8] sm:$0xff] 0.0
    %18 = vst [vmem:[#allocation2 + $0x10] sm:$0xff] 0.0
    %19 = vst [vmem:[#allocation2 + $0x18] sm:$0xff] 0.0
    %20 = vst [vmem:[#allocation2 + $0x20] sm:$0xff] 0.0
    %21 = vst [vmem:[#allocation2 + $0x28] sm:$0xff] 0.0
    %22 = vst [vmem:[#allocation2 + $0x30] sm:$0xff] 0.0
    %23 = vst [vmem:[#allocation2 + $0x38] sm:$0xff] 0.0
    %24 = vst [vmem:[#allocation2 + $0x40] sm:$0xff] 0.0
    %25 = vst [vmem:[#allocation2 + $0x48] sm:$0xff] 0.0
    %26 = vst [vmem:[#allocation2 + $0x50] sm:$0xff] 0.0
    %27 = vst [vmem:[#allocation2 + $0x58] sm:$0xff] 0.0
    %28 = vst [vmem:[#allocation2 + $0x60] sm:$0xff] 0.0
    %29 = vst [vmem:[#allocation2 + $0x68] sm:$0xff] 0.0
    %30 = vst [vmem:[#allocation2 + $0x70] sm:$0xff] 0.0
    %31 = vst [vmem:[#allocation2 + $0x78] sm:$0xff] 0.0
  $region13: #{generator_forward.21} parent=0 // pred_fallthru
    _
  %v32 = vld [vmem:[#allocation2] sm:$0xff]
  %v33 = vld [vmem:[#allocation2 + $0x8] sm:$0xff]
  %v34 = vld [vmem:[#allocation2 + $0x10] sm:$0xff]
  %v35 = vld [vmem:[#allocation2 + $0x18] sm:$0xff]
  %v36 = vld [vmem:[#allocation2 + $0x20] sm:$0xff]
  %v37 = vld [vmem:[#allocation2 + $0x28] sm:$0xff]
  %v38 = vld [vmem:[#allocation2 + $0x30] sm:$0xff]
  %v39 = vld [vmem:[#allocation2 + $0x38] sm:$0xff]
  %v40 = vld [vmem:[#allocation2 + $0x40] sm:$0xff]
  %v41 = vld [vmem:[#allocation2 + $0x48] sm:$0xff]
  %v42 = vld [vmem:[#allocation2 + $0x50] sm:$0xff]
  %v43 = vld [vmem:[#allocation2 + $0x58] sm:$0xff]
  %v44 = vld [vmem:[#allocation2 + $0x60] sm:$0xff]
  %v45 = vld [vmem:[#allocation2 + $0x68] sm:$0xff]
  %v46 = vld [vmem:[#allocation2 + $0x70] sm:$0xff]
  %v47 = vld [vmem:[#allocation2 + $0x78] sm:$0xff]
  %v48 = vld [vmem:[%s0] sm:$0xf]
  %v49 = vld [vmem:[%s0 + $0x4] sm:$0xf]
  %v50 = vld [vmem:[%s0 + $0x8] sm:$0xf]
  %v51 = vld [vmem:[%s0 + $0xc] sm:$0xf]
  %v52 = vld [vmem:[%s0 + $0x10] sm:$0xf]
  %v53 = vld [vmem:[%s0 + $0x14] sm:$0xf]
  %v54 = vld [vmem:[%s0 + $0x18] sm:$0xf]
  %v55 = vld [vmem:[%s0 + $0x1c] sm:$0xf]
  %v56 = vld [vmem:[%s0 + $0x20] sm:$0xf]
  %v57 = vld [vmem:[%s0 + $0x24] sm:$0xf]
  %v58 = vld [vmem:[%s0 + $0x28] sm:$0xf]
  %v59 = vld [vmem:[%s0 + $0x2c] sm:$0xf]
  %v60 = vld [vmem:[%s0 + $0x30] sm:$0xf]
  %v61 = vld [vmem:[%s0 + $0x34] sm:$0xf]
  %v62 = vld [vmem:[%s0 + $0x38] sm:$0xf]
  %v63 = vld [vmem:[%s0 + $0x3c] sm:$0xf]
  %v64 = vld [vmem:[%s1] sm:$0xf]
  %v65 = vld [vmem:[%s1 + $0x4] sm:$0xf]
  %v66 = vld [vmem:[%s1 + $0x8] sm:$0xf]
  %v67 = vld [vmem:[%s1 + $0xc] sm:$0xf]
  %v68 = vld [vmem:[%s1 + $0x10] sm:$0xf]
  %v69 = vld [vmem:[%s1 + $0x14] sm:$0xf]
  %v70 = vld [vmem:[%s1 + $0x18] sm:$0xf]
  %v71 = vld [vmem:[%s1 + $0x1c] sm:$0xf]
  %v72 = vld [vmem:[%s1 + $0x20] sm:$0xf]
  %v73 = vld [vmem:[%s1 + $0x24] sm:$0xf]
  %v74 = vld [vmem:[%s1 + $0x28] sm:$0xf]
  %v75 = vld [vmem:[%s1 + $0x2c] sm:$0xf]
  %v76 = vld [vmem:[%s1 + $0x30] sm:$0xf]
  %v77 = vld [vmem:[%s1 + $0x34] sm:$0xf]
  %v78 = vld [vmem:[%s1 + $0x38] sm:$0xf]
  %v79 = vld [vmem:[%s1 + $0x3c] sm:$0xf]
  %v96 = vunpack.c.l.b16 %v48
  %v97 = vunpack.c.l.b16 %v49
  %v98 = vunpack.c.l.b16 %v50
  %v99 = vunpack.c.l.b16 %v51
  %v100 = vunpack.c.l.b16 %v52
  %v101 = vunpack.c.l.b16 %v53
  %v102 = vunpack.c.l.b16 %v54
  %v103 = vunpack.c.l.b16 %v55
  %v104 = vunpack.c.l.b16 %v56
  %v105 = vunpack.c.l.b16 %v57
  %v106 = vunpack.c.l.b16 %v58
  %v107 = vunpack.c.l.b16 %v59
  %v108 = vunpack.c.l.b16 %v60
  %v109 = vunpack.c.l.b16 %v61
  %v110 = vunpack.c.l.b16 %v62
  %v111 = vunpack.c.l.b16 %v63
  %v112 = vpack.c.b16 %v97, %v96
  %v113 = vpack.c.b16 %v99, %v98
  %v114 = vpack.c.b16 %v101, %v100
  %v115 = vpack.c.b16 %v103, %v102
  %v116 = vpack.c.b16 %v105, %v104
  %v117 = vpack.c.b16 %v107, %v106
  %v118 = vpack.c.b16 %v109, %v108
  %v119 = vpack.c.b16 %v111, %v110
  %v144 = vunpack.c.l.b16 %v64
  %v145 = vunpack.c.l.b16 %v65
  %v146 = vunpack.c.l.b16 %v66
  %v147 = vunpack.c.l.b16 %v67
  %v148 = vunpack.c.l.b16 %v68
  %v149 = vunpack.c.l.b16 %v69
  %v150 = vunpack.c.l.b16 %v70
  %v151 = vunpack.c.l.b16 %v71
  %v152 = vunpack.c.l.b16 %v72
  %v153 = vunpack.c.l.b16 %v73
  %v154 = vunpack.c.l.b16 %v74
  %v155 = vunpack.c.l.b16 %v75
  %v156 = vunpack.c.l.b16 %v76
  %v157 = vunpack.c.l.b16 %v77
  %v158 = vunpack.c.l.b16 %v78
  %v159 = vunpack.c.l.b16 %v79
  %v160 = vpack.c.b16 %v145, %v144
  %v161 = vpack.c.b16 %v147, %v146
  %v162 = vpack.c.b16 %v149, %v148
  %v163 = vpack.c.b16 %v151, %v150
  %v164 = vpack.c.b16 %v153, %v152
  %v165 = vpack.c.b16 %v155, %v154
  %v166 = vpack.c.b16 %v157, %v156
  %v167 = vpack.c.b16 %v159, %v158
  %176 = vmatprep.subr.bf16.mxu0 0
  %177 = vmatpush1.bf16.msra.mxu0 %v160
  %178 = vmatprep.subr.bf16.mxu0 0
  %179 = vmatpush1.bf16.msra.mxu0 %v161
  %180 = vmatprep.subr.bf16.mxu0 0
  %181 = vmatpush1.bf16.msra.mxu0 %v162
  %182 = vmatprep.subr.bf16.mxu0 0
  %183 = vmatpush1.bf16.msra.mxu0 %v163
  %184 = vmatprep.subr.bf16.mxu0 0
  %185 = vmatpush1.bf16.msra.mxu0 %v164
  %186 = vmatprep.subr.bf16.mxu0 0
  %187 = vmatpush1.bf16.msra.mxu0 %v165
  %188 = vmatprep.subr.bf16.mxu0 0
  %189 = vmatpush1.bf16.msra.mxu0 %v166
  %190 = vmatprep.subr.bf16.mxu0 0
  %191 = vmatpush1.bf16.msra.mxu0 %v167
  %192 = vmatprep.subr.bf16.mxu0 0
  %193 = vmatpush1.bf16.msra.mxu0 0
  %194 = vmatprep.subr.bf16.mxu0 0
  %195 = vmatpush1.bf16.msra.mxu0 0
  %196 = vmatprep.subr.bf16.mxu0 0
  %197 = vmatpush1.bf16.msra.mxu0 0
  %198 = vmatprep.subr.bf16.mxu0 0
  %199 = vmatpush1.bf16.msra.mxu0 0
  %200 = vmatprep.subr.bf16.mxu0 0
  %201 = vmatpush1.bf16.msra.mxu0 0
  %202 = vmatprep.subr.bf16.mxu0 0
  %203 = vmatpush1.bf16.msra.mxu0 0
  %204 = vmatprep.subr.bf16.mxu0 0
  %205 = vmatpush1.bf16.msra.mxu0 0
  %206 = vmatprep.subr.bf16.mxu0 0
  %207 = vmatpush1.bf16.msra.mxu0 0
  %208 = vmatprep.mubr.bf16.mxu0 0
  %209 = vmatmul.mubr.bf16.gmra.mrb[0].mxu0 %v112
  %v210 = vpop.f32.mrb[0].mxu0
  %v211 = vadd.f32 0.0, %v210
  %v212 = vpop.f32.mrb[0].mxu0
  %v213 = vpop.f32.mrb[0].mxu0
  %v214 = vadd.f32 0.0, %v213
  %v215 = vpop.f32.mrb[0].mxu0
  %216 = vmatprep.mubr.bf16.mxu0 0
  %217 = vmatmul.mubr.bf16.gmra.mrb[0].mxu0 %v113
  %v218 = vpop.f32.mrb[0].mxu0
  %v219 = vadd.f32 0.0, %v218
  %v220 = vpop.f32.mrb[0].mxu0
  %v221 = vpop.f32.mrb[0].mxu0
  %v222 = vadd.f32 0.0, %v221
  %v223 = vpop.f32.mrb[0].mxu0
  %224 = vmatprep.mubr.bf16.mxu0 0
  %225 = vmatmul.mubr.bf16.gmra.mrb[0].mxu0 %v114
  %v226 = vpop.f32.mrb[0].mxu0
  %v227 = vadd.f32 0.0, %v226
  %v228 = vpop.f32.mrb[0].mxu0
  %v229 = vpop.f32.mrb[0].mxu0
  %v230 = vadd.f32 0.0, %v229
  %v231 = vpop.f32.mrb[0].mxu0
  %232 = vmatprep.mubr.bf16.mxu0 0
  %233 = vmatmul.mubr.bf16.gmra.mrb[0].mxu0 %v115
  %v234 = vpop.f32.mrb[0].mxu0
  %v235 = vadd.f32 0.0, %v234
  %v236 = vpop.f32.mrb[0].mxu0
  %v237 = vpop.f32.mrb[0].mxu0
  %v238 = vadd.f32 0.0, %v237
  %v239 = vpop.f32.mrb[0].mxu0
  %240 = vmatprep.mubr.bf16.mxu0 0
  %241 = vmatmul.mubr.bf16.gmra.mrb[0].mxu0 %v116
  %v242 = vpop.f32.mrb[0].mxu0
  %v243 = vadd.f32 0.0, %v242
  %v244 = vpop.f32.mrb[0].mxu0
  %v245 = vpop.f32.mrb[0].mxu0
  %v246 = vadd.f32 0.0, %v245
  %v247 = vpop.f32.mrb[0].mxu0
  %248 = vmatprep.mubr.bf16.mxu0 0
  %249 = vmatmul.mubr.bf16.gmra.mrb[0].mxu0 %v117
  %v250 = vpop.f32.mrb[0].mxu0
  %v251 = vadd.f32 0.0, %v250
  %v252 = vpop.f32.mrb[0].mxu0
  %v253 = vpop.f32.mrb[0].mxu0
  %v254 = vadd.f32 0.0, %v253
  %v255 = vpop.f32.mrb[0].mxu0
  %256 = vmatprep.mubr.bf16.mxu0 0
  %257 = vmatmul.mubr.bf16.gmra.mrb[0].mxu0 %v118
  %v258 = vpop.f32.mrb[0].mxu0
  %v259 = vadd.f32 0.0, %v258
  %v260 = vpop.f32.mrb[0].mxu0
  %v261 = vpop.f32.mrb[0].mxu0
  %v262 = vadd.f32 0.0, %v261
  %v263 = vpop.f32.mrb[0].mxu0
  %264 = vmatprep.mubr.bf16.mxu0 0
  %265 = vmatmul.mubr.bf16.gmra.mrb[0].mxu0 %v119
  %v266 = vpop.f32.mrb[0].mxu0
  %v267 = vadd.f32 0.0, %v266
  %v268 = vpop.f32.mrb[0].mxu0
  %v269 = vpop.f32.mrb[0].mxu0
  %v270 = vadd.f32 0.0, %v269
  %v271 = vpop.f32.mrb[0].mxu0
  %272 = vdwg.mxu0
  %v273 = vadd.f32 %v32, %v211
  %v274 = vadd.f32 %v33, %v214
  %v275 = vadd.f32 %v34, %v219
  %v276 = vadd.f32 %v35, %v222
  %v277 = vadd.f32 %v36, %v227
  %v278 = vadd.f32 %v37, %v230
  %v279 = vadd.f32 %v38, %v235
  %v280 = vadd.f32 %v39, %v238
  %v281 = vadd.f32 %v40, %v243
  %v282 = vadd.f32 %v41, %v246
  %v283 = vadd.f32 %v42, %v251
  %v284 = vadd.f32 %v43, %v254
  %v285 = vadd.f32 %v44, %v259
  %v286 = vadd.f32 %v45, %v262
  %v287 = vadd.f32 %v46, %v267
  %v288 = vadd.f32 %v47, %v270
  %289 = vst [vmem:[#allocation2] sm:$0xff] %v273
  %290 = vst [vmem:[#allocation2 + $0x8] sm:$0xff] %v274
  %291 = vst [vmem:[#allocation2 + $0x10] sm:$0xff] %v275
  %292 = vst [vmem:[#allocation2 + $0x18] sm:$0xff] %v276
  %293 = vst [vmem:[#allocation2 + $0x20] sm:$0xff] %v277
  %294 = vst [vmem:[#allocation2 + $0x28] sm:$0xff] %v278
  %295 = vst [vmem:[#allocation2 + $0x30] sm:$0xff] %v279
  %296 = vst [vmem:[#allocation2 + $0x38] sm:$0xff] %v280
  %297 = vst [vmem:[#allocation2 + $0x40] sm:$0xff] %v281
  %298 = vst [vmem:[#allocation2 + $0x48] sm:$0xff] %v282
  %299 = vst [vmem:[#allocation2 + $0x50] sm:$0xff] %v283
  %300 = vst [vmem:[#allocation2 + $0x58] sm:$0xff] %v284
  %301 = vst [vmem:[#allocation2 + $0x60] sm:$0xff] %v285
  %302 = vst [vmem:[#allocation2 + $0x68] sm:$0xff] %v286
  %303 = vst [vmem:[#allocation2 + $0x70] sm:$0xff] %v287
  %304 = vst [vmem:[#allocation2 + $0x78] sm:$0xff] %v288
  // Predicated region
  $region14: #{generator_forward.21} parent=0 // pred_check
    %p305 = pneg %p12
  $region15: #{generator_forward.21} parent=0 // pred_check_branch
    %307 = sbr.rel (%p305) target = $region17
  $region16: #{generator_forward.21} parent=0 // pred_region
    %v308 = vld [vmem:[#allocation2] sm:$0xff]
    %v309 = vld [vmem:[#allocation2 + $0x8] sm:$0xff]
    %v310 = vld [vmem:[#allocation2 + $0x10] sm:$0xff]
    %v311 = vld [vmem:[#allocation2 + $0x18] sm:$0xff]
    %v312 = vld [vmem:[#allocation2 + $0x20] sm:$0xff]
    %v313 = vld [vmem:[#allocation2 + $0x28] sm:$0xff]
    %v314 = vld [vmem:[#allocation2 + $0x30] sm:$0xff]
    %v315 = vld [vmem:[#allocation2 + $0x38] sm:$0xff]
    %v316 = vld [vmem:[#allocation2 + $0x40] sm:$0xff]
    %v317 = vld [vmem:[#allocation2 + $0x48] sm:$0xff]
    %v318 = vld [vmem:[#allocation2 + $0x50] sm:$0xff]
    %v319 = vld [vmem:[#allocation2 + $0x58] sm:$0xff]
    %v320 = vld [vmem:[#allocation2 + $0x60] sm:$0xff]
    %v321 = vld [vmem:[#allocation2 + $0x68] sm:$0xff]
    %v322 = vld [vmem:[#allocation2 + $0x70] sm:$0xff]
    %v323 = vld [vmem:[#allocation2 + $0x78] sm:$0xff]
    %324 = vst [vmem:[%s2] sm:$0xff] %v308
    %325 = vst [vmem:[%s2 + $0x8] sm:$0xff] %v309
    %326 = vst [vmem:[%s2 + $0x10] sm:$0xff] %v310
    %327 = vst [vmem:[%s2 + $0x18] sm:$0xff] %v311
    %328 = vst [vmem:[%s2 + $0x20] sm:$0xff] %v312
    %329 = vst [vmem:[%s2 + $0x28] sm:$0xff] %v313
    %330 = vst [vmem:[%s2 + $0x30] sm:$0xff] %v314
    %331 = vst [vmem:[%s2 + $0x38] sm:$0xff] %v315
    %332 = vst [vmem:[%s2 + $0x40] sm:$0xff] %v316
    %333 = vst [vmem:[%s2 + $0x48] sm:$0xff] %v317
    %334 = vst [vmem:[%s2 + $0x50] sm:$0xff] %v318
    %335 = vst [vmem:[%s2 + $0x58] sm:$0xff] %v319
    %336 = vst [vmem:[%s2 + $0x60] sm:$0xff] %v320
    %337 = vst [vmem:[%s2 + $0x68] sm:$0xff] %v321
    %338 = vst [vmem:[%s2 + $0x70] sm:$0xff] %v322
    %339 = vst [vmem:[%s2 + $0x78] sm:$0xff] %v323
  $region17: #{generator_forward.21} parent=0 // pred_fallthru
    _
  // Predicated region
  $region18: #{generator_forward.21} parent=0 // pred_check
    _
  $region19: #{generator_forward.21} parent=0 // pred_check_branch
    %341 = sbr.rel (0) target = $region21
  $region20: #{generator_forward.21} parent=0 // pred_region
    _
  $region21: #{generator_forward.21} parent=0 // pred_fallthru
    _
  // Predicated region
  $region22: #{generator_forward.21} parent=0 // pred_check
    _
  $region23: #{generator_forward.21} parent=0 // pred_check_branch
    %343 = sbr.rel (0) target = $region25
  $region24: #{generator_forward.21} parent=0 // pred_region
    _
  $region25: #{generator_forward.21} parent=0 // pred_fallthru
    _

// kernel: generator_forward.25
$region0: #{generator_forward.25}
  #allocation0 [shape = 'u32[]', space=smem, size = 0x4, offset = 0x4, fixed_abs, tag = 'smem constant byte address 0x4 - core index']
  #allocation1 [shape = 'u32[144,128]{1,0:T(1,128)}', space=vmem, size = 0x12000, scoped, tag = 'internal scratch']
  #allocation2 [shape = 'f32[1,8]{1,0:T(1,128)}', space=vmem, size = 0x200, scoped, tag = 'scratch operand']
  #allocation3 [shape = 'f32[1,8]{1,0:T(1,128)}', space=vmem, size = 0x200, scoped, tag = 'scratch operand']
  %s0 = inlined_call_operand.vmem [shape: f32[512,8], index: 0, kind: input, shape index: {}]
  %s1 = inlined_call_operand.vmem [shape: f32[1,8], index: 1, kind: output, shape index: {0}]
  %s2 = inlined_call_operand.vmem [shape: f32[1,8], index: 2, kind: output, shape index: {1}]
  %3 = xla_tuple %s1, %s2
  %s4 = sld [smem:[#allocation0]]
  $region30: #{generator_forward.25} parent=0
    _
  %s6 = ssub.s32 1, %s4
  %s7 = scalar_select 0, %s6, %s4
  // Predicated region
  $region2: #{generator_forward.25} parent=0 // pred_check
    _
  $region3: #{generator_forward.25} parent=0 // pred_check_branch
    %9 = sbr.rel (0) target = $region5
  $region4: #{generator_forward.25} parent=0 // pred_region
    _
  $region5: #{generator_forward.25} parent=0 // pred_fallthru
    _
  %p10 = scmp.eq.s32.totalorder 0, 0
  // Predicated region
  $region6: #{generator_forward.25} parent=0 // pred_check
    %p11 = pneg %p10
  $region7: #{generator_forward.25} parent=0 // pred_check_branch
    %13 = sbr.rel (%p11) target = $region9
  $region8: #{generator_forward.25} parent=0 // pred_region
    %vm14 = vcmask 57344
    %15 = vst.msk [vmem:[#allocation2] sm:$0x1] %vm14, 0.0
    %16 = vst.msk [vmem:[#allocation3] sm:$0x1] %vm14, 0.0
  $region9: #{generator_forward.25} parent=0 // pred_fallthru
    _
  %v17 = vld [vmem:[%s0] sm:$0xff]
  %v18 = vld [vmem:[%s0 + $0x8] sm:$0xff]
  %v19 = vld [vmem:[%s0 + $0x10] sm:$0xff]
  %v20 = vld [vmem:[%s0 + $0x18] sm:$0xff]
  %v21 = vld [vmem:[%s0 + $0x20] sm:$0xff]
  %v22 = vld [vmem:[%s0 + $0x28] sm:$0xff]
  %v23 = vld [vmem:[%s0 + $0x30] sm:$0xff]
  %v24 = vld [vmem:[%s0 + $0x38] sm:$0xff]
  %v25 = vld [vmem:[%s0 + $0x40] sm:$0xff]
  %v26 = vld [vmem:[%s0 + $0x48] sm:$0xff]
  %v27 = vld [vmem:[%s0 + $0x50] sm:$0xff]
  %v28 = vld [vmem:[%s0 + $0x58] sm:$0xff]
  %v29 = vld [vmem:[%s0 + $0x60] sm:$0xff]
  %v30 = vld [vmem:[%s0 + $0x68] sm:$0xff]
  %v31 = vld [vmem:[%s0 + $0x70] sm:$0xff]
  %v32 = vld [vmem:[%s0 + $0x78] sm:$0xff]
  %v33 = vld [vmem:[%s0 + $0x80] sm:$0xff]
  %v34 = vld [vmem:[%s0 + $0x88] sm:$0xff]
  %v35 = vld [vmem:[%s0 + $0x90] sm:$0xff]
  %v36 = vld [vmem:[%s0 + $0x98] sm:$0xff]
  %v37 = vld [vmem:[%s0 + $0xa0] sm:$0xff]
  %v38 = vld [vmem:[%s0 + $0xa8] sm:$0xff]
  %v39 = vld [vmem:[%s0 + $0xb0] sm:$0xff]
  %v40 = vld [vmem:[%s0 + $0xb8] sm:$0xff]
  %v41 = vld [vmem:[%s0 + $0xc0] sm:$0xff]
  %v42 = vld [vmem:[%s0 + $0xc8] sm:$0xff]
  %v43 = vld [vmem:[%s0 + $0xd0] sm:$0xff]
  %v44 = vld [vmem:[%s0 + $0xd8] sm:$0xff]
  %v45 = vld [vmem:[%s0 + $0xe0] sm:$0xff]
  %v46 = vld [vmem:[%s0 + $0xe8] sm:$0xff]
  %v47 = vld [vmem:[%s0 + $0xf0] sm:$0xff]
  %v48 = vld [vmem:[%s0 + $0xf8] sm:$0xff]
  %v49 = vld [vmem:[%s0 + $0x100] sm:$0xff]
  %v50 = vld [vmem:[%s0 + $0x108] sm:$0xff]
  %v51 = vld [vmem:[%s0 + $0x110] sm:$0xff]
  %v52 = vld [vmem:[%s0 + $0x118] sm:$0xff]
  %v53 = vld [vmem:[%s0 + $0x120] sm:$0xff]
  %v54 = vld [vmem:[%s0 + $0x128] sm:$0xff]
  %v55 = vld [vmem:[%s0 + $0x130] sm:$0xff]
  %v56 = vld [vmem:[%s0 + $0x138] sm:$0xff]
  %v57 = vld [vmem:[%s0 + $0x140] sm:$0xff]
  %v58 = vld [vmem:[%s0 + $0x148] sm:$0xff]
  %v59 = vld [vmem:[%s0 + $0x150] sm:$0xff]
  %v60 = vld [vmem:[%s0 + $0x158] sm:$0xff]
  %v61 = vld [vmem:[%s0 + $0x160] sm:$0xff]
  %v62 = vld [vmem:[%s0 + $0x168] sm:$0xff]
  %v63 = vld [vmem:[%s0 + $0x170] sm:$0xff]
  %v64 = vld [vmem:[%s0 + $0x178] sm:$0xff]
  %v65 = vld [vmem:[%s0 + $0x180] sm:$0xff]
  %v66 = vld [vmem:[%s0 + $0x188] sm:$0xff]
  %v67 = vld [vmem:[%s0 + $0x190] sm:$0xff]
  %v68 = vld [vmem:[%s0 + $0x198] sm:$0xff]
  %v69 = vld [vmem:[%s0 + $0x1a0] sm:$0xff]
  %v70 = vld [vmem:[%s0 + $0x1a8] sm:$0xff]
  %v71 = vld [vmem:[%s0 + $0x1b0] sm:$0xff]
  %v72 = vld [vmem:[%s0 + $0x1b8] sm:$0xff]
  %v73 = vld [vmem:[%s0 + $0x1c0] sm:$0xff]
  %v74 = vld [vmem:[%s0 + $0x1c8] sm:$0xff]
  %v75 = vld [vmem:[%s0 + $0x1d0] sm:$0xff]
  %v76 = vld [vmem:[%s0 + $0x1d8] sm:$0xff]
  %v77 = vld [vmem:[%s0 + $0x1e0] sm:$0xff]
  %v78 = vld [vmem:[%s0 + $0x1e8] sm:$0xff]
  %v79 = vld [vmem:[%s0 + $0x1f0] sm:$0xff]
  %v80 = vld [vmem:[%s0 + $0x1f8] sm:$0xff]
  %v81 = vld [vmem:[#allocation2] sm:$0x1]
  %vm82 = vcmask 64512
  %v83 = vsel %vm82, %v17, 0.0
  %v84 = vsel %vm82, %v18, 0.0
  %v85 = vadd.f32 %v83, %v84
  %v86 = vsel %vm82, %v19, 0.0
  %v87 = vadd.f32 %v85, %v86
  %v88 = vsel %vm82, %v20, 0.0
  %v89 = vadd.f32 %v87, %v88
  %v90 = vsel %vm82, %v21, 0.0
  %v91 = vadd.f32 %v89, %v90
  %v92 = vsel %vm82, %v22, 0.0
  %v93 = vadd.f32 %v91, %v92
  %v94 = vsel %vm82, %v23, 0.0
  %v95 = vadd.f32 %v93, %v94
  %v96 = vsel %vm82, %v24, 0.0
  %v97 = vadd.f32 %v95, %v96
  %v98 = vsel %vm82, %v25, 0.0
  %v99 = vadd.f32 %v97, %v98
  %v100 = vsel %vm82, %v26, 0.0
  %v101 = vadd.f32 %v99, %v100
  %v102 = vsel %vm82, %v27, 0.0
  %v103 = vadd.f32 %v101, %v102
  %v104 = vsel %vm82, %v28, 0.0
  %v105 = vadd.f32 %v103, %v104
  %v106 = vsel %vm82, %v29, 0.0
  %v107 = vadd.f32 %v105, %v106
  %v108 = vsel %vm82, %v30, 0.0
  %v109 = vadd.f32 %v107, %v108
  %v110 = vsel %vm82, %v31, 0.0
  %v111 = vadd.f32 %v109, %v110
  %v112 = vsel %vm82, %v32, 0.0
  %v113 = vadd.f32 %v111, %v112
  %v114 = vsel %vm82, %v33, 0.0
  %v115 = vadd.f32 %v113, %v114
  %v116 = vsel %vm82, %v34, 0.0
  %v117 = vadd.f32 %v115, %v116
  %v118 = vsel %vm82, %v35, 0.0
  %v119 = vadd.f32 %v117, %v118
  %v120 = vsel %vm82, %v36, 0.0
  %v121 = vadd.f32 %v119, %v120
  %v122 = vsel %vm82, %v37, 0.0
  %v123 = vadd.f32 %v121, %v122
  %v124 = vsel %vm82, %v38, 0.0
  %v125 = vadd.f32 %v123, %v124
  %v126 = vsel %vm82, %v39, 0.0
  %v127 = vadd.f32 %v125, %v126
  %v128 = vsel %vm82, %v40, 0.0
  %v129 = vadd.f32 %v127, %v128
  %v130 = vsel %vm82, %v41, 0.0
  %v131 = vadd.f32 %v129, %v130
  %v132 = vsel %vm82, %v42, 0.0
  %v133 = vadd.f32 %v131, %v132
  %v134 = vsel %vm82, %v43, 0.0
  %v135 = vadd.f32 %v133, %v134
  %v136 = vsel %vm82, %v44, 0.0
  %v137 = vadd.f32 %v135, %v136
  %v138 = vsel %vm82, %v45, 0.0
  %v139 = vadd.f32 %v137, %v138
  %v140 = vsel %vm82, %v46, 0.0
  %v141 = vadd.f32 %v139, %v140
  %v142 = vsel %vm82, %v47, 0.0
  %v143 = vadd.f32 %v141, %v142
  %v144 = vsel %vm82, %v48, 0.0
  %v145 = vadd.f32 %v143, %v144
  %v146 = vsel %vm82, %v49, 0.0
  %v147 = vadd.f32 %v145, %v146
  %v148 = vsel %vm82, %v50, 0.0
  %v149 = vadd.f32 %v147, %v148
  %v150 = vsel %vm82, %v51, 0.0
  %v151 = vadd.f32 %v149, %v150
  %v152 = vsel %vm82, %v52, 0.0
  %v153 = vadd.f32 %v151, %v152
  %v154 = vsel %vm82, %v53, 0.0
  %v155 = vadd.f32 %v153, %v154
  %v156 = vsel %vm82, %v54, 0.0
  %v157 = vadd.f32 %v155, %v156
  %v158 = vsel %vm82, %v55, 0.0
  %v159 = vadd.f32 %v157, %v158
  %v160 = vsel %vm82, %v56, 0.0
  %v161 = vadd.f32 %v159, %v160
  %v162 = vsel %vm82, %v57, 0.0
  %v163 = vadd.f32 %v161, %v162
  %v164 = vsel %vm82, %v58, 0.0
  %v165 = vadd.f32 %v163, %v164
  %v166 = vsel %vm82, %v59, 0.0
  %v167 = vadd.f32 %v165, %v166
  %v168 = vsel %vm82, %v60, 0.0
  %v169 = vadd.f32 %v167, %v168
  %v170 = vsel %vm82, %v61, 0.0
  %v171 = vadd.f32 %v169, %v170
  %v172 = vsel %vm82, %v62, 0.0
  %v173 = vadd.f32 %v171, %v172
  %v174 = vsel %vm82, %v63, 0.0
  %v175 = vadd.f32 %v173, %v174
  %v176 = vsel %vm82, %v64, 0.0
  %v177 = vadd.f32 %v175, %v176
  %v178 = vsel %vm82, %v65, 0.0
  %v179 = vadd.f32 %v177, %v178
  %v180 = vsel %vm82, %v66, 0.0
  %v181 = vadd.f32 %v179, %v180
  %v182 = vsel %vm82, %v67, 0.0
  %v183 = vadd.f32 %v181, %v182
  %v184 = vsel %vm82, %v68, 0.0
  %v185 = vadd.f32 %v183, %v184
  %v186 = vsel %vm82, %v69, 0.0
  %v187 = vadd.f32 %v185, %v186
  %v188 = vsel %vm82, %v70, 0.0
  %v189 = vadd.f32 %v187, %v188
  %v190 = vsel %vm82, %v71, 0.0
  %v191 = vadd.f32 %v189, %v190
  %v192 = vsel %vm82, %v72, 0.0
  %v193 = vadd.f32 %v191, %v192
  %v194 = vsel %vm82, %v73, 0.0
  %v195 = vadd.f32 %v193, %v194
  %v196 = vsel %vm82, %v74, 0.0
  %v197 = vadd.f32 %v195, %v196
  %v198 = vsel %vm82, %v75, 0.0
  %v199 = vadd.f32 %v197, %v198
  %v200 = vsel %vm82, %v76, 0.0
  %v201 = vadd.f32 %v199, %v200
  %v202 = vsel %vm82, %v77, 0.0
  %v203 = vadd.f32 %v201, %v202
  %v204 = vsel %vm82, %v78, 0.0
  %v205 = vadd.f32 %v203, %v204
  %v206 = vsel %vm82, %v79, 0.0
  %v207 = vadd.f32 %v205, %v206
  %v208 = vsel %vm82, %v80, 0.0
  %v209 = vadd.f32 %v207, %v208
  %v210 = vrot.slane %v209, 4
  %v211 = vadd.f32 %v209, %v210
  %v212 = vrot.slane %v211, 2
  %v213 = vadd.f32 %v211, %v212
  %v214 = vrot.slane %v213, 1
  %v215 = vadd.f32 %v213, %v214
  %v216 = vadd.f32 %v81, %v215
  %vm217 = vcmask 57344
  %218 = vst.msk [vmem:[#allocation2] sm:$0x1] %vm217, %v216
  %v219 = vld [vmem:[#allocation3] sm:$0x1]
  %v220 = vmul.f32 %v17, %v17
  %v221 = vmul.f32 %v18, %v18
  %v222 = vmul.f32 %v19, %v19
  %v223 = vmul.f32 %v20, %v20
  %v224 = vmul.f32 %v21, %v21
  %v225 = vmul.f32 %v22, %v22
  %v226 = vmul.f32 %v23, %v23
  %v227 = vmul.f32 %v24, %v24
  %v228 = vmul.f32 %v25, %v25
  %v229 = vmul.f32 %v26, %v26
  %v230 = vmul.f32 %v27, %v27
  %v231 = vmul.f32 %v28, %v28
  %v232 = vmul.f32 %v29, %v29
  %v233 = vmul.f32 %v30, %v30
  %v234 = vmul.f32 %v31, %v31
  %v235 = vmul.f32 %v32, %v32
  %v236 = vmul.f32 %v33, %v33
  %v237 = vmul.f32 %v34, %v34
  %v238 = vmul.f32 %v35, %v35
  %v239 = vmul.f32 %v36, %v36
  %v240 = vmul.f32 %v37, %v37
  %v241 = vmul.f32 %v38, %v38
  %v242 = vmul.f32 %v39, %v39
  %v243 = vmul.f32 %v40, %v40
  %v244 = vmul.f32 %v41, %v41
  %v245 = vmul.f32 %v42, %v42
  %v246 = vmul.f32 %v43, %v43
  %v247 = vmul.f32 %v44, %v44
  %v248 = vmul.f32 %v45, %v45
  %v249 = vmul.f32 %v46, %v46
  %v250 = vmul.f32 %v47, %v47
  %v251 = vmul.f32 %v48, %v48
  %v252 = vmul.f32 %v49, %v49
  %v253 = vmul.f32 %v50, %v50
  %v254 = vmul.f32 %v51, %v51
  %v255 = vmul.f32 %v52, %v52
  %v256 = vmul.f32 %v53, %v53
  %v257 = vmul.f32 %v54, %v54
  %v258 = vmul.f32 %v55, %v55
  %v259 = vmul.f32 %v56, %v56
  %v260 = vmul.f32 %v57, %v57
  %v261 = vmul.f32 %v58, %v58
  %v262 = vmul.f32 %v59, %v59
  %v263 = vmul.f32 %v60, %v60
  %v264 = vmul.f32 %v61, %v61
  %v265 = vmul.f32 %v62, %v62
  %v266 = vmul.f32 %v63, %v63
  %v267 = vmul.f32 %v64, %v64
  %v268 = vmul.f32 %v65, %v65
  %v269 = vmul.f32 %v66, %v66
  %v270 = vmul.f32 %v67, %v67
  %v271 = vmul.f32 %v68, %v68
  %v272 = vmul.f32 %v69, %v69
  %v273 = vmul.f32 %v70, %v70
  %v274 = vmul.f32 %v71, %v71
  %v275 = vmul.f32 %v72, %v72
  %v276 = vmul.f32 %v73, %v73
  %v277 = vmul.f32 %v74, %v74
  %v278 = vmul.f32 %v75, %v75
  %v279 = vmul.f32 %v76, %v76
  %v280 = vmul.f32 %v77, %v77
  %v281 = vmul.f32 %v78, %v78
  %v282 = vmul.f32 %v79, %v79
  %v283 = vmul.f32 %v80, %v80
  %v284 = vsel %vm82, %v220, 0.0
  %v285 = vsel %vm82, %v221, 0.0
  %v286 = vadd.f32 %v284, %v285
  %v287 = vsel %vm82, %v222, 0.0
  %v288 = vadd.f32 %v286, %v287
  %v289 = vsel %vm82, %v223, 0.0
  %v290 = vadd.f32 %v288, %v289
  %v291 = vsel %vm82, %v224, 0.0
  %v292 = vadd.f32 %v290, %v291
  %v293 = vsel %vm82, %v225, 0.0
  %v294 = vadd.f32 %v292, %v293
  %v295 = vsel %vm82, %v226, 0.0
  %v296 = vadd.f32 %v294, %v295
  %v297 = vsel %vm82, %v227, 0.0
  %v298 = vadd.f32 %v296, %v297
  %v299 = vsel %vm82, %v228, 0.0
  %v300 = vadd.f32 %v298, %v299
  %v301 = vsel %vm82, %v229, 0.0
  %v302 = vadd.f32 %v300, %v301
  %v303 = vsel %vm82, %v230, 0.0
  %v304 = vadd.f32 %v302, %v303
  %v305 = vsel %vm82, %v231, 0.0
  %v306 = vadd.f32 %v304, %v305
  %v307 = vsel %vm82, %v232, 0.0
  %v308 = vadd.f32 %v306, %v307
  %v309 = vsel %vm82, %v233, 0.0
  %v310 = vadd.f32 %v308, %v309
  %v311 = vsel %vm82, %v234, 0.0
  %v312 = vadd.f32 %v310, %v311
  %v313 = vsel %vm82, %v235, 0.0
  %v314 = vadd.f32 %v312, %v313
  %v315 = vsel %vm82, %v236, 0.0
  %v316 = vadd.f32 %v314, %v315
  %v317 = vsel %vm82, %v237, 0.0
  %v318 = vadd.f32 %v316, %v317
  %v319 = vsel %vm82, %v238, 0.0
  %v320 = vadd.f32 %v318, %v319
  %v321 = vsel %vm82, %v239, 0.0
  %v322 = vadd.f32 %v320, %v321
  %v323 = vsel %vm82, %v240, 0.0
  %v324 = vadd.f32 %v322, %v323
  %v325 = vsel %vm82, %v241, 0.0
  %v326 = vadd.f32 %v324, %v325
  %v327 = vsel %vm82, %v242, 0.0
  %v328 = vadd.f32 %v326, %v327
  %v329 = vsel %vm82, %v243, 0.0
  %v330 = vadd.f32 %v328, %v329
  %v331 = vsel %vm82, %v244, 0.0
  %v332 = vadd.f32 %v330, %v331
  %v333 = vsel %vm82, %v245, 0.0
  %v334 = vadd.f32 %v332, %v333
  %v335 = vsel %vm82, %v246, 0.0
  %v336 = vadd.f32 %v334, %v335
  %v337 = vsel %vm82, %v247, 0.0
  %v338 = vadd.f32 %v336, %v337
  %v339 = vsel %vm82, %v248, 0.0
  %v340 = vadd.f32 %v338, %v339
  %v341 = vsel %vm82, %v249, 0.0
  %v342 = vadd.f32 %v340, %v341
  %v343 = vsel %vm82, %v250, 0.0
  %v344 = vadd.f32 %v342, %v343
  %v345 = vsel %vm82, %v251, 0.0
  %v346 = vadd.f32 %v344, %v345
  %v347 = vsel %vm82, %v252, 0.0
  %v348 = vadd.f32 %v346, %v347
  %v349 = vsel %vm82, %v253, 0.0
  %v350 = vadd.f32 %v348, %v349
  %v351 = vsel %vm82, %v254, 0.0
  %v352 = vadd.f32 %v350, %v351
  %v353 = vsel %vm82, %v255, 0.0
  %v354 = vadd.f32 %v352, %v353
  %v355 = vsel %vm82, %v256, 0.0
  %v356 = vadd.f32 %v354, %v355
  %v357 = vsel %vm82, %v257, 0.0
  %v358 = vadd.f32 %v356, %v357
  %v359 = vsel %vm82, %v258, 0.0
  %v360 = vadd.f32 %v358, %v359
  %v361 = vsel %vm82, %v259, 0.0
  %v362 = vadd.f32 %v360, %v361
  %v363 = vsel %vm82, %v260, 0.0
  %v364 = vadd.f32 %v362, %v363
  %v365 = vsel %vm82, %v261, 0.0
  %v366 = vadd.f32 %v364, %v365
  %v367 = vsel %vm82, %v262, 0.0
  %v368 = vadd.f32 %v366, %v367
  %v369 = vsel %vm82, %v263, 0.0
  %v370 = vadd.f32 %v368, %v369
  %v371 = vsel %vm82, %v264, 0.0
  %v372 = vadd.f32 %v370, %v371
  %v373 = vsel %vm82, %v265, 0.0
  %v374 = vadd.f32 %v372, %v373
  %v375 = vsel %vm82, %v266, 0.0
  %v376 = vadd.f32 %v374, %v375
  %v377 = vsel %vm82, %v267, 0.0
  %v378 = vadd.f32 %v376, %v377
  %v379 = vsel %vm82, %v268, 0.0
  %v380 = vadd.f32 %v378, %v379
  %v381 = vsel %vm82, %v269, 0.0
  %v382 = vadd.f32 %v380, %v381
  %v383 = vsel %vm82, %v270, 0.0
  %v384 = vadd.f32 %v382, %v383
  %v385 = vsel %vm82, %v271, 0.0
  %v386 = vadd.f32 %v384, %v385
  %v387 = vsel %vm82, %v272, 0.0
  %v388 = vadd.f32 %v386, %v387
  %v389 = vsel %vm82, %v273, 0.0
  %v390 = vadd.f32 %v388, %v389
  %v391 = vsel %vm82, %v274, 0.0
  %v392 = vadd.f32 %v390, %v391
  %v393 = vsel %vm82, %v275, 0.0
  %v394 = vadd.f32 %v392, %v393
  %v395 = vsel %vm82, %v276, 0.0
  %v396 = vadd.f32 %v394, %v395
  %v397 = vsel %vm82, %v277, 0.0
  %v398 = vadd.f32 %v396, %v397
  %v399 = vsel %vm82, %v278, 0.0
  %v400 = vadd.f32 %v398, %v399
  %v401 = vsel %vm82, %v279, 0.0
  %v402 = vadd.f32 %v400, %v401
  %v403 = vsel %vm82, %v280, 0.0
  %v404 = vadd.f32 %v402, %v403
  %v405 = vsel %vm82, %v281, 0.0
  %v406 = vadd.f32 %v404, %v405
  %v407 = vsel %vm82, %v282, 0.0
  %v408 = vadd.f32 %v406, %v407
  %v409 = vsel %vm82, %v283, 0.0
  %v410 = vadd.f32 %v408, %v409
  %v411 = vrot.slane %v410, 4
  %v412 = vadd.f32 %v410, %v411
  %v413 = vrot.slane %v412, 2
  %v414 = vadd.f32 %v412, %v413
  %v415 = vrot.slane %v414, 1
  %v416 = vadd.f32 %v414, %v415
  %v417 = vadd.f32 %v219, %v416
  %418 = vst.msk [vmem:[#allocation3] sm:$0x1] %vm217, %v417
  // Predicated region
  $region10: #{generator_forward.25} parent=0 // pred_check
    %p419 = pneg %p10
  $region11: #{generator_forward.25} parent=0 // pred_check_branch
    %421 = sbr.rel (%p419) target = $region13
  $region12: #{generator_forward.25} parent=0 // pred_region
    %v422 = vld [vmem:[#allocation2] sm:$0x1]
    %423 = vst.msk [vmem:[%s1] sm:$0x1] %vm217, %v422
    %v424 = vld [vmem:[#allocation3] sm:$0x1]
    %425 = vst.msk [vmem:[%s2] sm:$0x1] %vm217, %v424
  $region13: #{generator_forward.25} parent=0 // pred_fallthru
    _
  // Predicated region
  $region14: #{generator_forward.25} parent=0 // pred_check
    _
  $region15: #{generator_forward.25} parent=0 // pred_check_branch
    %427 = sbr.rel (0) target = $region17
  $region16: #{generator_forward.25} parent=0 // pred_region
    _
  $region17: #{generator_forward.25} parent=0 // pred_fallthru
    _
  // Predicated region
  $region18: #{generator_forward.25} parent=0 // pred_check
    _
  $region19: #{generator_forward.25} parent=0 // pred_check_branch
    %429 = sbr.rel (0) target = $region21
  $region20: #{generator_forward.25} parent=0 // pred_region
    _
  $region21: #{generator_forward.25} parent=0 // pred_fallthru
    _
  // Predicated region
  $region22: #{generator_forward.25} parent=0 // pred_check
    _
  $region23: #{generator_forward.25} parent=0 // pred_check_branch
    %431 = sbr.rel (0) target = $region25
  $region24: #{generator_forward.25} parent=0 // pred_region
    _
  $region25: #{generator_forward.25} parent=0 // pred_fallthru
    _
  // Predicated region
  $region26: #{generator_forward.25} parent=0 // pred_check
    _
  $region27: #{generator_forward.25} parent=0 // pred_check_branch
    %433 = sbr.rel (0) target = $region29
  $region28: #{generator_forward.25} parent=0 // pred_region
    _
  $region29: #{generator_forward.25} parent=0 // pred_fallthru
    _

// kernel: generator_forward.26
$region0: #{generator_forward.26}
  #allocation0 [shape = 'u32[]', space=smem, size = 0x4, offset = 0x4, fixed_abs, tag = 'smem constant byte address 0x4 - core index']
  #allocation1 [shape = 'u32[144,128]{1,0:T(1,128)}', space=vmem, size = 0x12000, scoped, tag = 'internal scratch']
  %s0 = inlined_call_operand.vmem [shape: f32[512,8], index: 0, kind: input, shape index: {}]
  %s1 = inlined_call_operand.vmem [shape: f32[1,8], index: 1, kind: input, shape index: {}]
  %s2 = inlined_call_operand.vmem [shape: f32[1,8], index: 2, kind: input, shape index: {}]
  %s3 = inlined_call_operand.vmem [shape: f32[512,8], index: 3, kind: output, shape index: {}]
  %s4 = sld [smem:[#allocation0]]
  $region22: #{generator_forward.26} parent=0
    _
  %s6 = ssub.s32 1, %s4
  %s7 = scalar_select 0, %s6, %s4
  // Predicated region
  $region2: #{generator_forward.26} parent=0 // pred_check
    _
  $region3: #{generator_forward.26} parent=0 // pred_check_branch
    %9 = sbr.rel (0) target = $region5
  $region4: #{generator_forward.26} parent=0 // pred_region
    _
  $region5: #{generator_forward.26} parent=0 // pred_fallthru
    _
  // Predicated region
  $region6: #{generator_forward.26} parent=0 // pred_check
    _
  $region7: #{generator_forward.26} parent=0 // pred_check_branch
    %11 = sbr.rel (0) target = $region9
  $region8: #{generator_forward.26} parent=0 // pred_region
    _
  $region9: #{generator_forward.26} parent=0 // pred_fallthru
    _
  // Predicated region
  $region10: #{generator_forward.26} parent=0 // pred_check
    _
  $region11: #{generator_forward.26} parent=0 // pred_check_branch
    %13 = sbr.rel (0) target = $region13
  $region12: #{generator_forward.26} parent=0 // pred_region
    _
  $region13: #{generator_forward.26} parent=0 // pred_fallthru
    _
  %v14 = vld [vmem:[%s0] sm:$0xff]
  %v15 = vld [vmem:[%s0 + $0x8] sm:$0xff]
  %v16 = vld [vmem:[%s0 + $0x10] sm:$0xff]
  %v17 = vld [vmem:[%s0 + $0x18] sm:$0xff]
  %v18 = vld [vmem:[%s0 + $0x20] sm:$0xff]
  %v19 = vld [vmem:[%s0 + $0x28] sm:$0xff]
  %v20 = vld [vmem:[%s0 + $0x30] sm:$0xff]
  %v21 = vld [vmem:[%s0 + $0x38] sm:$0xff]
  %v22 = vld [vmem:[%s0 + $0x40] sm:$0xff]
  %v23 = vld [vmem:[%s0 + $0x48] sm:$0xff]
  %v24 = vld [vmem:[%s0 + $0x50] sm:$0xff]
  %v25 = vld [vmem:[%s0 + $0x58] sm:$0xff]
  %v26 = vld [vmem:[%s0 + $0x60] sm:$0xff]
  %v27 = vld [vmem:[%s0 + $0x68] sm:$0xff]
  %v28 = vld [vmem:[%s0 + $0x70] sm:$0xff]
  %v29 = vld [vmem:[%s0 + $0x78] sm:$0xff]
  %v30 = vld [vmem:[%s0 + $0x80] sm:$0xff]
  %v31 = vld [vmem:[%s0 + $0x88] sm:$0xff]
  %v32 = vld [vmem:[%s0 + $0x90] sm:$0xff]
  %v33 = vld [vmem:[%s0 + $0x98] sm:$0xff]
  %v34 = vld [vmem:[%s0 + $0xa0] sm:$0xff]
  %v35 = vld [vmem:[%s0 + $0xa8] sm:$0xff]
  %v36 = vld [vmem:[%s0 + $0xb0] sm:$0xff]
  %v37 = vld [vmem:[%s0 + $0xb8] sm:$0xff]
  %v38 = vld [vmem:[%s0 + $0xc0] sm:$0xff]
  %v39 = vld [vmem:[%s0 + $0xc8] sm:$0xff]
  %v40 = vld [vmem:[%s0 + $0xd0] sm:$0xff]
  %v41 = vld [vmem:[%s0 + $0xd8] sm:$0xff]
  %v42 = vld [vmem:[%s0 + $0xe0] sm:$0xff]
  %v43 = vld [vmem:[%s0 + $0xe8] sm:$0xff]
  %v44 = vld [vmem:[%s0 + $0xf0] sm:$0xff]
  %v45 = vld [vmem:[%s0 + $0xf8] sm:$0xff]
  %v46 = vld [vmem:[%s0 + $0x100] sm:$0xff]
  %v47 = vld [vmem:[%s0 + $0x108] sm:$0xff]
  %v48 = vld [vmem:[%s0 + $0x110] sm:$0xff]
  %v49 = vld [vmem:[%s0 + $0x118] sm:$0xff]
  %v50 = vld [vmem:[%s0 + $0x120] sm:$0xff]
  %v51 = vld [vmem:[%s0 + $0x128] sm:$0xff]
  %v52 = vld [vmem:[%s0 + $0x130] sm:$0xff]
  %v53 = vld [vmem:[%s0 + $0x138] sm:$0xff]
  %v54 = vld [vmem:[%s0 + $0x140] sm:$0xff]
  %v55 = vld [vmem:[%s0 + $0x148] sm:$0xff]
  %v56 = vld [vmem:[%s0 + $0x150] sm:$0xff]
  %v57 = vld [vmem:[%s0 + $0x158] sm:$0xff]
  %v58 = vld [vmem:[%s0 + $0x160] sm:$0xff]
  %v59 = vld [vmem:[%s0 + $0x168] sm:$0xff]
  %v60 = vld [vmem:[%s0 + $0x170] sm:$0xff]
  %v61 = vld [vmem:[%s0 + $0x178] sm:$0xff]
  %v62 = vld [vmem:[%s0 + $0x180] sm:$0xff]
  %v63 = vld [vmem:[%s0 + $0x188] sm:$0xff]
  %v64 = vld [vmem:[%s0 + $0x190] sm:$0xff]
  %v65 = vld [vmem:[%s0 + $0x198] sm:$0xff]
  %v66 = vld [vmem:[%s0 + $0x1a0] sm:$0xff]
  %v67 = vld [vmem:[%s0 + $0x1a8] sm:$0xff]
  %v68 = vld [vmem:[%s0 + $0x1b0] sm:$0xff]
  %v69 = vld [vmem:[%s0 + $0x1b8] sm:$0xff]
  %v70 = vld [vmem:[%s0 + $0x1c0] sm:$0xff]
  %v71 = vld [vmem:[%s0 + $0x1c8] sm:$0xff]
  %v72 = vld [vmem:[%s0 + $0x1d0] sm:$0xff]
  %v73 = vld [vmem:[%s0 + $0x1d8] sm:$0xff]
  %v74 = vld [vmem:[%s0 + $0x1e0] sm:$0xff]
  %v75 = vld [vmem:[%s0 + $0x1e8] sm:$0xff]
  %v76 = vld [vmem:[%s0 + $0x1f0] sm:$0xff]
  %v77 = vld [vmem:[%s0 + $0x1f8] sm:$0xff]
  %v78 = vld [vmem:[%s1] sm:$0x1]
  %v80 = vlaneseq
  %v81 = vshrl.u32 %v80, 7
  %v82 = vsub.s32 0, %v81
  %v83 = vrot.slane %v78, %v82
  %v85 = vmul.f32 %v14, %v83
  %v86 = vmul.f32 %v15, %v83
  %v87 = vmul.f32 %v16, %v83
  %v88 = vmul.f32 %v17, %v83
  %v89 = vmul.f32 %v18, %v83
  %v90 = vmul.f32 %v19, %v83
  %v91 = vmul.f32 %v20, %v83
  %v92 = vmul.f32 %v21, %v83
  %v93 = vmul.f32 %v22, %v83
  %v94 = vmul.f32 %v23, %v83
  %v95 = vmul.f32 %v24, %v83
  %v96 = vmul.f32 %v25, %v83
  %v97 = vmul.f32 %v26, %v83
  %v98 = vmul.f32 %v27, %v83
  %v99 = vmul.f32 %v28, %v83
  %v100 = vmul.f32 %v29, %v83
  %v101 = vmul.f32 %v30, %v83
  %v102 = vmul.f32 %v31, %v83
  %v103 = vmul.f32 %v32, %v83
  %v104 = vmul.f32 %v33, %v83
  %v105 = vmul.f32 %v34, %v83
  %v106 = vmul.f32 %v35, %v83
  %v107 = vmul.f32 %v36, %v83
  %v108 = vmul.f32 %v37, %v83
  %v109 = vmul.f32 %v38, %v83
  %v110 = vmul.f32 %v39, %v83
  %v111 = vmul.f32 %v40, %v83
  %v112 = vmul.f32 %v41, %v83
  %v113 = vmul.f32 %v42, %v83
  %v114 = vmul.f32 %v43, %v83
  %v115 = vmul.f32 %v44, %v83
  %v116 = vmul.f32 %v45, %v83
  %v117 = vmul.f32 %v46, %v83
  %v118 = vmul.f32 %v47, %v83
  %v119 = vmul.f32 %v48, %v83
  %v120 = vmul.f32 %v49, %v83
  %v121 = vmul.f32 %v50, %v83
  %v122 = vmul.f32 %v51, %v83
  %v123 = vmul.f32 %v52, %v83
  %v124 = vmul.f32 %v53, %v83
  %v125 = vmul.f32 %v54, %v83
  %v126 = vmul.f32 %v55, %v83
  %v127 = vmul.f32 %v56, %v83
  %v128 = vmul.f32 %v57, %v83
  %v129 = vmul.f32 %v58, %v83
  %v130 = vmul.f32 %v59, %v83
  %v131 = vmul.f32 %v60, %v83
  %v132 = vmul.f32 %v61, %v83
  %v133 = vmul.f32 %v62, %v83
  %v134 = vmul.f32 %v63, %v83
  %v135 = vmul.f32 %v64, %v83
  %v136 = vmul.f32 %v65, %v83
  %v137 = vmul.f32 %v66, %v83
  %v138 = vmul.f32 %v67, %v83
  %v139 = vmul.f32 %v68, %v83
  %v140 = vmul.f32 %v69, %v83
  %v141 = vmul.f32 %v70, %v83
  %v142 = vmul.f32 %v71, %v83
  %v143 = vmul.f32 %v72, %v83
  %v144 = vmul.f32 %v73, %v83
  %v145 = vmul.f32 %v74, %v83
  %v146 = vmul.f32 %v75, %v83
  %v147 = vmul.f32 %v76, %v83
  %v148 = vmul.f32 %v77, %v83
  %v149 = vld [vmem:[%s2] sm:$0x1]
  %v151 = vlaneseq
  %v152 = vshrl.u32 %v151, 7
  %v153 = vsub.s32 0, %v152
  %v154 = vrot.slane %v149, %v153
  %v156 = vadd.f32 %v85, %v154
  %v157 = vadd.f32 %v86, %v154
  %v158 = vadd.f32 %v87, %v154
  %v159 = vadd.f32 %v88, %v154
  %v160 = vadd.f32 %v89, %v154
  %v161 = vadd.f32 %v90, %v154
  %v162 = vadd.f32 %v91, %v154
  %v163 = vadd.f32 %v92, %v154
  %v164 = vadd.f32 %v93, %v154
  %v165 = vadd.f32 %v94, %v154
  %v166 = vadd.f32 %v95, %v154
  %v167 = vadd.f32 %v96, %v154
  %v168 = vadd.f32 %v97, %v154
  %v169 = vadd.f32 %v98, %v154
  %v170 = vadd.f32 %v99, %v154
  %v171 = vadd.f32 %v100, %v154
  %v172 = vadd.f32 %v101, %v154
  %v173 = vadd.f32 %v102, %v154
  %v174 = vadd.f32 %v103, %v154
  %v175 = vadd.f32 %v104, %v154
  %v176 = vadd.f32 %v105, %v154
  %v177 = vadd.f32 %v106, %v154
  %v178 = vadd.f32 %v107, %v154
  %v179 = vadd.f32 %v108, %v154
  %v180 = vadd.f32 %v109, %v154
  %v181 = vadd.f32 %v110, %v154
  %v182 = vadd.f32 %v111, %v154
  %v183 = vadd.f32 %v112, %v154
  %v184 = vadd.f32 %v113, %v154
  %v185 = vadd.f32 %v114, %v154
  %v186 = vadd.f32 %v115, %v154
  %v187 = vadd.f32 %v116, %v154
  %v188 = vadd.f32 %v117, %v154
  %v189 = vadd.f32 %v118, %v154
  %v190 = vadd.f32 %v119, %v154
  %v191 = vadd.f32 %v120, %v154
  %v192 = vadd.f32 %v121, %v154
  %v193 = vadd.f32 %v122, %v154
  %v194 = vadd.f32 %v123, %v154
  %v195 = vadd.f32 %v124, %v154
  %v196 = vadd.f32 %v125, %v154
  %v197 = vadd.f32 %v126, %v154
  %v198 = vadd.f32 %v127, %v154
  %v199 = vadd.f32 %v128, %v154
  %v200 = vadd.f32 %v129, %v154
  %v201 = vadd.f32 %v130, %v154
  %v202 = vadd.f32 %v131, %v154
  %v203 = vadd.f32 %v132, %v154
  %v204 = vadd.f32 %v133, %v154
  %v205 = vadd.f32 %v134, %v154
  %v206 = vadd.f32 %v135, %v154
  %v207 = vadd.f32 %v136, %v154
  %v208 = vadd.f32 %v137, %v154
  %v209 = vadd.f32 %v138, %v154
  %v210 = vadd.f32 %v139, %v154
  %v211 = vadd.f32 %v140, %v154
  %v212 = vadd.f32 %v141, %v154
  %v213 = vadd.f32 %v142, %v154
  %v214 = vadd.f32 %v143, %v154
  %v215 = vadd.f32 %v144, %v154
  %v216 = vadd.f32 %v145, %v154
  %v217 = vadd.f32 %v146, %v154
  %v218 = vadd.f32 %v147, %v154
  %v219 = vadd.f32 %v148, %v154
  %vm220 = vcmp.ge.f32.partialorder %v156, 0.0
  %vm221 = vcmp.ge.f32.partialorder %v157, 0.0
  %vm222 = vcmp.ge.f32.partialorder %v158, 0.0
  %vm223 = vcmp.ge.f32.partialorder %v159, 0.0
  %vm224 = vcmp.ge.f32.partialorder %v160, 0.0
  %vm225 = vcmp.ge.f32.partialorder %v161, 0.0
  %vm226 = vcmp.ge.f32.partialorder %v162, 0.0
  %vm227 = vcmp.ge.f32.partialorder %v163, 0.0
  %vm228 = vcmp.ge.f32.partialorder %v164, 0.0
  %vm229 = vcmp.ge.f32.partialorder %v165, 0.0
  %vm230 = vcmp.ge.f32.partialorder %v166, 0.0
  %vm231 = vcmp.ge.f32.partialorder %v167, 0.0
  %vm232 = vcmp.ge.f32.partialorder %v168, 0.0
  %vm233 = vcmp.ge.f32.partialorder %v169, 0.0
  %vm234 = vcmp.ge.f32.partialorder %v170, 0.0
  %vm235 = vcmp.ge.f32.partialorder %v171, 0.0
  %vm236 = vcmp.ge.f32.partialorder %v172, 0.0
  %vm237 = vcmp.ge.f32.partialorder %v173, 0.0
  %vm238 = vcmp.ge.f32.partialorder %v174, 0.0
  %vm239 = vcmp.ge.f32.partialorder %v175, 0.0
  %vm240 = vcmp.ge.f32.partialorder %v176, 0.0
  %vm241 = vcmp.ge.f32.partialorder %v177, 0.0
  %vm242 = vcmp.ge.f32.partialorder %v178, 0.0
  %vm243 = vcmp.ge.f32.partialorder %v179, 0.0
  %vm244 = vcmp.ge.f32.partialorder %v180, 0.0
  %vm245 = vcmp.ge.f32.partialorder %v181, 0.0
  %vm246 = vcmp.ge.f32.partialorder %v182, 0.0
  %vm247 = vcmp.ge.f32.partialorder %v183, 0.0
  %vm248 = vcmp.ge.f32.partialorder %v184, 0.0
  %vm249 = vcmp.ge.f32.partialorder %v185, 0.0
  %vm250 = vcmp.ge.f32.partialorder %v186, 0.0
  %vm251 = vcmp.ge.f32.partialorder %v187, 0.0
  %vm252 = vcmp.ge.f32.partialorder %v188, 0.0
  %vm253 = vcmp.ge.f32.partialorder %v189, 0.0
  %vm254 = vcmp.ge.f32.partialorder %v190, 0.0
  %vm255 = vcmp.ge.f32.partialorder %v191, 0.0
  %vm256 = vcmp.ge.f32.partialorder %v192, 0.0
  %vm257 = vcmp.ge.f32.partialorder %v193, 0.0
  %vm258 = vcmp.ge.f32.partialorder %v194, 0.0
  %vm259 = vcmp.ge.f32.partialorder %v195, 0.0
  %vm260 = vcmp.ge.f32.partialorder %v196, 0.0
  %vm261 = vcmp.ge.f32.partialorder %v197, 0.0
  %vm262 = vcmp.ge.f32.partialorder %v198, 0.0
  %vm263 = vcmp.ge.f32.partialorder %v199, 0.0
  %vm264 = vcmp.ge.f32.partialorder %v200, 0.0
  %vm265 = vcmp.ge.f32.partialorder %v201, 0.0
  %vm266 = vcmp.ge.f32.partialorder %v202, 0.0
  %vm267 = vcmp.ge.f32.partialorder %v203, 0.0
  %vm268 = vcmp.ge.f32.partialorder %v204, 0.0
  %vm269 = vcmp.ge.f32.partialorder %v205, 0.0
  %vm270 = vcmp.ge.f32.partialorder %v206, 0.0
  %vm271 = vcmp.ge.f32.partialorder %v207, 0.0
  %vm272 = vcmp.ge.f32.partialorder %v208, 0.0
  %vm273 = vcmp.ge.f32.partialorder %v209, 0.0
  %vm274 = vcmp.ge.f32.partialorder %v210, 0.0
  %vm275 = vcmp.ge.f32.partialorder %v211, 0.0
  %vm276 = vcmp.ge.f32.partialorder %v212, 0.0
  %vm277 = vcmp.ge.f32.partialorder %v213, 0.0
  %vm278 = vcmp.ge.f32.partialorder %v214, 0.0
  %vm279 = vcmp.ge.f32.partialorder %v215, 0.0
  %vm280 = vcmp.ge.f32.partialorder %v216, 0.0
  %vm281 = vcmp.ge.f32.partialorder %v217, 0.0
  %vm282 = vcmp.ge.f32.partialorder %v218, 0.0
  %vm283 = vcmp.ge.f32.partialorder %v219, 0.0
  %v284 = vmul.f32 %v156, 0.2
  %v285 = vmul.f32 %v157, 0.2
  %v286 = vmul.f32 %v158, 0.2
  %v287 = vmul.f32 %v159, 0.2
  %v288 = vmul.f32 %v160, 0.2
  %v289 = vmul.f32 %v161, 0.2
  %v290 = vmul.f32 %v162, 0.2
  %v291 = vmul.f32 %v163, 0.2
  %v292 = vmul.f32 %v164, 0.2
  %v293 = vmul.f32 %v165, 0.2
  %v294 = vmul.f32 %v166, 0.2
  %v295 = vmul.f32 %v167, 0.2
  %v296 = vmul.f32 %v168, 0.2
  %v297 = vmul.f32 %v169, 0.2
  %v298 = vmul.f32 %v170, 0.2
  %v299 = vmul.f32 %v171, 0.2
  %v300 = vmul.f32 %v172, 0.2
  %v301 = vmul.f32 %v173, 0.2
  %v302 = vmul.f32 %v174, 0.2
  %v303 = vmul.f32 %v175, 0.2
  %v304 = vmul.f32 %v176, 0.2
  %v305 = vmul.f32 %v177, 0.2
  %v306 = vmul.f32 %v178, 0.2
  %v307 = vmul.f32 %v179, 0.2
  %v308 = vmul.f32 %v180, 0.2
  %v309 = vmul.f32 %v181, 0.2
  %v310 = vmul.f32 %v182, 0.2
  %v311 = vmul.f32 %v183, 0.2
  %v312 = vmul.f32 %v184, 0.2
  %v313 = vmul.f32 %v185, 0.2
  %v314 = vmul.f32 %v186, 0.2
  %v315 = vmul.f32 %v187, 0.2
  %v316 = vmul.f32 %v188, 0.2
  %v317 = vmul.f32 %v189, 0.2
  %v318 = vmul.f32 %v190, 0.2
  %v319 = vmul.f32 %v191, 0.2
  %v320 = vmul.f32 %v192, 0.2
  %v321 = vmul.f32 %v193, 0.2
  %v322 = vmul.f32 %v194, 0.2
  %v323 = vmul.f32 %v195, 0.2
  %v324 = vmul.f32 %v196, 0.2
  %v325 = vmul.f32 %v197, 0.2
  %v326 = vmul.f32 %v198, 0.2
  %v327 = vmul.f32 %v199, 0.2
  %v328 = vmul.f32 %v200, 0.2
  %v329 = vmul.f32 %v201, 0.2
  %v330 = vmul.f32 %v202, 0.2
  %v331 = vmul.f32 %v203, 0.2
  %v332 = vmul.f32 %v204, 0.2
  %v333 = vmul.f32 %v205, 0.2
  %v334 = vmul.f32 %v206, 0.2
  %v335 = vmul.f32 %v207, 0.2
  %v336 = vmul.f32 %v208, 0.2
  %v337 = vmul.f32 %v209, 0.2
  %v338 = vmul.f32 %v210, 0.2
  %v339 = vmul.f32 %v211, 0.2
  %v340 = vmul.f32 %v212, 0.2
  %v341 = vmul.f32 %v213, 0.2
  %v342 = vmul.f32 %v214, 0.2
  %v343 = vmul.f32 %v215, 0.2
  %v344 = vmul.f32 %v216, 0.2
  %v345 = vmul.f32 %v217, 0.2
  %v346 = vmul.f32 %v218, 0.2
  %v347 = vmul.f32 %v219, 0.2
  %v348 = vsel %vm220, %v156, %v284
  %v349 = vsel %vm221, %v157, %v285
  %v350 = vsel %vm222, %v158, %v286
  %v351 = vsel %vm223, %v159, %v287
  %v352 = vsel %vm224, %v160, %v288
  %v353 = vsel %vm225, %v161, %v289
  %v354 = vsel %vm226, %v162, %v290
  %v355 = vsel %vm227, %v163, %v291
  %v356 = vsel %vm228, %v164, %v292
  %v357 = vsel %vm229, %v165, %v293
  %v358 = vsel %vm230, %v166, %v294
  %v359 = vsel %vm231, %v167, %v295
  %v360 = vsel %vm232, %v168, %v296
  %v361 = vsel %vm233, %v169, %v297
  %v362 = vsel %vm234, %v170, %v298
  %v363 = vsel %vm235, %v171, %v299
  %v364 = vsel %vm236, %v172, %v300
  %v365 = vsel %vm237, %v173, %v301
  %v366 = vsel %vm238, %v174, %v302
  %v367 = vsel %vm239, %v175, %v303
  %v368 = vsel %vm240, %v176, %v304
  %v369 = vsel %vm241, %v177, %v305
  %v370 = vsel %vm242, %v178, %v306
  %v371 = vsel %vm243, %v179, %v307
  %v372 = vsel %vm244, %v180, %v308
  %v373 = vsel %vm245, %v181, %v309
  %v374 = vsel %vm246, %v182, %v310
  %v375 = vsel %vm247, %v183, %v311
  %v376 = vsel %vm248, %v184, %v312
  %v377 = vsel %vm249, %v185, %v313
  %v378 = vsel %vm250, %v186, %v314
  %v379 = vsel %vm251, %v187, %v315
  %v380 = vsel %vm252, %v188, %v316
  %v381 = vsel %vm253, %v189, %v317
  %v382 = vsel %vm254, %v190, %v318
  %v383 = vsel %vm255, %v191, %v319
  %v384 = vsel %vm256, %v192, %v320
  %v385 = vsel %vm257, %v193, %v321
  %v386 = vsel %vm258, %v194, %v322
  %v387 = vsel %vm259, %v195, %v323
  %v388 = vsel %vm260, %v196, %v324
  %v389 = vsel %vm261, %v197, %v325
  %v390 = vsel %vm262, %v198, %v326
  %v391 = vsel %vm263, %v199, %v327
  %v392 = vsel %vm264, %v200, %v328
  %v393 = vsel %vm265, %v201, %v329
  %v394 = vsel %vm266, %v202, %v330
  %v395 = vsel %vm267, %v203, %v331
  %v396 = vsel %vm268, %v204, %v332
  %v397 = vsel %vm269, %v205, %v333
  %v398 = vsel %vm270, %v206, %v334
  %v399 = vsel %vm271, %v207, %v335
  %v400 = vsel %vm272, %v208, %v336
  %v401 = vsel %vm273, %v209, %v337
  %v402 = vsel %vm274, %v210, %v338
  %v403 = vsel %vm275, %v211, %v339
  %v404 = vsel %vm276, %v212, %v340
  %v405 = vsel %vm277, %v213, %v341
  %v406 = vsel %vm278, %v214, %v342
  %v407 = vsel %vm279, %v215, %v343
  %v408 = vsel %vm280, %v216, %v344
  %v409 = vsel %vm281, %v217, %v345
  %v410 = vsel %vm282, %v218, %v346
  %v411 = vsel %vm283, %v219, %v347
  %vm412 = vcmask 64512
  %413 = vst.msk [vmem:[%s3] sm:$0xff] %vm412, %v348
  %414 = vst.msk [vmem:[%s3 + $0x8] sm:$0xff] %vm412, %v349
  %415 = vst.msk [vmem:[%s3 + $0x10] sm:$0xff] %vm412, %v350
  %416 = vst.msk [vmem:[%s3 + $0x18] sm:$0xff] %vm412, %v351
  %417 = vst.msk [vmem:[%s3 + $0x20] sm:$0xff] %vm412, %v352
  %418 = vst.msk [vmem:[%s3 + $0x28] sm:$0xff] %vm412, %v353
  %419 = vst.msk [vmem:[%s3 + $0x30] sm:$0xff] %vm412, %v354
  %420 = vst.msk [vmem:[%s3 + $0x38] sm:$0xff] %vm412, %v355
  %421 = vst.msk [vmem:[%s3 + $0x40] sm:$0xff] %vm412, %v356
  %422 = vst.msk [vmem:[%s3 + $0x48] sm:$0xff] %vm412, %v357
  %423 = vst.msk [vmem:[%s3 + $0x50] sm:$0xff] %vm412, %v358
  %424 = vst.msk [vmem:[%s3 + $0x58] sm:$0xff] %vm412, %v359
  %425 = vst.msk [vmem:[%s3 + $0x60] sm:$0xff] %vm412, %v360
  %426 = vst.msk [vmem:[%s3 + $0x68] sm:$0xff] %vm412, %v361
  %427 = vst.msk [vmem:[%s3 + $0x70] sm:$0xff] %vm412, %v362
  %428 = vst.msk [vmem:[%s3 + $0x78] sm:$0xff] %vm412, %v363
  %429 = vst.msk [vmem:[%s3 + $0x80] sm:$0xff] %vm412, %v364
  %430 = vst.msk [vmem:[%s3 + $0x88] sm:$0xff] %vm412, %v365
  %431 = vst.msk [vmem:[%s3 + $0x90] sm:$0xff] %vm412, %v366
  %432 = vst.msk [vmem:[%s3 + $0x98] sm:$0xff] %vm412, %v367
  %433 = vst.msk [vmem:[%s3 + $0xa0] sm:$0xff] %vm412, %v368
  %434 = vst.msk [vmem:[%s3 + $0xa8] sm:$0xff] %vm412, %v369
  %435 = vst.msk [vmem:[%s3 + $0xb0] sm:$0xff] %vm412, %v370
  %436 = vst.msk [vmem:[%s3 + $0xb8] sm:$0xff] %vm412, %v371
  %437 = vst.msk [vmem:[%s3 + $0xc0] sm:$0xff] %vm412, %v372
  %438 = vst.msk [vmem:[%s3 + $0xc8] sm:$0xff] %vm412, %v373
  %439 = vst.msk [vmem:[%s3 + $0xd0] sm:$0xff] %vm412, %v374
  %440 = vst.msk [vmem:[%s3 + $0xd8] sm:$0xff] %vm412, %v375
  %441 = vst.msk [vmem:[%s3 + $0xe0] sm:$0xff] %vm412, %v376
  %442 = vst.msk [vmem:[%s3 + $0xe8] sm:$0xff] %vm412, %v377
  %443 = vst.msk [vmem:[%s3 + $0xf0] sm:$0xff] %vm412, %v378
  %444 = vst.msk [vmem:[%s3 + $0xf8] sm:$0xff] %vm412, %v379
  %445 = vst.msk [vmem:[%s3 + $0x100] sm:$0xff] %vm412, %v380
  %446 = vst.msk [vmem:[%s3 + $0x108] sm:$0xff] %vm412, %v381
  %447 = vst.msk [vmem:[%s3 + $0x110] sm:$0xff] %vm412, %v382
  %448 = vst.msk [vmem:[%s3 + $0x118] sm:$0xff] %vm412, %v383
  %449 = vst.msk [vmem:[%s3 + $0x120] sm:$0xff] %vm412, %v384
  %450 = vst.msk [vmem:[%s3 + $0x128] sm:$0xff] %vm412, %v385
  %451 = vst.msk [vmem:[%s3 + $0x130] sm:$0xff] %vm412, %v386
  %452 = vst.msk [vmem:[%s3 + $0x138] sm:$0xff] %vm412, %v387
  %453 = vst.msk [vmem:[%s3 + $0x140] sm:$0xff] %vm412, %v388
  %454 = vst.msk [vmem:[%s3 + $0x148] sm:$0xff] %vm412, %v389
  %455 = vst.msk [vmem:[%s3 + $0x150] sm:$0xff] %vm412, %v390
  %456 = vst.msk [vmem:[%s3 + $0x158] sm:$0xff] %vm412, %v391
  %457 = vst.msk [vmem:[%s3 + $0x160] sm:$0xff] %vm412, %v392
  %458 = vst.msk [vmem:[%s3 + $0x168] sm:$0xff] %vm412, %v393
  %459 = vst.msk [vmem:[%s3 + $0x170] sm:$0xff] %vm412, %v394
  %460 = vst.msk [vmem:[%s3 + $0x178] sm:$0xff] %vm412, %v395
  %461 = vst.msk [vmem:[%s3 + $0x180] sm:$0xff] %vm412, %v396
  %462 = vst.msk [vmem:[%s3 + $0x188] sm:$0xff] %vm412, %v397
  %463 = vst.msk [vmem:[%s3 + $0x190] sm:$0xff] %vm412, %v398
  %464 = vst.msk [vmem:[%s3 + $0x198] sm:$0xff] %vm412, %v399
  %465 = vst.msk [vmem:[%s3 + $0x1a0] sm:$0xff] %vm412, %v400
  %466 = vst.msk [vmem:[%s3 + $0x1a8] sm:$0xff] %vm412, %v401
  %467 = vst.msk [vmem:[%s3 + $0x1b0] sm:$0xff] %vm412, %v402
  %468 = vst.msk [vmem:[%s3 + $0x1b8] sm:$0xff] %vm412, %v403
  %469 = vst.msk [vmem:[%s3 + $0x1c0] sm:$0xff] %vm412, %v404
  %470 = vst.msk [vmem:[%s3 + $0x1c8] sm:$0xff] %vm412, %v405
  %471 = vst.msk [vmem:[%s3 + $0x1d0] sm:$0xff] %vm412, %v406
  %472 = vst.msk [vmem:[%s3 + $0x1d8] sm:$0xff] %vm412, %v407
  %473 = vst.msk [vmem:[%s3 + $0x1e0] sm:$0xff] %vm412, %v408
  %474 = vst.msk [vmem:[%s3 + $0x1e8] sm:$0xff] %vm412, %v409
  %475 = vst.msk [vmem:[%s3 + $0x1f0] sm:$0xff] %vm412, %v410
  %476 = vst.msk [vmem:[%s3 + $0x1f8] sm:$0xff] %vm412, %v411
  // Predicated region
  $region14: #{generator_forward.26} parent=0 // pred_check
    _
  $region15: #{generator_forward.26} parent=0 // pred_check_branch
    %478 = sbr.rel (0) target = $region17
  $region16: #{generator_forward.26} parent=0 // pred_region
    _
  $region17: #{generator_forward.26} parent=0 // pred_fallthru
    _
  // Predicated region
  $region18: #{generator_forward.26} parent=0 // pred_check
    _
  $region19: #{generator_forward.26} parent=0 // pred_check_branch
    %480 = sbr.rel (0) target = $region21
  $region20: #{generator_forward.26} parent=0 // pred_region
    _
  $region21: #{generator_forward.26} parent=0 // pred_fallthru
    _

// kernel: generator_forward.27
$region0: #{generator_forward.27}
  #allocation0 [shape = 'u32[]', space=smem, size = 0x4, offset = 0x4, fixed_abs, tag = 'smem constant byte address 0x4 - core index']
  #allocation1 [shape = 'u32[144,128]{1,0:T(1,128)}', space=vmem, size = 0x12000, scoped, tag = 'internal scratch']
  #allocation2 [shape = 'f32[512,128]{1,0:T(8,128)}', space=vmem, size = 0x40000, scoped, tag = 'scratch operand']
  %s0 = inlined_call_operand.vmem [shape: bf16[512,128], index: 0, kind: input, shape index: {}]
  %s1 = inlined_call_operand.vmem [shape: bf16[128,128], index: 1, kind: input, shape index: {}]
  %s2 = inlined_call_operand.vmem [shape: f32[512,128], index: 2, kind: output, shape index: {}]
  %s3 = sld [smem:[#allocation0]]
  $region26: #{generator_forward.27} parent=0
    _
  %s5 = ssub.s32 1, %s3
  %s6 = scalar_select 0, %s5, %s3
  // Predicated region
  $region2: #{generator_forward.27} parent=0 // pred_check
    _
  $region3: #{generator_forward.27} parent=0 // pred_check_branch
    %8 = sbr.rel (0) target = $region5
  $region4: #{generator_forward.27} parent=0 // pred_region
    _
  $region5: #{generator_forward.27} parent=0 // pred_fallthru
    _
  // Predicated region
  $region6: #{generator_forward.27} parent=0 // pred_check
    _
  $region7: #{generator_forward.27} parent=0 // pred_check_branch
    %10 = sbr.rel (0) target = $region9
  $region8: #{generator_forward.27} parent=0 // pred_region
    _
  $region9: #{generator_forward.27} parent=0 // pred_fallthru
    _
  %p12 = scmp.eq.s32.totalorder 0, 0
  // Predicated region
  $region10: #{generator_forward.27} parent=0 // pred_check
    %p13 = pneg %p12
  $region11: #{generator_forward.27} parent=0 // pred_check_branch
    %15 = sbr.rel (%p13) target = $region13
  $region12: #{generator_forward.27} parent=0 // pred_region
    %16 = vst [vmem:[#allocation2] sm:$0xff] 0.0
    %17 = vst [vmem:[#allocation2 + $0x8] sm:$0xff] 0.0
    %18 = vst [vmem:[#allocation2 + $0x10] sm:$0xff] 0.0
    %19 = vst [vmem:[#allocation2 + $0x18] sm:$0xff] 0.0
    %20 = vst [vmem:[#allocation2 + $0x20] sm:$0xff] 0.0
    %21 = vst [vmem:[#allocation2 + $0x28] sm:$0xff] 0.0
    %22 = vst [vmem:[#allocation2 + $0x30] sm:$0xff] 0.0
    %23 = vst [vmem:[#allocation2 + $0x38] sm:$0xff] 0.0
    %24 = vst [vmem:[#allocation2 + $0x40] sm:$0xff] 0.0
    %25 = vst [vmem:[#allocation2 + $0x48] sm:$0xff] 0.0
    %26 = vst [vmem:[#allocation2 + $0x50] sm:$0xff] 0.0
    %27 = vst [vmem:[#allocation2 + $0x58] sm:$0xff] 0.0
    %28 = vst [vmem:[#allocation2 + $0x60] sm:$0xff] 0.0
    %29 = vst [vmem:[#allocation2 + $0x68] sm:$0xff] 0.0
    %30 = vst [vmem:[#allocation2 + $0x70] sm:$0xff] 0.0
    %31 = vst [vmem:[#allocation2 + $0x78] sm:$0xff] 0.0
    %32 = vst [vmem:[#allocation2 + $0x80] sm:$0xff] 0.0
    %33 = vst [vmem:[#allocation2 + $0x88] sm:$0xff] 0.0
    %34 = vst [vmem:[#allocation2 + $0x90] sm:$0xff] 0.0
    %35 = vst [vmem:[#allocation2 + $0x98] sm:$0xff] 0.0
    %36 = vst [vmem:[#allocation2 + $0xa0] sm:$0xff] 0.0
    %37 = vst [vmem:[#allocation2 + $0xa8] sm:$0xff] 0.0
    %38 = vst [vmem:[#allocation2 + $0xb0] sm:$0xff] 0.0
    %39 = vst [vmem:[#allocation2 + $0xb8] sm:$0xff] 0.0
    %40 = vst [vmem:[#allocation2 + $0xc0] sm:$0xff] 0.0
    %41 = vst [vmem:[#allocation2 + $0xc8] sm:$0xff] 0.0
    %42 = vst [vmem:[#allocation2 + $0xd0] sm:$0xff] 0.0
    %43 = vst [vmem:[#allocation2 + $0xd8] sm:$0xff] 0.0
    %44 = vst [vmem:[#allocation2 + $0xe0] sm:$0xff] 0.0
    %45 = vst [vmem:[#allocation2 + $0xe8] sm:$0xff] 0.0
    %46 = vst [vmem:[#allocation2 + $0xf0] sm:$0xff] 0.0
    %47 = vst [vmem:[#allocation2 + $0xf8] sm:$0xff] 0.0
    %48 = vst [vmem:[#allocation2 + $0x100] sm:$0xff] 0.0
    %49 = vst [vmem:[#allocation2 + $0x108] sm:$0xff] 0.0
    %50 = vst [vmem:[#allocation2 + $0x110] sm:$0xff] 0.0
    %51 = vst [vmem:[#allocation2 + $0x118] sm:$0xff] 0.0
    %52 = vst [vmem:[#allocation2 + $0x120] sm:$0xff] 0.0
    %53 = vst [vmem:[#allocation2 + $0x128] sm:$0xff] 0.0
    %54 = vst [vmem:[#allocation2 + $0x130] sm:$0xff] 0.0
    %55 = vst [vmem:[#allocation2 + $0x138] sm:$0xff] 0.0
    %56 = vst [vmem:[#allocation2 + $0x140] sm:$0xff] 0.0
    %57 = vst [vmem:[#allocation2 + $0x148] sm:$0xff] 0.0
    %58 = vst [vmem:[#allocation2 + $0x150] sm:$0xff] 0.0
    %59 = vst [vmem:[#allocation2 + $0x158] sm:$0xff] 0.0
    %60 = vst [vmem:[#allocation2 + $0x160] sm:$0xff] 0.0
    %61 = vst [vmem:[#allocation2 + $0x168] sm:$0xff] 0.0
    %62 = vst [vmem:[#allocation2 + $0x170] sm:$0xff] 0.0
    %63 = vst [vmem:[#allocation2 + $0x178] sm:$0xff] 0.0
    %64 = vst [vmem:[#allocation2 + $0x180] sm:$0xff] 0.0
    %65 = vst [vmem:[#allocation2 + $0x188] sm:$0xff] 0.0
    %66 = vst [vmem:[#allocation2 + $0x190] sm:$0xff] 0.0
    %67 = vst [vmem:[#allocation2 + $0x198] sm:$0xff] 0.0
    %68 = vst [vmem:[#allocation2 + $0x1a0] sm:$0xff] 0.0
    %69 = vst [vmem:[#allocation2 + $0x1a8] sm:$0xff] 0.0
    %70 = vst [vmem:[#allocation2 + $0x1b0] sm:$0xff] 0.0
    %71 = vst [vmem:[#allocation2 + $0x1b8] sm:$0xff] 0.0
    %72 = vst [vmem:[#allocation2 + $0x1c0] sm:$0xff] 0.0
    %73 = vst [vmem:[#allocation2 + $0x1c8] sm:$0xff] 0.0
    %74 = vst [vmem:[#allocation2 + $0x1d0] sm:$0xff] 0.0
    %75 = vst [vmem:[#allocation2 + $0x1d8] sm:$0xff] 0.0
    %76 = vst [vmem:[#allocation2 + $0x1e0] sm:$0xff] 0.0
    %77 = vst [vmem:[#allocation2 + $0x1e8] sm:$0xff] 0.0
    %78 = vst [vmem:[#allocation2 + $0x1f0] sm:$0xff] 0.0
    %79 = vst [vmem:[#allocation2 + $0x1f8] sm:$0xff] 0.0
  $region13: #{generator_forward.27} parent=0 // pred_fallthru
    _
  %v80 = vld [vmem:[#allocation2] sm:$0xff]
  %v81 = vld [vmem:[#allocation2 + $0x8] sm:$0xff]
  %v82 = vld [vmem:[#allocation2 + $0x10] sm:$0xff]
  %v83 = vld [vmem:[#allocation2 + $0x18] sm:$0xff]
  %v84 = vld [vmem:[#allocation2 + $0x20] sm:$0xff]
  %v85 = vld [vmem:[#allocation2 + $0x28] sm:$0xff]
  %v86 = vld [vmem:[#allocation2 + $0x30] sm:$0xff]
  %v87 = vld [vmem:[#allocation2 + $0x38] sm:$0xff]
  %v88 = vld [vmem:[#allocation2 + $0x40] sm:$0xff]
  %v89 = vld [vmem:[#allocation2 + $0x48] sm:$0xff]
  %v90 = vld [vmem:[#allocation2 + $0x50] sm:$0xff]
  %v91 = vld [vmem:[#allocation2 + $0x58] sm:$0xff]
  %v92 = vld [vmem:[#allocation2 + $0x60] sm:$0xff]
  %v93 = vld [vmem:[#allocation2 + $0x68] sm:$0xff]
  %v94 = vld [vmem:[#allocation2 + $0x70] sm:$0xff]
  %v95 = vld [vmem:[#allocation2 + $0x78] sm:$0xff]
  %v96 = vld [vmem:[#allocation2 + $0x80] sm:$0xff]
  %v97 = vld [vmem:[#allocation2 + $0x88] sm:$0xff]
  %v98 = vld [vmem:[#allocation2 + $0x90] sm:$0xff]
  %v99 = vld [vmem:[#allocation2 + $0x98] sm:$0xff]
  %v100 = vld [vmem:[#allocation2 + $0xa0] sm:$0xff]
  %v101 = vld [vmem:[#allocation2 + $0xa8] sm:$0xff]
  %v102 = vld [vmem:[#allocation2 + $0xb0] sm:$0xff]
  %v103 = vld [vmem:[#allocation2 + $0xb8] sm:$0xff]
  %v104 = vld [vmem:[#allocation2 + $0xc0] sm:$0xff]
  %v105 = vld [vmem:[#allocation2 + $0xc8] sm:$0xff]
  %v106 = vld [vmem:[#allocation2 + $0xd0] sm:$0xff]
  %v107 = vld [vmem:[#allocation2 + $0xd8] sm:$0xff]
  %v108 = vld [vmem:[#allocation2 + $0xe0] sm:$0xff]
  %v109 = vld [vmem:[#allocation2 + $0xe8] sm:$0xff]
  %v110 = vld [vmem:[#allocation2 + $0xf0] sm:$0xff]
  %v111 = vld [vmem:[#allocation2 + $0xf8] sm:$0xff]
  %v112 = vld [vmem:[#allocation2 + $0x100] sm:$0xff]
  %v113 = vld [vmem:[#allocation2 + $0x108] sm:$0xff]
  %v114 = vld [vmem:[#allocation2 + $0x110] sm:$0xff]
  %v115 = vld [vmem:[#allocation2 + $0x118] sm:$0xff]
  %v116 = vld [vmem:[#allocation2 + $0x120] sm:$0xff]
  %v117 = vld [vmem:[#allocation2 + $0x128] sm:$0xff]
  %v118 = vld [vmem:[#allocation2 + $0x130] sm:$0xff]
  %v119 = vld [vmem:[#allocation2 + $0x138] sm:$0xff]
  %v120 = vld [vmem:[#allocation2 + $0x140] sm:$0xff]
  %v121 = vld [vmem:[#allocation2 + $0x148] sm:$0xff]
  %v122 = vld [vmem:[#allocation2 + $0x150] sm:$0xff]
  %v123 = vld [vmem:[#allocation2 + $0x158] sm:$0xff]
  %v124 = vld [vmem:[#allocation2 + $0x160] sm:$0xff]
  %v125 = vld [vmem:[#allocation2 + $0x168] sm:$0xff]
  %v126 = vld [vmem:[#allocation2 + $0x170] sm:$0xff]
  %v127 = vld [vmem:[#allocation2 + $0x178] sm:$0xff]
  %v128 = vld [vmem:[#allocation2 + $0x180] sm:$0xff]
  %v129 = vld [vmem:[#allocation2 + $0x188] sm:$0xff]
  %v130 = vld [vmem:[#allocation2 + $0x190] sm:$0xff]
  %v131 = vld [vmem:[#allocation2 + $0x198] sm:$0xff]
  %v132 = vld [vmem:[#allocation2 + $0x1a0] sm:$0xff]
  %v133 = vld [vmem:[#allocation2 + $0x1a8] sm:$0xff]
  %v134 = vld [vmem:[#allocation2 + $0x1b0] sm:$0xff]
  %v135 = vld [vmem:[#allocation2 + $0x1b8] sm:$0xff]
  %v136 = vld [vmem:[#allocation2 + $0x1c0] sm:$0xff]
  %v137 = vld [vmem:[#allocation2 + $0x1c8] sm:$0xff]
  %v138 = vld [vmem:[#allocation2 + $0x1d0] sm:$0xff]
  %v139 = vld [vmem:[#allocation2 + $0x1d8] sm:$0xff]
  %v140 = vld [vmem:[#allocation2 + $0x1e0] sm:$0xff]
  %v141 = vld [vmem:[#allocation2 + $0x1e8] sm:$0xff]
  %v142 = vld [vmem:[#allocation2 + $0x1f0] sm:$0xff]
  %v143 = vld [vmem:[#allocation2 + $0x1f8] sm:$0xff]
  %v144 = vld [vmem:[%s0] sm:$0xf]
  %v145 = vld [vmem:[%s0 + $0x4] sm:$0xf]
  %v146 = vld [vmem:[%s0 + $0x8] sm:$0xf]
  %v147 = vld [vmem:[%s0 + $0xc] sm:$0xf]
  %v148 = vld [vmem:[%s0 + $0x10] sm:$0xf]
  %v149 = vld [vmem:[%s0 + $0x14] sm:$0xf]
  %v150 = vld [vmem:[%s0 + $0x18] sm:$0xf]
  %v151 = vld [vmem:[%s0 + $0x1c] sm:$0xf]
  %v152 = vld [vmem:[%s0 + $0x20] sm:$0xf]
  %v153 = vld [vmem:[%s0 + $0x24] sm:$0xf]
  %v154 = vld [vmem:[%s0 + $0x28] sm:$0xf]
  %v155 = vld [vmem:[%s0 + $0x2c] sm:$0xf]
  %v156 = vld [vmem:[%s0 + $0x30] sm:$0xf]
  %v157 = vld [vmem:[%s0 + $0x34] sm:$0xf]
  %v158 = vld [vmem:[%s0 + $0x38] sm:$0xf]
  %v159 = vld [vmem:[%s0 + $0x3c] sm:$0xf]
  %v160 = vld [vmem:[%s0 + $0x40] sm:$0xf]
  %v161 = vld [vmem:[%s0 + $0x44] sm:$0xf]
  %v162 = vld [vmem:[%s0 + $0x48] sm:$0xf]
  %v163 = vld [vmem:[%s0 + $0x4c] sm:$0xf]
  %v164 = vld [vmem:[%s0 + $0x50] sm:$0xf]
  %v165 = vld [vmem:[%s0 + $0x54] sm:$0xf]
  %v166 = vld [vmem:[%s0 + $0x58] sm:$0xf]
  %v167 = vld [vmem:[%s0 + $0x5c] sm:$0xf]
  %v168 = vld [vmem:[%s0 + $0x60] sm:$0xf]
  %v169 = vld [vmem:[%s0 + $0x64] sm:$0xf]
  %v170 = vld [vmem:[%s0 + $0x68] sm:$0xf]
  %v171 = vld [vmem:[%s0 + $0x6c] sm:$0xf]
  %v172 = vld [vmem:[%s0 + $0x70] sm:$0xf]
  %v173 = vld [vmem:[%s0 + $0x74] sm:$0xf]
  %v174 = vld [vmem:[%s0 + $0x78] sm:$0xf]
  %v175 = vld [vmem:[%s0 + $0x7c] sm:$0xf]
  %v176 = vld [vmem:[%s0 + $0x80] sm:$0xf]
  %v177 = vld [vmem:[%s0 + $0x84] sm:$0xf]
  %v178 = vld [vmem:[%s0 + $0x88] sm:$0xf]
  %v179 = vld [vmem:[%s0 + $0x8c] sm:$0xf]
  %v180 = vld [vmem:[%s0 + $0x90] sm:$0xf]
  %v181 = vld [vmem:[%s0 + $0x94] sm:$0xf]
  %v182 = vld [vmem:[%s0 + $0x98] sm:$0xf]
  %v183 = vld [vmem:[%s0 + $0x9c] sm:$0xf]
  %v184 = vld [vmem:[%s0 + $0xa0] sm:$0xf]
  %v185 = vld [vmem:[%s0 + $0xa4] sm:$0xf]
  %v186 = vld [vmem:[%s0 + $0xa8] sm:$0xf]
  %v187 = vld [vmem:[%s0 + $0xac] sm:$0xf]
  %v188 = vld [vmem:[%s0 + $0xb0] sm:$0xf]
  %v189 = vld [vmem:[%s0 + $0xb4] sm:$0xf]
  %v190 = vld [vmem:[%s0 + $0xb8] sm:$0xf]
  %v191 = vld [vmem:[%s0 + $0xbc] sm:$0xf]
  %v192 = vld [vmem:[%s0 + $0xc0] sm:$0xf]
  %v193 = vld [vmem:[%s0 + $0xc4] sm:$0xf]
  %v194 = vld [vmem:[%s0 + $0xc8] sm:$0xf]
  %v195 = vld [vmem:[%s0 + $0xcc] sm:$0xf]
  %v196 = vld [vmem:[%s0 + $0xd0] sm:$0xf]
  %v197 = vld [vmem:[%s0 + $0xd4] sm:$0xf]
  %v198 = vld [vmem:[%s0 + $0xd8] sm:$0xf]
  %v199 = vld [vmem:[%s0 + $0xdc] sm:$0xf]
  %v200 = vld [vmem:[%s0 + $0xe0] sm:$0xf]
  %v201 = vld [vmem:[%s0 + $0xe4] sm:$0xf]
  %v202 = vld [vmem:[%s0 + $0xe8] sm:$0xf]
  %v203 = vld [vmem:[%s0 + $0xec] sm:$0xf]
  %v204 = vld [vmem:[%s0 + $0xf0] sm:$0xf]
  %v205 = vld [vmem:[%s0 + $0xf4] sm:$0xf]
  %v206 = vld [vmem:[%s0 + $0xf8] sm:$0xf]
  %v207 = vld [vmem:[%s0 + $0xfc] sm:$0xf]
  %v208 = vld [vmem:[%s1] sm:$0xf]
  %v209 = vld [vmem:[%s1 + $0x4] sm:$0xf]
  %v210 = vld [vmem:[%s1 + $0x8] sm:$0xf]
  %v211 = vld [vmem:[%s1 + $0xc] sm:$0xf]
  %v212 = vld [vmem:[%s1 + $0x10] sm:$0xf]
  %v213 = vld [vmem:[%s1 + $0x14] sm:$0xf]
  %v214 = vld [vmem:[%s1 + $0x18] sm:$0xf]
  %v215 = vld [vmem:[%s1 + $0x1c] sm:$0xf]
  %v216 = vld [vmem:[%s1 + $0x20] sm:$0xf]
  %v217 = vld [vmem:[%s1 + $0x24] sm:$0xf]
  %v218 = vld [vmem:[%s1 + $0x28] sm:$0xf]
  %v219 = vld [vmem:[%s1 + $0x2c] sm:$0xf]
  %v220 = vld [vmem:[%s1 + $0x30] sm:$0xf]
  %v221 = vld [vmem:[%s1 + $0x34] sm:$0xf]
  %v222 = vld [vmem:[%s1 + $0x38] sm:$0xf]
  %v223 = vld [vmem:[%s1 + $0x3c] sm:$0xf]
  %v288 = vunpack.c.l.b16 %v144
  %v289 = vunpack.c.l.b16 %v145
  %v290 = vunpack.c.l.b16 %v146
  %v291 = vunpack.c.l.b16 %v147
  %v292 = vunpack.c.l.b16 %v148
  %v293 = vunpack.c.l.b16 %v149
  %v294 = vunpack.c.l.b16 %v150
  %v295 = vunpack.c.l.b16 %v151
  %v296 = vunpack.c.l.b16 %v152
  %v297 = vunpack.c.l.b16 %v153
  %v298 = vunpack.c.l.b16 %v154
  %v299 = vunpack.c.l.b16 %v155
  %v300 = vunpack.c.l.b16 %v156
  %v301 = vunpack.c.l.b16 %v157
  %v302 = vunpack.c.l.b16 %v158
  %v303 = vunpack.c.l.b16 %v159
  %v304 = vunpack.c.l.b16 %v160
  %v305 = vunpack.c.l.b16 %v161
  %v306 = vunpack.c.l.b16 %v162
  %v307 = vunpack.c.l.b16 %v163
  %v308 = vunpack.c.l.b16 %v164
  %v309 = vunpack.c.l.b16 %v165
  %v310 = vunpack.c.l.b16 %v166
  %v311 = vunpack.c.l.b16 %v167
  %v312 = vunpack.c.l.b16 %v168
  %v313 = vunpack.c.l.b16 %v169
  %v314 = vunpack.c.l.b16 %v170
  %v315 = vunpack.c.l.b16 %v171
  %v316 = vunpack.c.l.b16 %v172
  %v317 = vunpack.c.l.b16 %v173
  %v318 = vunpack.c.l.b16 %v174
  %v319 = vunpack.c.l.b16 %v175
  %v320 = vunpack.c.l.b16 %v176
  %v321 = vunpack.c.l.b16 %v177
  %v322 = vunpack.c.l.b16 %v178
  %v323 = vunpack.c.l.b16 %v179
  %v324 = vunpack.c.l.b16 %v180
  %v325 = vunpack.c.l.b16 %v181
  %v326 = vunpack.c.l.b16 %v182
  %v327 = vunpack.c.l.b16 %v183
  %v328 = vunpack.c.l.b16 %v184
  %v329 = vunpack.c.l.b16 %v185
  %v330 = vunpack.c.l.b16 %v186
  %v331 = vunpack.c.l.b16 %v187
  %v332 = vunpack.c.l.b16 %v188
  %v333 = vunpack.c.l.b16 %v189
  %v334 = vunpack.c.l.b16 %v190
  %v335 = vunpack.c.l.b16 %v191
  %v336 = vunpack.c.l.b16 %v192
  %v337 = vunpack.c.l.b16 %v193
  %v338 = vunpack.c.l.b16 %v194
  %v339 = vunpack.c.l.b16 %v195
  %v340 = vunpack.c.l.b16 %v196
  %v341 = vunpack.c.l.b16 %v197
  %v342 = vunpack.c.l.b16 %v198
  %v343 = vunpack.c.l.b16 %v199
  %v344 = vunpack.c.l.b16 %v200
  %v345 = vunpack.c.l.b16 %v201
  %v346 = vunpack.c.l.b16 %v202
  %v347 = vunpack.c.l.b16 %v203
  %v348 = vunpack.c.l.b16 %v204
  %v349 = vunpack.c.l.b16 %v205
  %v350 = vunpack.c.l.b16 %v206
  %v351 = vunpack.c.l.b16 %v207
  %v352 = vpack.c.b16 %v289, %v288
  %v353 = vpack.c.b16 %v291, %v290
  %v354 = vpack.c.b16 %v293, %v292
  %v355 = vpack.c.b16 %v295, %v294
  %v356 = vpack.c.b16 %v297, %v296
  %v357 = vpack.c.b16 %v299, %v298
  %v358 = vpack.c.b16 %v301, %v300
  %v359 = vpack.c.b16 %v303, %v302
  %v360 = vpack.c.b16 %v305, %v304
  %v361 = vpack.c.b16 %v307, %v306
  %v362 = vpack.c.b16 %v309, %v308
  %v363 = vpack.c.b16 %v311, %v310
  %v364 = vpack.c.b16 %v313, %v312
  %v365 = vpack.c.b16 %v315, %v314
  %v366 = vpack.c.b16 %v317, %v316
  %v367 = vpack.c.b16 %v319, %v318
  %v368 = vpack.c.b16 %v321, %v320
  %v369 = vpack.c.b16 %v323, %v322
  %v370 = vpack.c.b16 %v325, %v324
  %v371 = vpack.c.b16 %v327, %v326
  %v372 = vpack.c.b16 %v329, %v328
  %v373 = vpack.c.b16 %v331, %v330
  %v374 = vpack.c.b16 %v333, %v332
  %v375 = vpack.c.b16 %v335, %v334
  %v376 = vpack.c.b16 %v337, %v336
  %v377 = vpack.c.b16 %v339, %v338
  %v378 = vpack.c.b16 %v341, %v340
  %v379 = vpack.c.b16 %v343, %v342
  %v380 = vpack.c.b16 %v345, %v344
  %v381 = vpack.c.b16 %v347, %v346
  %v382 = vpack.c.b16 %v349, %v348
  %v383 = vpack.c.b16 %v351, %v350
  %v432 = vunpack.c.l.b16 %v208
  %v433 = vunpack.c.l.b16 %v209
  %v434 = vunpack.c.l.b16 %v210
  %v435 = vunpack.c.l.b16 %v211
  %v436 = vunpack.c.l.b16 %v212
  %v437 = vunpack.c.l.b16 %v213
  %v438 = vunpack.c.l.b16 %v214
  %v439 = vunpack.c.l.b16 %v215
  %v440 = vunpack.c.l.b16 %v216
  %v441 = vunpack.c.l.b16 %v217
  %v442 = vunpack.c.l.b16 %v218
  %v443 = vunpack.c.l.b16 %v219
  %v444 = vunpack.c.l.b16 %v220
  %v445 = vunpack.c.l.b16 %v221
  %v446 = vunpack.c.l.b16 %v222
  %v447 = vunpack.c.l.b16 %v223
  %v448 = vpack.c.b16 %v433, %v432
  %v449 = vpack.c.b16 %v435, %v434
  %v450 = vpack.c.b16 %v437, %v436
  %v451 = vpack.c.b16 %v439, %v438
  %v452 = vpack.c.b16 %v441, %v440
  %v453 = vpack.c.b16 %v443, %v442
  %v454 = vpack.c.b16 %v445, %v444
  %v455 = vpack.c.b16 %v447, %v446
  %464 = vmatprep.subr.bf16.mxu0 0
  %465 = vmatpush1.bf16.msra.mxu0 %v448
  %466 = vmatprep.subr.bf16.mxu0 0
  %467 = vmatpush1.bf16.msra.mxu0 %v449
  %468 = vmatprep.subr.bf16.mxu0 0
  %469 = vmatpush1.bf16.msra.mxu0 %v450
  %470 = vmatprep.subr.bf16.mxu0 0
  %471 = vmatpush1.bf16.msra.mxu0 %v451
  %472 = vmatprep.subr.bf16.mxu0 0
  %473 = vmatpush1.bf16.msra.mxu0 %v452
  %474 = vmatprep.subr.bf16.mxu0 0
  %475 = vmatpush1.bf16.msra.mxu0 %v453
  %476 = vmatprep.subr.bf16.mxu0 0
  %477 = vmatpush1.bf16.msra.mxu0 %v454
  %478 = vmatprep.subr.bf16.mxu0 0
  %479 = vmatpush1.bf16.msra.mxu0 %v455
  %480 = vmatprep.subr.bf16.mxu0 0
  %481 = vmatpush1.bf16.msra.mxu0 0
  %482 = vmatprep.subr.bf16.mxu0 0
  %483 = vmatpush1.bf16.msra.mxu0 0
  %484 = vmatprep.subr.bf16.mxu0 0
  %485 = vmatpush1.bf16.msra.mxu0 0
  %486 = vmatprep.subr.bf16.mxu0 0
  %487 = vmatpush1.bf16.msra.mxu0 0
  %488 = vmatprep.subr.bf16.mxu0 0
  %489 = vmatpush1.bf16.msra.mxu0 0
  %490 = vmatprep.subr.bf16.mxu0 0
  %491 = vmatpush1.bf16.msra.mxu0 0
  %492 = vmatprep.subr.bf16.mxu0 0
  %493 = vmatpush1.bf16.msra.mxu0 0
  %494 = vmatprep.subr.bf16.mxu0 0
  %495 = vmatpush1.bf16.msra.mxu0 0
  %496 = vmatprep.mubr.bf16.mxu0 0
  %497 = vmatmul.mubr.bf16.gmra.mrb[0].mxu0 %v352
  %v498 = vpop.f32.mrb[0].mxu0
  %v499 = vadd.f32 0.0, %v498
  %v500 = vpop.f32.mrb[0].mxu0
  %v501 = vpop.f32.mrb[0].mxu0
  %v502 = vadd.f32 0.0, %v501
  %v503 = vpop.f32.mrb[0].mxu0
  %504 = vmatprep.mubr.bf16.mxu0 0
  %505 = vmatmul.mubr.bf16.gmra.mrb[0].mxu0 %v353
  %v506 = vpop.f32.mrb[0].mxu0
  %v507 = vadd.f32 0.0, %v506
  %v508 = vpop.f32.mrb[0].mxu0
  %v509 = vpop.f32.mrb[0].mxu0
  %v510 = vadd.f32 0.0, %v509
  %v511 = vpop.f32.mrb[0].mxu0
  %512 = vmatprep.mubr.bf16.mxu0 0
  %513 = vmatmul.mubr.bf16.gmra.mrb[0].mxu0 %v354
  %v514 = vpop.f32.mrb[0].mxu0
  %v515 = vadd.f32 0.0, %v514
  %v516 = vpop.f32.mrb[0].mxu0
  %v517 = vpop.f32.mrb[0].mxu0
  %v518 = vadd.f32 0.0, %v517
  %v519 = vpop.f32.mrb[0].mxu0
  %520 = vmatprep.mubr.bf16.mxu0 0
  %521 = vmatmul.mubr.bf16.gmra.mrb[0].mxu0 %v355
  %v522 = vpop.f32.mrb[0].mxu0
  %v523 = vadd.f32 0.0, %v522
  %v524 = vpop.f32.mrb[0].mxu0
  %v525 = vpop.f32.mrb[0].mxu0
  %v526 = vadd.f32 0.0, %v525
  %v527 = vpop.f32.mrb[0].mxu0
  %528 = vmatprep.mubr.bf16.mxu0 0
  %529 = vmatmul.mubr.bf16.gmra.mrb[0].mxu0 %v356
  %v530 = vpop.f32.mrb[0].mxu0
  %v531 = vadd.f32 0.0, %v530
  %v532 = vpop.f32.mrb[0].mxu0
  %v533 = vpop.f32.mrb[0].mxu0
  %v534 = vadd.f32 0.0, %v533
  %v535 = vpop.f32.mrb[0].mxu0
  %536 = vmatprep.mubr.bf16.mxu0 0
  %537 = vmatmul.mubr.bf16.gmra.mrb[0].mxu0 %v357
  %v538 = vpop.f32.mrb[0].mxu0
  %v539 = vadd.f32 0.0, %v538
  %v540 = vpop.f32.mrb[0].mxu0
  %v541 = vpop.f32.mrb[0].mxu0
  %v542 = vadd.f32 0.0, %v541
  %v543 = vpop.f32.mrb[0].mxu0
  %544 = vmatprep.mubr.bf16.mxu0 0
  %545 = vmatmul.mubr.bf16.gmra.mrb[0].mxu0 %v358
  %v546 = vpop.f32.mrb[0].mxu0
  %v547 = vadd.f32 0.0, %v546
  %v548 = vpop.f32.mrb[0].mxu0
  %v549 = vpop.f32.mrb[0].mxu0
  %v550 = vadd.f32 0.0, %v549
  %v551 = vpop.f32.mrb[0].mxu0
  %552 = vmatprep.mubr.bf16.mxu0 0
  %553 = vmatmul.mubr.bf16.gmra.mrb[0].mxu0 %v359
  %v554 = vpop.f32.mrb[0].mxu0
  %v555 = vadd.f32 0.0, %v554
  %v556 = vpop.f32.mrb[0].mxu0
  %v557 = vpop.f32.mrb[0].mxu0
  %v558 = vadd.f32 0.0, %v557
  %v559 = vpop.f32.mrb[0].mxu0
  %560 = vmatprep.mubr.bf16.mxu0 0
  %561 = vmatmul.mubr.bf16.gmra.mrb[0].mxu0 %v360
  %v562 = vpop.f32.mrb[0].mxu0
  %v563 = vadd.f32 0.0, %v562
  %v564 = vpop.f32.mrb[0].mxu0
  %v565 = vpop.f32.mrb[0].mxu0
  %v566 = vadd.f32 0.0, %v565
  %v567 = vpop.f32.mrb[0].mxu0
  %568 = vmatprep.mubr.bf16.mxu0 0
  %569 = vmatmul.mubr.bf16.gmra.mrb[0].mxu0 %v361
  %v570 = vpop.f32.mrb[0].mxu0
  %v571 = vadd.f32 0.0, %v570
  %v572 = vpop.f32.mrb[0].mxu0
  %v573 = vpop.f32.mrb[0].mxu0
  %v574 = vadd.f32 0.0, %v573
  %v575 = vpop.f32.mrb[0].mxu0
  %576 = vmatprep.mubr.bf16.mxu0 0
  %577 = vmatmul.mubr.bf16.gmra.mrb[0].mxu0 %v362
  %v578 = vpop.f32.mrb[0].mxu0
  %v579 = vadd.f32 0.0, %v578
  %v580 = vpop.f32.mrb[0].mxu0
  %v581 = vpop.f32.mrb[0].mxu0
  %v582 = vadd.f32 0.0, %v581
  %v583 = vpop.f32.mrb[0].mxu0
  %584 = vmatprep.mubr.bf16.mxu0 0
  %585 = vmatmul.mubr.bf16.gmra.mrb[0].mxu0 %v363
  %v586 = vpop.f32.mrb[0].mxu0
  %v587 = vadd.f32 0.0, %v586
  %v588 = vpop.f32.mrb[0].mxu0
  %v589 = vpop.f32.mrb[0].mxu0
  %v590 = vadd.f32 0.0, %v589
  %v591 = vpop.f32.mrb[0].mxu0
  %592 = vmatprep.mubr.bf16.mxu0 0
  %593 = vmatmul.mubr.bf16.gmra.mrb[0].mxu0 %v364
  %v594 = vpop.f32.mrb[0].mxu0
  %v595 = vadd.f32 0.0, %v594
  %v596 = vpop.f32.mrb[0].mxu0
  %v597 = vpop.f32.mrb[0].mxu0
  %v598 = vadd.f32 0.0, %v597
  %v599 = vpop.f32.mrb[0].mxu0
  %600 = vmatprep.mubr.bf16.mxu0 0
  %601 = vmatmul.mubr.bf16.gmra.mrb[0].mxu0 %v365
  %v602 = vpop.f32.mrb[0].mxu0
  %v603 = vadd.f32 0.0, %v602
  %v604 = vpop.f32.mrb[0].mxu0
  %v605 = vpop.f32.mrb[0].mxu0
  %v606 = vadd.f32 0.0, %v605
  %v607 = vpop.f32.mrb[0].mxu0
  %608 = vmatprep.mubr.bf16.mxu0 0
  %609 = vmatmul.mubr.bf16.gmra.mrb[0].mxu0 %v366
  %v610 = vpop.f32.mrb[0].mxu0
  %v611 = vadd.f32 0.0, %v610
  %v612 = vpop.f32.mrb[0].mxu0
  %v613 = vpop.f32.mrb[0].mxu0
  %v614 = vadd.f32 0.0, %v613
  %v615 = vpop.f32.mrb[0].mxu0
  %616 = vmatprep.mubr.bf16.mxu0 0
  %617 = vmatmul.mubr.bf16.gmra.mrb[0].mxu0 %v367
  %v618 = vpop.f32.mrb[0].mxu0
  %v619 = vadd.f32 0.0, %v618
  %v620 = vpop.f32.mrb[0].mxu0
  %v621 = vpop.f32.mrb[0].mxu0
  %v622 = vadd.f32 0.0, %v621
  %v623 = vpop.f32.mrb[0].mxu0
  %624 = vmatprep.mubr.bf16.mxu0 0
  %625 = vmatmul.mubr.bf16.gmra.mrb[0].mxu0 %v368
  %v626 = vpop.f32.mrb[0].mxu0
  %v627 = vadd.f32 0.0, %v626
  %v628 = vpop.f32.mrb[0].mxu0
  %v629 = vpop.f32.mrb[0].mxu0
  %v630 = vadd.f32 0.0, %v629
  %v631 = vpop.f32.mrb[0].mxu0
  %632 = vmatprep.mubr.bf16.mxu0 0
  %633 = vmatmul.mubr.bf16.gmra.mrb[0].mxu0 %v369
  %v634 = vpop.f32.mrb[0].mxu0
  %v635 = vadd.f32 0.0, %v634
  %v636 = vpop.f32.mrb[0].mxu0
  %v637 = vpop.f32.mrb[0].mxu0
  %v638 = vadd.f32 0.0, %v637
  %v639 = vpop.f32.mrb[0].mxu0
  %640 = vmatprep.mubr.bf16.mxu0 0
  %641 = vmatmul.mubr.bf16.gmra.mrb[0].mxu0 %v370
  %v642 = vpop.f32.mrb[0].mxu0
  %v643 = vadd.f32 0.0, %v642
  %v644 = vpop.f32.mrb[0].mxu0
  %v645 = vpop.f32.mrb[0].mxu0
  %v646 = vadd.f32 0.0, %v645
  %v647 = vpop.f32.mrb[0].mxu0
  %648 = vmatprep.mubr.bf16.mxu0 0
  %649 = vmatmul.mubr.bf16.gmra.mrb[0].mxu0 %v371
  %v650 = vpop.f32.mrb[0].mxu0
  %v651 = vadd.f32 0.0, %v650
  %v652 = vpop.f32.mrb[0].mxu0
  %v653 = vpop.f32.mrb[0].mxu0
  %v654 = vadd.f32 0.0, %v653
  %v655 = vpop.f32.mrb[0].mxu0
  %656 = vmatprep.mubr.bf16.mxu0 0
  %657 = vmatmul.mubr.bf16.gmra.mrb[0].mxu0 %v372
  %v658 = vpop.f32.mrb[0].mxu0
  %v659 = vadd.f32 0.0, %v658
  %v660 = vpop.f32.mrb[0].mxu0
  %v661 = vpop.f32.mrb[0].mxu0
  %v662 = vadd.f32 0.0, %v661
  %v663 = vpop.f32.mrb[0].mxu0
  %664 = vmatprep.mubr.bf16.mxu0 0
  %665 = vmatmul.mubr.bf16.gmra.mrb[0].mxu0 %v373
  %v666 = vpop.f32.mrb[0].mxu0
  %v667 = vadd.f32 0.0, %v666
  %v668 = vpop.f32.mrb[0].mxu0
  %v669 = vpop.f32.mrb[0].mxu0
  %v670 = vadd.f32 0.0, %v669
  %v671 = vpop.f32.mrb[0].mxu0
  %672 = vmatprep.mubr.bf16.mxu0 0
  %673 = vmatmul.mubr.bf16.gmra.mrb[0].mxu0 %v374
  %v674 = vpop.f32.mrb[0].mxu0
  %v675 = vadd.f32 0.0, %v674
  %v676 = vpop.f32.mrb[0].mxu0
  %v677 = vpop.f32.mrb[0].mxu0
  %v678 = vadd.f32 0.0, %v677
  %v679 = vpop.f32.mrb[0].mxu0
  %680 = vmatprep.mubr.bf16.mxu0 0
  %681 = vmatmul.mubr.bf16.gmra.mrb[0].mxu0 %v375
  %v682 = vpop.f32.mrb[0].mxu0
  %v683 = vadd.f32 0.0, %v682
  %v684 = vpop.f32.mrb[0].mxu0
  %v685 = vpop.f32.mrb[0].mxu0
  %v686 = vadd.f32 0.0, %v685
  %v687 = vpop.f32.mrb[0].mxu0
  %688 = vmatprep.mubr.bf16.mxu0 0
  %689 = vmatmul.mubr.bf16.gmra.mrb[0].mxu0 %v376
  %v690 = vpop.f32.mrb[0].mxu0
  %v691 = vadd.f32 0.0, %v690
  %v692 = vpop.f32.mrb[0].mxu0
  %v693 = vpop.f32.mrb[0].mxu0
  %v694 = vadd.f32 0.0, %v693
  %v695 = vpop.f32.mrb[0].mxu0
  %696 = vmatprep.mubr.bf16.mxu0 0
  %697 = vmatmul.mubr.bf16.gmra.mrb[0].mxu0 %v377
  %v698 = vpop.f32.mrb[0].mxu0
  %v699 = vadd.f32 0.0, %v698
  %v700 = vpop.f32.mrb[0].mxu0
  %v701 = vpop.f32.mrb[0].mxu0
  %v702 = vadd.f32 0.0, %v701
  %v703 = vpop.f32.mrb[0].mxu0
  %704 = vmatprep.mubr.bf16.mxu0 0
  %705 = vmatmul.mubr.bf16.gmra.mrb[0].mxu0 %v378
  %v706 = vpop.f32.mrb[0].mxu0
  %v707 = vadd.f32 0.0, %v706
  %v708 = vpop.f32.mrb[0].mxu0
  %v709 = vpop.f32.mrb[0].mxu0
  %v710 = vadd.f32 0.0, %v709
  %v711 = vpop.f32.mrb[0].mxu0
  %712 = vmatprep.mubr.bf16.mxu0 0
  %713 = vmatmul.mubr.bf16.gmra.mrb[0].mxu0 %v379
  %v714 = vpop.f32.mrb[0].mxu0
  %v715 = vadd.f32 0.0, %v714
  %v716 = vpop.f32.mrb[0].mxu0
  %v717 = vpop.f32.mrb[0].mxu0
  %v718 = vadd.f32 0.0, %v717
  %v719 = vpop.f32.mrb[0].mxu0
  %720 = vmatprep.mubr.bf16.mxu0 0
  %721 = vmatmul.mubr.bf16.gmra.mrb[0].mxu0 %v380
  %v722 = vpop.f32.mrb[0].mxu0
  %v723 = vadd.f32 0.0, %v722
  %v724 = vpop.f32.mrb[0].mxu0
  %v725 = vpop.f32.mrb[0].mxu0
  %v726 = vadd.f32 0.0, %v725
  %v727 = vpop.f32.mrb[0].mxu0
  %728 = vmatprep.mubr.bf16.mxu0 0
  %729 = vmatmul.mubr.bf16.gmra.mrb[0].mxu0 %v381
  %v730 = vpop.f32.mrb[0].mxu0
  %v731 = vadd.f32 0.0, %v730
  %v732 = vpop.f32.mrb[0].mxu0
  %v733 = vpop.f32.mrb[0].mxu0
  %v734 = vadd.f32 0.0, %v733
  %v735 = vpop.f32.mrb[0].mxu0
  %736 = vmatprep.mubr.bf16.mxu0 0
  %737 = vmatmul.mubr.bf16.gmra.mrb[0].mxu0 %v382
  %v738 = vpop.f32.mrb[0].mxu0
  %v739 = vadd.f32 0.0, %v738
  %v740 = vpop.f32.mrb[0].mxu0
  %v741 = vpop.f32.mrb[0].mxu0
  %v742 = vadd.f32 0.0, %v741
  %v743 = vpop.f32.mrb[0].mxu0
  %744 = vmatprep.mubr.bf16.mxu0 0
  %745 = vmatmul.mubr.bf16.gmra.mrb[0].mxu0 %v383
  %v746 = vpop.f32.mrb[0].mxu0
  %v747 = vadd.f32 0.0, %v746
  %v748 = vpop.f32.mrb[0].mxu0
  %v749 = vpop.f32.mrb[0].mxu0
  %v750 = vadd.f32 0.0, %v749
  %v751 = vpop.f32.mrb[0].mxu0
  %752 = vdwg.mxu0
  %v753 = vadd.f32 %v80, %v499
  %v754 = vadd.f32 %v81, %v502
  %v755 = vadd.f32 %v82, %v507
  %v756 = vadd.f32 %v83, %v510
  %v757 = vadd.f32 %v84, %v515
  %v758 = vadd.f32 %v85, %v518
  %v759 = vadd.f32 %v86, %v523
  %v760 = vadd.f32 %v87, %v526
  %v761 = vadd.f32 %v88, %v531
  %v762 = vadd.f32 %v89, %v534
  %v763 = vadd.f32 %v90, %v539
  %v764 = vadd.f32 %v91, %v542
  %v765 = vadd.f32 %v92, %v547
  %v766 = vadd.f32 %v93, %v550
  %v767 = vadd.f32 %v94, %v555
  %v768 = vadd.f32 %v95, %v558
  %v769 = vadd.f32 %v96, %v563
  %v770 = vadd.f32 %v97, %v566
  %v771 = vadd.f32 %v98, %v571
  %v772 = vadd.f32 %v99, %v574
  %v773 = vadd.f32 %v100, %v579
  %v774 = vadd.f32 %v101, %v582
  %v775 = vadd.f32 %v102, %v587
  %v776 = vadd.f32 %v103, %v590
  %v777 = vadd.f32 %v104, %v595
  %v778 = vadd.f32 %v105, %v598
  %v779 = vadd.f32 %v106, %v603
  %v780 = vadd.f32 %v107, %v606
  %v781 = vadd.f32 %v108, %v611
  %v782 = vadd.f32 %v109, %v614
  %v783 = vadd.f32 %v110, %v619
  %v784 = vadd.f32 %v111, %v622
  %v785 = vadd.f32 %v112, %v627
  %v786 = vadd.f32 %v113, %v630
  %v787 = vadd.f32 %v114, %v635
  %v788 = vadd.f32 %v115, %v638
  %v789 = vadd.f32 %v116, %v643
  %v790 = vadd.f32 %v117, %v646
  %v791 = vadd.f32 %v118, %v651
  %v792 = vadd.f32 %v119, %v654
  %v793 = vadd.f32 %v120, %v659
  %v794 = vadd.f32 %v121, %v662
  %v795 = vadd.f32 %v122, %v667
  %v796 = vadd.f32 %v123, %v670
  %v797 = vadd.f32 %v124, %v675
  %v798 = vadd.f32 %v125, %v678
  %v799 = vadd.f32 %v126, %v683
  %v800 = vadd.f32 %v127, %v686
  %v801 = vadd.f32 %v128, %v691
  %v802 = vadd.f32 %v129, %v694
  %v803 = vadd.f32 %v130, %v699
  %v804 = vadd.f32 %v131, %v702
  %v805 = vadd.f32 %v132, %v707
  %v806 = vadd.f32 %v133, %v710
  %v807 = vadd.f32 %v134, %v715
  %v808 = vadd.f32 %v135, %v718
  %v809 = vadd.f32 %v136, %v723
  %v810 = vadd.f32 %v137, %v726
  %v811 = vadd.f32 %v138, %v731
  %v812 = vadd.f32 %v139, %v734
  %v813 = vadd.f32 %v140, %v739
  %v814 = vadd.f32 %v141, %v742
  %v815 = vadd.f32 %v142, %v747
  %v816 = vadd.f32 %v143, %v750
  %817 = vst [vmem:[#allocation2] sm:$0xff] %v753
  %818 = vst [vmem:[#allocation2 + $0x8] sm:$0xff] %v754
  %819 = vst [vmem:[#allocation2 + $0x10] sm:$0xff] %v755
  %820 = vst [vmem:[#allocation2 + $0x18] sm:$0xff] %v756
  %821 = vst [vmem:[#allocation2 + $0x20] sm:$0xff] %v757
  %822 = vst [vmem:[#allocation2 + $0x28] sm:$0xff] %v758
  %823 = vst [vmem:[#allocation2 + $0x30] sm:$0xff] %v759
  %824 = vst [vmem:[#allocation2 + $0x38] sm:$0xff] %v760
  %825 = vst [vmem:[#allocation2 + $0x40] sm:$0xff] %v761
  %826 = vst [vmem:[#allocation2 + $0x48] sm:$0xff] %v762
  %827 = vst [vmem:[#allocation2 + $0x50] sm:$0xff] %v763
  %828 = vst [vmem:[#allocation2 + $0x58] sm:$0xff] %v764
  %829 = vst [vmem:[#allocation2 + $0x60] sm:$0xff] %v765
  %830 = vst [vmem:[#allocation2 + $0x68] sm:$0xff] %v766
  %831 = vst [vmem:[#allocation2 + $0x70] sm:$0xff] %v767
  %832 = vst [vmem:[#allocation2 + $0x78] sm:$0xff] %v768
  %833 = vst [vmem:[#allocation2 + $0x80] sm:$0xff] %v769
  %834 = vst [vmem:[#allocation2 + $0x88] sm:$0xff] %v770
  %835 = vst [vmem:[#allocation2 + $0x90] sm:$0xff] %v771
  %836 = vst [vmem:[#allocation2 + $0x98] sm:$0xff] %v772
  %837 = vst [vmem:[#allocation2 + $0xa0] sm:$0xff] %v773
  %838 = vst [vmem:[#allocation2 + $0xa8] sm:$0xff] %v774
  %839 = vst [vmem:[#allocation2 + $0xb0] sm:$0xff] %v775
  %840 = vst [vmem:[#allocation2 + $0xb8] sm:$0xff] %v776
  %841 = vst [vmem:[#allocation2 + $0xc0] sm:$0xff] %v777
  %842 = vst [vmem:[#allocation2 + $0xc8] sm:$0xff] %v778
  %843 = vst [vmem:[#allocation2 + $0xd0] sm:$0xff] %v779
  %844 = vst [vmem:[#allocation2 + $0xd8] sm:$0xff] %v780
  %845 = vst [vmem:[#allocation2 + $0xe0] sm:$0xff] %v781
  %846 = vst [vmem:[#allocation2 + $0xe8] sm:$0xff] %v782
  %847 = vst [vmem:[#allocation2 + $0xf0] sm:$0xff] %v783
  %848 = vst [vmem:[#allocation2 + $0xf8] sm:$0xff] %v784
  %849 = vst [vmem:[#allocation2 + $0x100] sm:$0xff] %v785
  %850 = vst [vmem:[#allocation2 + $0x108] sm:$0xff] %v786
  %851 = vst [vmem:[#allocation2 + $0x110] sm:$0xff] %v787
  %852 = vst [vmem:[#allocation2 + $0x118] sm:$0xff] %v788
  %853 = vst [vmem:[#allocation2 + $0x120] sm:$0xff] %v789
  %854 = vst [vmem:[#allocation2 + $0x128] sm:$0xff] %v790
  %855 = vst [vmem:[#allocation2 + $0x130] sm:$0xff] %v791
  %856 = vst [vmem:[#allocation2 + $0x138] sm:$0xff] %v792
  %857 = vst [vmem:[#allocation2 + $0x140] sm:$0xff] %v793
  %858 = vst [vmem:[#allocation2 + $0x148] sm:$0xff] %v794
  %859 = vst [vmem:[#allocation2 + $0x150] sm:$0xff] %v795
  %860 = vst [vmem:[#allocation2 + $0x158] sm:$0xff] %v796
  %861 = vst [vmem:[#allocation2 + $0x160] sm:$0xff] %v797
  %862 = vst [vmem:[#allocation2 + $0x168] sm:$0xff] %v798
  %863 = vst [vmem:[#allocation2 + $0x170] sm:$0xff] %v799
  %864 = vst [vmem:[#allocation2 + $0x178] sm:$0xff] %v800
  %865 = vst [vmem:[#allocation2 + $0x180] sm:$0xff] %v801
  %866 = vst [vmem:[#allocation2 + $0x188] sm:$0xff] %v802
  %867 = vst [vmem:[#allocation2 + $0x190] sm:$0xff] %v803
  %868 = vst [vmem:[#allocation2 + $0x198] sm:$0xff] %v804
  %869 = vst [vmem:[#allocation2 + $0x1a0] sm:$0xff] %v805
  %870 = vst [vmem:[#allocation2 + $0x1a8] sm:$0xff] %v806
  %871 = vst [vmem:[#allocation2 + $0x1b0] sm:$0xff] %v807
  %872 = vst [vmem:[#allocation2 + $0x1b8] sm:$0xff] %v808
  %873 = vst [vmem:[#allocation2 + $0x1c0] sm:$0xff] %v809
  %874 = vst [vmem:[#allocation2 + $0x1c8] sm:$0xff] %v810
  %875 = vst [vmem:[#allocation2 + $0x1d0] sm:$0xff] %v811
  %876 = vst [vmem:[#allocation2 + $0x1d8] sm:$0xff] %v812
  %877 = vst [vmem:[#allocation2 + $0x1e0] sm:$0xff] %v813
  %878 = vst [vmem:[#allocation2 + $0x1e8] sm:$0xff] %v814
  %879 = vst [vmem:[#allocation2 + $0x1f0] sm:$0xff] %v815
  %880 = vst [vmem:[#allocation2 + $0x1f8] sm:$0xff] %v816
  // Predicated region
  $region14: #{generator_forward.27} parent=0 // pred_check
    %p881 = pneg %p12
  $region15: #{generator_forward.27} parent=0 // pred_check_branch
    %883 = sbr.rel (%p881) target = $region17
  $region16: #{generator_forward.27} parent=0 // pred_region
    %v884 = vld [vmem:[#allocation2] sm:$0xff]
    %v885 = vld [vmem:[#allocation2 + $0x8] sm:$0xff]
    %v886 = vld [vmem:[#allocation2 + $0x10] sm:$0xff]
    %v887 = vld [vmem:[#allocation2 + $0x18] sm:$0xff]
    %v888 = vld [vmem:[#allocation2 + $0x20] sm:$0xff]
    %v889 = vld [vmem:[#allocation2 + $0x28] sm:$0xff]
    %v890 = vld [vmem:[#allocation2 + $0x30] sm:$0xff]
    %v891 = vld [vmem:[#allocation2 + $0x38] sm:$0xff]
    %v892 = vld [vmem:[#allocation2 + $0x40] sm:$0xff]
    %v893 = vld [vmem:[#allocation2 + $0x48] sm:$0xff]
    %v894 = vld [vmem:[#allocation2 + $0x50] sm:$0xff]
    %v895 = vld [vmem:[#allocation2 + $0x58] sm:$0xff]
    %v896 = vld [vmem:[#allocation2 + $0x60] sm:$0xff]
    %v897 = vld [vmem:[#allocation2 + $0x68] sm:$0xff]
    %v898 = vld [vmem:[#allocation2 + $0x70] sm:$0xff]
    %v899 = vld [vmem:[#allocation2 + $0x78] sm:$0xff]
    %v900 = vld [vmem:[#allocation2 + $0x80] sm:$0xff]
    %v901 = vld [vmem:[#allocation2 + $0x88] sm:$0xff]
    %v902 = vld [vmem:[#allocation2 + $0x90] sm:$0xff]
    %v903 = vld [vmem:[#allocation2 + $0x98] sm:$0xff]
    %v904 = vld [vmem:[#allocation2 + $0xa0] sm:$0xff]
    %v905 = vld [vmem:[#allocation2 + $0xa8] sm:$0xff]
    %v906 = vld [vmem:[#allocation2 + $0xb0] sm:$0xff]
    %v907 = vld [vmem:[#allocation2 + $0xb8] sm:$0xff]
    %v908 = vld [vmem:[#allocation2 + $0xc0] sm:$0xff]
    %v909 = vld [vmem:[#allocation2 + $0xc8] sm:$0xff]
    %v910 = vld [vmem:[#allocation2 + $0xd0] sm:$0xff]
    %v911 = vld [vmem:[#allocation2 + $0xd8] sm:$0xff]
    %v912 = vld [vmem:[#allocation2 + $0xe0] sm:$0xff]
    %v913 = vld [vmem:[#allocation2 + $0xe8] sm:$0xff]
    %v914 = vld [vmem:[#allocation2 + $0xf0] sm:$0xff]
    %v915 = vld [vmem:[#allocation2 + $0xf8] sm:$0xff]
    %v916 = vld [vmem:[#allocation2 + $0x100] sm:$0xff]
    %v917 = vld [vmem:[#allocation2 + $0x108] sm:$0xff]
    %v918 = vld [vmem:[#allocation2 + $0x110] sm:$0xff]
    %v919 = vld [vmem:[#allocation2 + $0x118] sm:$0xff]
    %v920 = vld [vmem:[#allocation2 + $0x120] sm:$0xff]
    %v921 = vld [vmem:[#allocation2 + $0x128] sm:$0xff]
    %v922 = vld [vmem:[#allocation2 + $0x130] sm:$0xff]
    %v923 = vld [vmem:[#allocation2 + $0x138] sm:$0xff]
    %v924 = vld [vmem:[#allocation2 + $0x140] sm:$0xff]
    %v925 = vld [vmem:[#allocation2 + $0x148] sm:$0xff]
    %v926 = vld [vmem:[#allocation2 + $0x150] sm:$0xff]
    %v927 = vld [vmem:[#allocation2 + $0x158] sm:$0xff]
    %v928 = vld [vmem:[#allocation2 + $0x160] sm:$0xff]
    %v929 = vld [vmem:[#allocation2 + $0x168] sm:$0xff]
    %v930 = vld [vmem:[#allocation2 + $0x170] sm:$0xff]
    %v931 = vld [vmem:[#allocation2 + $0x178] sm:$0xff]
    %v932 = vld [vmem:[#allocation2 + $0x180] sm:$0xff]
    %v933 = vld [vmem:[#allocation2 + $0x188] sm:$0xff]
    %v934 = vld [vmem:[#allocation2 + $0x190] sm:$0xff]
    %v935 = vld [vmem:[#allocation2 + $0x198] sm:$0xff]
    %v936 = vld [vmem:[#allocation2 + $0x1a0] sm:$0xff]
    %v937 = vld [vmem:[#allocation2 + $0x1a8] sm:$0xff]
    %v938 = vld [vmem:[#allocation2 + $0x1b0] sm:$0xff]
    %v939 = vld [vmem:[#allocation2 + $0x1b8] sm:$0xff]
    %v940 = vld [vmem:[#allocation2 + $0x1c0] sm:$0xff]
    %v941 = vld [vmem:[#allocation2 + $0x1c8] sm:$0xff]
    %v942 = vld [vmem:[#allocation2 + $0x1d0] sm:$0xff]
    %v943 = vld [vmem:[#allocation2 + $0x1d8] sm:$0xff]
    %v944 = vld [vmem:[#allocation2 + $0x1e0] sm:$0xff]
    %v945 = vld [vmem:[#allocation2 + $0x1e8] sm:$0xff]
    %v946 = vld [vmem:[#allocation2 + $0x1f0] sm:$0xff]
    %v947 = vld [vmem:[#allocation2 + $0x1f8] sm:$0xff]
    %v948 = vtanh.pop %v884
    %v949 = vtanh.pop %v885
    %v950 = vtanh.pop %v886
    %v951 = vtanh.pop %v887
    %v952 = vtanh.pop %v888
    %v953 = vtanh.pop %v889
    %v954 = vtanh.pop %v890
    %v955 = vtanh.pop %v891
    %v956 = vtanh.pop %v892
    %v957 = vtanh.pop %v893
    %v958 = vtanh.pop %v894
    %v959 = vtanh.pop %v895
    %v960 = vtanh.pop %v896
    %v961 = vtanh.pop %v897
    %v962 = vtanh.pop %v898
    %v963 = vtanh.pop %v899
    %v964 = vtanh.pop %v900
    %v965 = vtanh.pop %v901
    %v966 = vtanh.pop %v902
    %v967 = vtanh.pop %v903
    %v968 = vtanh.pop %v904
    %v969 = vtanh.pop %v905
    %v970 = vtanh.pop %v906
    %v971 = vtanh.pop %v907
    %v972 = vtanh.pop %v908
    %v973 = vtanh.pop %v909
    %v974 = vtanh.pop %v910
    %v975 = vtanh.pop %v911
    %v976 = vtanh.pop %v912
    %v977 = vtanh.pop %v913
    %v978 = vtanh.pop %v914
    %v979 = vtanh.pop %v915
    %v980 = vtanh.pop %v916
    %v981 = vtanh.pop %v917
    %v982 = vtanh.pop %v918
    %v983 = vtanh.pop %v919
    %v984 = vtanh.pop %v920
    %v985 = vtanh.pop %v921
    %v986 = vtanh.pop %v922
    %v987 = vtanh.pop %v923
    %v988 = vtanh.pop %v924
    %v989 = vtanh.pop %v925
    %v990 = vtanh.pop %v926
    %v991 = vtanh.pop %v927
    %v992 = vtanh.pop %v928
    %v993 = vtanh.pop %v929
    %v994 = vtanh.pop %v930
    %v995 = vtanh.pop %v931
    %v996 = vtanh.pop %v932
    %v997 = vtanh.pop %v933
    %v998 = vtanh.pop %v934
    %v999 = vtanh.pop %v935
    %v1000 = vtanh.pop %v936
    %v1001 = vtanh.pop %v937
    %v1002 = vtanh.pop %v938
    %v1003 = vtanh.pop %v939
    %v1004 = vtanh.pop %v940
    %v1005 = vtanh.pop %v941
    %v1006 = vtanh.pop %v942
    %v1007 = vtanh.pop %v943
    %v1008 = vtanh.pop %v944
    %v1009 = vtanh.pop %v945
    %v1010 = vtanh.pop %v946
    %v1011 = vtanh.pop %v947
    %1012 = vst [vmem:[%s2] sm:$0xff] %v948
    %1013 = vst [vmem:[%s2 + $0x8] sm:$0xff] %v949
    %1014 = vst [vmem:[%s2 + $0x10] sm:$0xff] %v950
    %1015 = vst [vmem:[%s2 + $0x18] sm:$0xff] %v951
    %1016 = vst [vmem:[%s2 + $0x20] sm:$0xff] %v952
    %1017 = vst [vmem:[%s2 + $0x28] sm:$0xff] %v953
    %1018 = vst [vmem:[%s2 + $0x30] sm:$0xff] %v954
    %1019 = vst [vmem:[%s2 + $0x38] sm:$0xff] %v955
    %1020 = vst [vmem:[%s2 + $0x40] sm:$0xff] %v956
    %1021 = vst [vmem:[%s2 + $0x48] sm:$0xff] %v957
    %1022 = vst [vmem:[%s2 + $0x50] sm:$0xff] %v958
    %1023 = vst [vmem:[%s2 + $0x58] sm:$0xff] %v959
    %1024 = vst [vmem:[%s2 + $0x60] sm:$0xff] %v960
    %1025 = vst [vmem:[%s2 + $0x68] sm:$0xff] %v961
    %1026 = vst [vmem:[%s2 + $0x70] sm:$0xff] %v962
    %1027 = vst [vmem:[%s2 + $0x78] sm:$0xff] %v963
    %1028 = vst [vmem:[%s2 + $0x80] sm:$0xff] %v964
    %1029 = vst [vmem:[%s2 + $0x88] sm:$0xff] %v965
    %1030 = vst [vmem:[%s2 + $0x90] sm:$0xff] %v966
    %1031 = vst [vmem:[%s2 + $0x98] sm:$0xff] %v967
    %1032 = vst [vmem:[%s2 + $0xa0] sm:$0xff] %v968
    %1033 = vst [vmem:[%s2 + $0xa8] sm:$0xff] %v969
    %1034 = vst [vmem:[%s2 + $0xb0] sm:$0xff] %v970
    %1035 = vst [vmem:[%s2 + $0xb8] sm:$0xff] %v971
    %1036 = vst [vmem:[%s2 + $0xc0] sm:$0xff] %v972
    %1037 = vst [vmem:[%s2 + $0xc8] sm:$0xff] %v973
    %1038 = vst [vmem:[%s2 + $0xd0] sm:$0xff] %v974
    %1039 = vst [vmem:[%s2 + $0xd8] sm:$0xff] %v975
    %1040 = vst [vmem:[%s2 + $0xe0] sm:$0xff] %v976
    %1041 = vst [vmem:[%s2 + $0xe8] sm:$0xff] %v977
    %1042 = vst [vmem:[%s2 + $0xf0] sm:$0xff] %v978
    %1043 = vst [vmem:[%s2 + $0xf8] sm:$0xff] %v979
    %1044 = vst [vmem:[%s2 + $0x100] sm:$0xff] %v980
    %1045 = vst [vmem:[%s2 + $0x108] sm:$0xff] %v981
    %1046 = vst [vmem:[%s2 + $0x110] sm:$0xff] %v982
    %1047 = vst [vmem:[%s2 + $0x118] sm:$0xff] %v983
    %1048 = vst [vmem:[%s2 + $0x120] sm:$0xff] %v984
    %1049 = vst [vmem:[%s2 + $0x128] sm:$0xff] %v985
    %1050 = vst [vmem:[%s2 + $0x130] sm:$0xff] %v986
    %1051 = vst [vmem:[%s2 + $0x138] sm:$0xff] %v987
    %1052 = vst [vmem:[%s2 + $0x140] sm:$0xff] %v988
    %1053 = vst [vmem:[%s2 + $0x148] sm:$0xff] %v989
    %1054 = vst [vmem:[%s2 + $0x150] sm:$0xff] %v990
    %1055 = vst [vmem:[%s2 + $0x158] sm:$0xff] %v991
    %1056 = vst [vmem:[%s2 + $0x160] sm:$0xff] %v992
    %1057 = vst [vmem:[%s2 + $0x168] sm:$0xff] %v993
    %1058 = vst [vmem:[%s2 + $0x170] sm:$0xff] %v994
    %1059 = vst [vmem:[%s2 + $0x178] sm:$0xff] %v995
    %1060 = vst [vmem:[%s2 + $0x180] sm:$0xff] %v996
    %1061 = vst [vmem:[%s2 + $0x188] sm:$0xff] %v997
    %1062 = vst [vmem:[%s2 + $0x190] sm:$0xff] %v998
    %1063 = vst [vmem:[%s2 + $0x198] sm:$0xff] %v999
    %1064 = vst [vmem:[%s2 + $0x1a0] sm:$0xff] %v1000
    %1065 = vst [vmem:[%s2 + $0x1a8] sm:$0xff] %v1001
    %1066 = vst [vmem:[%s2 + $0x1b0] sm:$0xff] %v1002
    %1067 = vst [vmem:[%s2 + $0x1b8] sm:$0xff] %v1003
    %1068 = vst [vmem:[%s2 + $0x1c0] sm:$0xff] %v1004
    %1069 = vst [vmem:[%s2 + $0x1c8] sm:$0xff] %v1005
    %1070 = vst [vmem:[%s2 + $0x1d0] sm:$0xff] %v1006
    %1071 = vst [vmem:[%s2 + $0x1d8] sm:$0xff] %v1007
    %1072 = vst [vmem:[%s2 + $0x1e0] sm:$0xff] %v1008
    %1073 = vst [vmem:[%s2 + $0x1e8] sm:$0xff] %v1009
    %1074 = vst [vmem:[%s2 + $0x1f0] sm:$0xff] %v1010
    %1075 = vst [vmem:[%s2 + $0x1f8] sm:$0xff] %v1011
  $region17: #{generator_forward.27} parent=0 // pred_fallthru
    _
  // Predicated region
  $region18: #{generator_forward.27} parent=0 // pred_check
    _
  $region19: #{generator_forward.27} parent=0 // pred_check_branch
    %1077 = sbr.rel (0) target = $region21
  $region20: #{generator_forward.27} parent=0 // pred_region
    _
  $region21: #{generator_forward.27} parent=0 // pred_fallthru
    _
  // Predicated region
  $region22: #{generator_forward.27} parent=0 // pred_check
    _
  $region23: #{generator_forward.27} parent=0 // pred_check_branch
    %1079 = sbr.rel (0) target = $region25
  $region24: #{generator_forward.27} parent=0 // pred_region
    _
  $region25: #{generator_forward.27} parent=0 // pred_fallthru
    _

</llo_original>
